<compile_context>
chip_gen: v7x
topology: tpu7x:2x2x1
jax: 0.10.0
libtpu: 0.0.40
codegen_flags: <defaults>
</compile_context>

<pallas_src>
import jax
import jax.numpy as jnp
from jax import lax
from jax.experimental import pallas as pl
from jax.experimental.pallas import tpu as pltpu

# Sizes are fixed by the module: RegGNN(400, 400, 400, 0.5) and nn.Linear(400, 1)
# applied over the node axis force N_NODES == 400.
N_NODES = 400
N_FEAT = 400
N_HID = 400
N_OUT = 400
N_OUT_PAD = 512   # lane-dense (multiple of 128) padding for W2 / bias / output


def _reg_gnn_kernel(adj_ref, s_ref, b1_ref, wl_ref, w2_ref, b2_ref, out_ref):
    """One adjacency of RegGNN.forward (eval mode), algebraically collapsed."""
    adj = adj_ref[0]                                               # (N, N) f32

    # DenseGCNConv normalization (add_loop=False): deg = clamp(A @ 1, min=1)
    deg = jnp.sum(adj, axis=-1, keepdims=True)                     # (N, 1)
    dinv = lax.rsqrt(jnp.maximum(deg, 1.0))                        # (N, 1)
    a_s = dinv * adj                                               # (N, N) = D^-1/2 A

    # c = (D^-1/2 A D^-1/2) @ 1 = a_s @ dinv.  Broadcast the rhs to 128 lanes so
    # the MXU sees a standard lane-aligned matmul shape; keep column 0.
    c = jnp.dot(a_s, jnp.broadcast_to(dinv, (N_NODES, 128)),
                preferred_element_type=jnp.float32)[:, 0:1]        # (N, 1)

    # gc1 with all-ones features: g = relu(c * colsum(W1) + b1)  (outer product + bias).
    # F.dropout(p=0.5) is identity in eval mode.
    g = jnp.maximum(c * s_ref[...] + b1_ref[...], 0.0)             # (N, H)
    gs = dinv * g                                                  # (N, H) = D^-1/2 g

    # Output projection reassociated through gc2: three small matvecs.
    r1 = jnp.dot(wl_ref[...], a_s, preferred_element_type=jnp.float32)   # (1, N)
    q = jnp.dot(r1, gs, preferred_element_type=jnp.float32)              # (1, H)
    out = jnp.dot(q, w2_ref[...], preferred_element_type=jnp.float32)    # (1, OUT_PAD)
    out_ref[0] = out + b2_ref[...]


def reg_gnn_forward(adj_stack, params):
    """adj_stack: (G, N, N) f32  ->  (G, N_OUT) f32 backbone outputs."""
    G = adj_stack.shape[0]
    w1, b1, w2, b2, wl, bl = params

    # Precompute everything that does not depend on adj (tiny, done once).
    s = jnp.sum(w1, axis=0, keepdims=True)                    # (1, H): ones-row @ W1
    b2_eff = jnp.sum(wl) * b2 + bl[0, 0]                      # (1, OUT) fused bias
    w2_p = jnp.pad(w2, ((0, 0), (0, N_OUT_PAD - N_OUT)))      # (H, 512) lane-dense
    b2_p = jnp.pad(b2_eff, ((0, 0), (0, N_OUT_PAD - N_OUT)))  # (1, 512)

    out = pl.pallas_call(
        _reg_gnn_kernel,
        out_shape=jax.ShapeDtypeStruct((G, 1, N_OUT_PAD), jnp.float32),
        grid_spec=pltpu.PrefetchScalarGridSpec(
            num_scalar_prefetch=0,
            grid=(G,),
            in_specs=[
                pl.BlockSpec((1, N_NODES, N_NODES), lambda g: (g, 0, 0)),  # adj
                pl.BlockSpec((1, N_HID), lambda g: (0, 0)),                # s = colsum(W1)
                pl.BlockSpec((1, N_HID), lambda g: (0, 0)),                # b1
                pl.BlockSpec((1, N_NODES), lambda g: (0, 0)),              # w_lin
                pl.BlockSpec((N_HID, N_OUT_PAD), lambda g: (0, 0)),        # W2 (padded)
                pl.BlockSpec((1, N_OUT_PAD), lambda g: (0, 0)),            # fused bias
            ],
            out_specs=pl.BlockSpec((1, 1, N_OUT_PAD), lambda g: (g, 0, 0)),
        ),
        compiler_params=pltpu.CompilerParams(
            dimension_semantics=("parallel",),
        ),
    )(adj_stack, s, b1, wl, w2_p, b2_p)
    return out.reshape(G, N_OUT_PAD)[:, :N_OUT]


def gcn_model_forward(x_list, params):
    """GCNModel.forward: three adjacencies -> fused prediction (single pallas_call)."""
    B = x_list[0].shape[0]
    adj_stack = jnp.concatenate(list(x_list), axis=0)          # (3B, N, N)
    outs = reg_gnn_forward(adj_stack, params).reshape(3, B, N_OUT)
    # TODO(synk): fusion_model is an unspecified constructor argument; using the
    # elementwise mean of the three backbone outputs as a deterministic stand-in.
    return jnp.mean(outs, axis=0)


def reg_gnn_reference(adj, params):
    """Plain-JAX reference (un-collapsed math, HIGHEST precision) for checking."""
    w1, b1, w2, b2, wl, bl = params
    hp = lax.Precision.HIGHEST
    feat = jnp.ones((adj.shape[1], N_FEAT), jnp.float32)
    deg = jnp.maximum(jnp.sum(adj, axis=-1), 1.0)              # (B, N)
    dinv = deg ** -0.5
    a_norm = dinv[:, :, None] * adj * dinv[:, None, :]         # (B, N, N)
    xw1 = jnp.einsum('nf,fh->nh', feat, w1, precision=hp)
    h = jnp.einsum('bij,jh->bih', a_norm, xw1, precision=hp) + b1
    h = jnp.maximum(h, 0.0)
    hw2 = jnp.einsum('bih,ho->bio', h, w2, precision=hp)
    h2 = jnp.einsum('bij,bjo->bio', a_norm, hw2, precision=hp) + b2
    return jnp.einsum('n,bno->bo', wl[0], h2, precision=hp) + bl[0, 0]


def init_params(key):
    k1, k2, k3, k4, k5, k6 = jax.random.split(key, 6)
    scale = 0.05
    w1 = scale * jax.random.normal(k1, (N_FEAT, N_HID), jnp.float32)
    b1 = scale * jax.random.normal(k2, (1, N_HID), jnp.float32)
    w2 = scale * jax.random.normal(k3, (N_HID, N_OUT), jnp.float32)
    b2 = scale * jax.random.normal(k4, (1, N_OUT), jnp.float32)
    wl = scale * jax.random.normal(k5, (1, N_NODES), jnp.float32)
    bl = scale * jax.random.normal(k6, (1, 1), jnp.float32)
    return (w1, b1, w2, b2, wl, bl)


if __name__ == "__main__":
    key = jax.random.PRNGKey(0)
    kp, ka0, ka1, ka2 = jax.random.split(key, 4)

    B = 2
    params = init_params(kp)

    def make_adj(k):
        return (jax.random.uniform(k, (B, N_NODES, N_NODES)) < 0.1).astype(jnp.float32)

    x_list = [make_adj(ka0), make_adj(ka1), make_adj(ka2)]

    y_pred = jax.block_until_ready(gcn_model_forward(x_list, params))
    assert y_pred.shape == (B, N_OUT), y_pred.shape

    # Correctness check against the un-collapsed plain-JAX reference.
    refs = [reg_gnn_reference(a, params) for a in x_list]
    y_ref = jnp.mean(jnp.stack(refs), axis=0)
    max_err = float(jnp.max(jnp.abs(y_pred - y_ref)))
    # All-f32 path; 2e-2 (vs. previous 5e-2) only leaves headroom for possible
    # reduced-precision MXU f32 passes while still catching normalization /
    # bias-broadcast bugs (outputs are O(0.1-1)).
    assert jnp.allclose(y_pred, y_ref, rtol=2e-2, atol=2e-2), max_err

    print("KERNEL_OK")
</pallas_src>

<mosaic_0001>
module attributes {stable_mosaic.version = 11 : i64} {
  func.func @_reg_gnn_kernel(%arg0: i32, %arg1: memref<1x400x400xf32, #tpu.memory_space<vmem>>, %arg2: memref<1x400xf32, #tpu.memory_space<vmem>>, %arg3: memref<1x400xf32, #tpu.memory_space<vmem>>, %arg4: memref<1x400xf32, #tpu.memory_space<vmem>>, %arg5: memref<400x512xf32, #tpu.memory_space<vmem>>, %arg6: memref<1x512xf32, #tpu.memory_space<vmem>>, %arg7: memref<1x1x512xf32, #tpu.memory_space<vmem>>) attributes {dimension_semantics = [#tpu.dimension_semantics<parallel>], iteration_bounds = array<i64: 6>, scalar_prefetch = 0 : i64, scratch_operands = 0 : i64, tpu.core_type = #tpu.core_type<tc>, window_params = [{transform_indices = @transform_0, window_bounds = array<i64: 1, 400, 400>}, {pipeline_mode = #tpu.pipeline_mode<synchronous>, transform_indices = @transform_1, window_bounds = array<i64: 1, 400>}, {pipeline_mode = #tpu.pipeline_mode<synchronous>, transform_indices = @transform_2, window_bounds = array<i64: 1, 400>}, {pipeline_mode = #tpu.pipeline_mode<synchronous>, transform_indices = @transform_3, window_bounds = array<i64: 1, 400>}, {pipeline_mode = #tpu.pipeline_mode<synchronous>, transform_indices = @transform_4, window_bounds = array<i64: 400, 512>}, {pipeline_mode = #tpu.pipeline_mode<synchronous>, transform_indices = @transform_5, window_bounds = array<i64: 1, 512>}, {transform_indices = @transform_6, window_bounds = array<i64: 1, 1, 512>}]} {
    %c0 = arith.constant 0 : index
    %c0_0 = arith.constant 0 : index
    %c0_1 = arith.constant 0 : index
    %0 = vector.load %arg1[%c0, %c0_0, %c0_1] : memref<1x400x400xf32, #tpu.memory_space<vmem>>, vector<1x400x400xf32>
    %1 = vector.shape_cast %0 : vector<1x400x400xf32> to vector<400x400xf32>
    %cst = arith.constant dense<0.000000e+00> : vector<400xf32>
    %2 = vector.multi_reduction <add>, %1, %cst [1] : vector<400x400xf32> to vector<400xf32>
    %3 = vector.shape_cast %2 : vector<400xf32> to vector<400x1xf32>
    %cst_2 = arith.constant 1.000000e+00 : f32
    %4 = vector.broadcast %cst_2 : f32 to vector<400x1xf32>
    %5 = arith.maximumf %3, %4 : vector<400x1xf32>
    %6 = math.rsqrt %5 : vector<400x1xf32>
    %7 = vector.broadcast %6 : vector<400x1xf32> to vector<400x400xf32>
    %8 = arith.mulf %7, %1 : vector<400x400xf32>
    %9 = vector.shape_cast %6 : vector<400x1xf32> to vector<400x1xf32>
    %10 = vector.broadcast %9 : vector<400x1xf32> to vector<400x128xf32>
    %cst_3 = arith.constant dense<0.000000e+00> : vector<400x128xf32>
    %11 = tpu.matmul %8, %10, %cst_3 {dimension_numbers = #tpu.dot_dimension_numbers<[1], [0], [0], [1], [0, 0, 1, 1], [], []>} : vector<400x400xf32>, vector<400x128xf32>, vector<400x128xf32> -> vector<400x128xf32>
    %12 = vector.extract_strided_slice %11 {offsets = [0, 0], sizes = [400, 1], strides = [1, 1]} : vector<400x128xf32> to vector<400x1xf32>
    %c0_4 = arith.constant 0 : index
    %c0_5 = arith.constant 0 : index
    %13 = vector.load %arg2[%c0_4, %c0_5] : memref<1x400xf32, #tpu.memory_space<vmem>>, vector<1x400xf32>
    %14 = vector.broadcast %12 : vector<400x1xf32> to vector<400x400xf32>
    %15 = vector.broadcast %13 : vector<1x400xf32> to vector<400x400xf32>
    %16 = arith.mulf %14, %15 : vector<400x400xf32>
    %c0_6 = arith.constant 0 : index
    %c0_7 = arith.constant 0 : index
    %17 = vector.load %arg3[%c0_6, %c0_7] : memref<1x400xf32, #tpu.memory_space<vmem>>, vector<1x400xf32>
    %18 = vector.broadcast %17 : vector<1x400xf32> to vector<400x400xf32>
    %19 = arith.addf %16, %18 : vector<400x400xf32>
    %cst_8 = arith.constant 0.000000e+00 : f32
    %20 = vector.broadcast %cst_8 : f32 to vector<400x400xf32>
    %21 = arith.maximumf %19, %20 : vector<400x400xf32>
    %22 = vector.broadcast %6 : vector<400x1xf32> to vector<400x400xf32>
    %23 = arith.mulf %22, %21 : vector<400x400xf32>
    %c0_9 = arith.constant 0 : index
    %c0_10 = arith.constant 0 : index
    %24 = vector.load %arg4[%c0_9, %c0_10] : memref<1x400xf32, #tpu.memory_space<vmem>>, vector<1x400xf32>
    %cst_11 = arith.constant dense<0.000000e+00> : vector<1x400xf32>
    %25 = tpu.matmul %24, %8, %cst_11 {dimension_numbers = #tpu.dot_dimension_numbers<[1], [0], [0], [1], [0, 0, 1, 1], [], []>} : vector<1x400xf32>, vector<400x400xf32>, vector<1x400xf32> -> vector<1x400xf32>
    %cst_12 = arith.constant dense<0.000000e+00> : vector<1x400xf32>
    %26 = tpu.matmul %25, %23, %cst_12 {dimension_numbers = #tpu.dot_dimension_numbers<[1], [0], [0], [1], [0, 0, 1, 1], [], []>} : vector<1x400xf32>, vector<400x400xf32>, vector<1x400xf32> -> vector<1x400xf32>
    %c0_13 = arith.constant 0 : index
    %c0_14 = arith.constant 0 : index
    %27 = vector.load %arg5[%c0_13, %c0_14] : memref<400x512xf32, #tpu.memory_space<vmem>>, vector<400x512xf32>
    %cst_15 = arith.constant dense<0.000000e+00> : vector<1x512xf32>
    %28 = tpu.matmul %26, %27, %cst_15 {dimension_numbers = #tpu.dot_dimension_numbers<[1], [0], [0], [1], [0, 0, 1, 1], [], []>} : vector<1x400xf32>, vector<400x512xf32>, vector<1x512xf32> -> vector<1x512xf32>
    %c0_16 = arith.constant 0 : index
    %c0_17 = arith.constant 0 : index
    %29 = vector.load %arg6[%c0_16, %c0_17] : memref<1x512xf32, #tpu.memory_space<vmem>>, vector<1x512xf32>
    %30 = arith.addf %28, %29 : vector<1x512xf32>
    %c0_18 = arith.constant 0 : index
    %c0_19 = arith.constant 0 : index
    %c0_20 = arith.constant 0 : index
    %31 = vector.load %arg7[%c0_18, %c0_19, %c0_20] : memref<1x1x512xf32, #tpu.memory_space<vmem>>, vector<1x1x512xf32>
    %32 = vector.shape_cast %31 : vector<1x1x512xf32> to vector<1x512xf32>
    %33 = vector.shape_cast %30 : vector<1x512xf32> to vector<1x1x512xf32>
    tpu.vector_store %arg7[%c0_18, %c0_19, %c0_20], %33 {strides = array<i32>} : memref<1x1x512xf32, #tpu.memory_space<vmem>>, vector<1x1x512xf32>,
    return
  }
  func.func @transform_0(%arg0: i32) -> (i32, i32, i32) {
    %c0_i32 = arith.constant 0 : i32
    %c0_i32_0 = arith.constant 0 : i32
    %c0_i32_1 = arith.constant 0 : i32
    return %arg0, %c0_i32, %c0_i32_0 : i32, i32, i32
  }
  func.func @transform_1(%arg0: i32) -> (i32, i32) {
    %c0_i32 = arith.constant 0 : i32
    %c0_i32_0 = arith.constant 0 : i32
    %c0_i32_1 = arith.constant 0 : i32
    return %c0_i32, %c0_i32_0 : i32, i32
  }
  func.func @transform_2(%arg0: i32) -> (i32, i32) {
    %c0_i32 = arith.constant 0 : i32
    %c0_i32_0 = arith.constant 0 : i32
    %c0_i32_1 = arith.constant 0 : i32
    return %c0_i32, %c0_i32_0 : i32, i32
  }
  func.func @transform_3(%arg0: i32) -> (i32, i32) {
    %c0_i32 = arith.constant 0 : i32
    %c0_i32_0 = arith.constant 0 : i32
    %c0_i32_1 = arith.constant 0 : i32
    return %c0_i32, %c0_i32_0 : i32, i32
  }
  func.func @transform_4(%arg0: i32) -> (i32, i32) {
    %c0_i32 = arith.constant 0 : i32
    %c0_i32_0 = arith.constant 0 : i32
    %c0_i32_1 = arith.constant 0 : i32
    return %c0_i32, %c0_i32_0 : i32, i32
  }
  func.func @transform_5(%arg0: i32) -> (i32, i32) {
    %c0_i32 = arith.constant 0 : i32
    %c0_i32_0 = arith.constant 0 : i32
    %c0_i32_1 = arith.constant 0 : i32
    return %c0_i32, %c0_i32_0 : i32, i32
  }
  func.func @transform_6(%arg0: i32) -> (i32, i32, i32) {
    %c0_i32 = arith.constant 0 : i32
    %c0_i32_0 = arith.constant 0 : i32
    %c0_i32_1 = arith.constant 0 : i32
    return %arg0, %c0_i32, %c0_i32_0 : i32, i32, i32
  }
}

</mosaic_0001>

<llo_original>
// kernel: tpu_custom_call.1
$region0: #{tpu_custom_call.1}
  #allocation0 [shape = 'u32[]', space=smem, size = 0x4, offset = 0x4, fixed_abs, tag = 'smem constant byte address 0x4 - core index']
  #allocation1 [shape = 'u32[144,128]{1,0:T(1,128)}', space=vmem, size = 0x12000, scoped, tag = 'internal scratch']
  %s0 = inlined_call_operand.hbm [shape: f32[6,400,400], index: 0, kind: input, shape index: {}]
  %s1 = inlined_call_operand.hbm [shape: f32[1,400], index: 1, kind: input, shape index: {}]
  %s2 = inlined_call_operand.hbm [shape: f32[1,400], index: 2, kind: input, shape index: {}]
  %s3 = inlined_call_operand.hbm [shape: f32[1,400], index: 3, kind: input, shape index: {}]
  %s4 = inlined_call_operand.hbm [shape: f32[400,512], index: 4, kind: input, shape index: {}]
  %s5 = inlined_call_operand.hbm [shape: f32[1,512], index: 5, kind: input, shape index: {}]
  %s6 = inlined_call_operand.hbm [shape: f32[6,1,512], index: 6, kind: output, shape index: {}]
  %s7 = sld [smem:[#allocation0]]
  $region81: #{tpu_custom_call.1} parent=0
    _
  %s9 = ssub.s32 1, %s7
  %s10 = scalar_select 0, %s9, %s7
  $region1: #{tpu_custom_call.1} parent=0
    #allocation2 [shape = 'u8[1638400]{0}', space=vmem, size = 0x190000, scoped, tag = 'input window, operand 0']
    #allocation3 [shape = 's32[2]{0}', space=sflag, size = 0x8, scoped, tag = 'scoped memory for tpu_custom_call.1']
    #allocation4 [shape = 's32[2]{0}', space=sflag, size = 0x8, scoped, tag = 'scoped memory for tpu_custom_call.1']
    #allocation5 [shape = 'u8[2048]{0}', space=vmem, size = 0x800, scoped, tag = 'input window, operand 1, single buffered']
    #allocation6 [shape = 's32[1]{0}', space=sflag, size = 0x4, scoped, tag = 'scoped memory for tpu_custom_call.1']
    #allocation7 [shape = 'u8[2048]{0}', space=vmem, size = 0x800, scoped, tag = 'input window, operand 2, single buffered']
    #allocation8 [shape = 'u8[2048]{0}', space=vmem, size = 0x800, scoped, tag = 'input window, operand 3, single buffered']
    #allocation9 [shape = 's32[1]{0}', space=sflag, size = 0x4, scoped, tag = 'scoped memory for tpu_custom_call.1']
    #allocation10 [shape = 'u8[819200]{0}', space=vmem, size = 0xc8000, scoped, tag = 'input window, operand 4, single buffered']
    #allocation11 [shape = 'u8[2048]{0}', space=vmem, size = 0x800, scoped, tag = 'input window, operand 5, single buffered']
    #allocation12 [shape = 's32[1]{0}', space=sflag, size = 0x4, scoped, tag = 'scoped memory for tpu_custom_call.1']
    #allocation13 [shape = 'u8[4096]{0}', space=vmem, size = 0x1000, scoped, tag = 'output window, operand 0']
    %11 = vsyncpa [#allocation3], 0
    %s12 = scalar_lea.sflag [#allocation3], 1
    %13 = vsyncpa %s12, 0
    %14 = vsyncpa [#allocation6], 0
    %15 = vsyncpa [#allocation9], 0
    %16 = vsyncpa [#allocation12], 0
    %17 = vsyncpa [#allocation4], 0
    %s18 = scalar_lea.sflag [#allocation4], 1
    %19 = vsyncpa %s18, 0
    loop: start=0, step=1, limit=8
    $region2: #{tpu_custom_call.1} parent=1 // loop_pre_header
      _
    $region3: #{tpu_custom_call.1} parent=1 // loop_header
      %s21 = sphi 0, %s25
      %p22 = scmp.ge.s32.totalorder %s21, 8
      %s31 = sphi 0, %s33
      %s34 = sphi 0, %s31
      %s35 = sphi 0, %s34
      %s51 = sphi 0, %s35
      %s55 = sphi 0, %s55
      %s57 = sphi 0, %s55
      %s58 = sphi 0, %s57
      %s72 = sphi 0, %s58
      %s76 = sphi 0, %s76
      %s78 = sphi 0, %s76
      %s79 = sphi 0, %s78
      %s93 = sphi 0, %s79
      %s97 = sphi 0, %s97
      %s99 = sphi 0, %s97
      %s100 = sphi 0, %s99
      %s114 = sphi 0, %s100
      %s118 = sphi 0, %s118
      %s120 = sphi 0, %s118
      %s121 = sphi 0, %s120
      %s135 = sphi 0, %s121
      %s139 = sphi 0, %s139
      %s141 = sphi 0, %s139
      %s142 = sphi 0, %s141
      %s156 = sphi 0, %s142
      %s162 = sphi 0, %s164
      %s165 = sphi 0, %s162
      %s166 = sphi 0, %s165
      %s182 = sphi 0, %s166
    $region4: #{tpu_custom_call.1} parent=1 // loop_header_branch
      %24 = sbr.rel (%p22) target = $region8
    $region5: #{tpu_custom_call.1} parent=1 // loop_body
      %s26 = ssub.s32 %s21, 1
      %s27 = ssub.s32 %s21, 2
      %s28 = sadd.s32 %s21, 1
      %s29 = ssub.s32 %s21, %s28
      %p30 = scmp.eq.s32.totalorder %s29, 0
      %s32 = sadd.s32 %s31, 1
      %s33 = scalar_select %p30, %s31, %s32
      %p36 = pneg %p30
      %p37 = scmp.eq.s32.totalorder %s21, 5
      %p38 = por %p36, %p37
      %p39 = scmp.ne.s32.totalorder %s31, %s34
      %p40 = scmp.eq.s32.totalorder %s21, 0
      %p41 = por %p39, %p40
      %p42 = scmp.ne.s32.totalorder %s31, %s34
      %p43 = scmp.eq.s32.totalorder %s26, 5
      %p44 = por %p42, %p43
      %p45 = scmp.ne.s32.totalorder %s34, %s35
      %p46 = scmp.eq.s32.totalorder %s26, 0
      %p47 = por %p45, %p46
      %p48 = scmp.ne.s32.totalorder %s34, %s35
      %p49 = scmp.eq.s32.totalorder %s27, 5
      %p50 = por %p48, %p49
      %p52 = scmp.ne.s32.totalorder %s35, %s51
      %p53 = scmp.eq.s32.totalorder %s27, 0
      %p54 = por %p52, %p53
      %s56 = sadd.s32 %s55, 1
      %p59 = scmp.eq.s32.totalorder %s21, 5
      %p60 = scmp.ne.s32.totalorder %s55, %s57
      %p61 = scmp.eq.s32.totalorder %s21, 0
      %p62 = por %p60, %p61
      %p63 = scmp.ne.s32.totalorder %s55, %s57
      %p64 = scmp.eq.s32.totalorder %s26, 5
      %p65 = por %p63, %p64
      %p66 = scmp.ne.s32.totalorder %s57, %s58
      %p67 = scmp.eq.s32.totalorder %s26, 0
      %p68 = por %p66, %p67
      %p69 = scmp.ne.s32.totalorder %s57, %s58
      %p70 = scmp.eq.s32.totalorder %s27, 5
      %p71 = por %p69, %p70
      %p73 = scmp.ne.s32.totalorder %s58, %s72
      %p74 = scmp.eq.s32.totalorder %s27, 0
      %p75 = por %p73, %p74
      %s77 = sadd.s32 %s76, 1
      %p80 = scmp.eq.s32.totalorder %s21, 5
      %p81 = scmp.ne.s32.totalorder %s76, %s78
      %p82 = scmp.eq.s32.totalorder %s21, 0
      %p83 = por %p81, %p82
      %p84 = scmp.ne.s32.totalorder %s76, %s78
      %p85 = scmp.eq.s32.totalorder %s26, 5
      %p86 = por %p84, %p85
      %p87 = scmp.ne.s32.totalorder %s78, %s79
      %p88 = scmp.eq.s32.totalorder %s26, 0
      %p89 = por %p87, %p88
      %p90 = scmp.ne.s32.totalorder %s78, %s79
      %p91 = scmp.eq.s32.totalorder %s27, 5
      %p92 = por %p90, %p91
      %p94 = scmp.ne.s32.totalorder %s79, %s93
      %p95 = scmp.eq.s32.totalorder %s27, 0
      %p96 = por %p94, %p95
      %s98 = sadd.s32 %s97, 1
      %p101 = scmp.eq.s32.totalorder %s21, 5
      %p102 = scmp.ne.s32.totalorder %s97, %s99
      %p103 = scmp.eq.s32.totalorder %s21, 0
      %p104 = por %p102, %p103
      %p105 = scmp.ne.s32.totalorder %s97, %s99
      %p106 = scmp.eq.s32.totalorder %s26, 5
      %p107 = por %p105, %p106
      %p108 = scmp.ne.s32.totalorder %s99, %s100
      %p109 = scmp.eq.s32.totalorder %s26, 0
      %p110 = por %p108, %p109
      %p111 = scmp.ne.s32.totalorder %s99, %s100
      %p112 = scmp.eq.s32.totalorder %s27, 5
      %p113 = por %p111, %p112
      %p115 = scmp.ne.s32.totalorder %s100, %s114
      %p116 = scmp.eq.s32.totalorder %s27, 0
      %p117 = por %p115, %p116
      %s119 = sadd.s32 %s118, 1
      %p122 = scmp.eq.s32.totalorder %s21, 5
      %p123 = scmp.ne.s32.totalorder %s118, %s120
      %p124 = scmp.eq.s32.totalorder %s21, 0
      %p125 = por %p123, %p124
      %p126 = scmp.ne.s32.totalorder %s118, %s120
      %p127 = scmp.eq.s32.totalorder %s26, 5
      %p128 = por %p126, %p127
      %p129 = scmp.ne.s32.totalorder %s120, %s121
      %p130 = scmp.eq.s32.totalorder %s26, 0
      %p131 = por %p129, %p130
      %p132 = scmp.ne.s32.totalorder %s120, %s121
      %p133 = scmp.eq.s32.totalorder %s27, 5
      %p134 = por %p132, %p133
      %p136 = scmp.ne.s32.totalorder %s121, %s135
      %p137 = scmp.eq.s32.totalorder %s27, 0
      %p138 = por %p136, %p137
      %s140 = sadd.s32 %s139, 1
      %p143 = scmp.eq.s32.totalorder %s21, 5
      %p144 = scmp.ne.s32.totalorder %s139, %s141
      %p145 = scmp.eq.s32.totalorder %s21, 0
      %p146 = por %p144, %p145
      %p147 = scmp.ne.s32.totalorder %s139, %s141
      %p148 = scmp.eq.s32.totalorder %s26, 5
      %p149 = por %p147, %p148
      %p150 = scmp.ne.s32.totalorder %s141, %s142
      %p151 = scmp.eq.s32.totalorder %s26, 0
      %p152 = por %p150, %p151
      %p153 = scmp.ne.s32.totalorder %s141, %s142
      %p154 = scmp.eq.s32.totalorder %s27, 5
      %p155 = por %p153, %p154
      %p157 = scmp.ne.s32.totalorder %s142, %s156
      %p158 = scmp.eq.s32.totalorder %s27, 0
      %p159 = por %p157, %p158
      %s160 = ssub.s32 %s21, %s28
      %p161 = scmp.eq.s32.totalorder %s160, 0
      %s163 = sadd.s32 %s162, 1
      %s164 = scalar_select %p161, %s162, %s163
      %p167 = pneg %p161
      %p168 = scmp.eq.s32.totalorder %s21, 5
      %p169 = por %p167, %p168
      %p170 = scmp.ne.s32.totalorder %s162, %s165
      %p171 = scmp.eq.s32.totalorder %s21, 0
      %p172 = por %p170, %p171
      %p173 = scmp.ne.s32.totalorder %s162, %s165
      %p174 = scmp.eq.s32.totalorder %s26, 5
      %p175 = por %p173, %p174
      %p176 = scmp.ne.s32.totalorder %s165, %s166
      %p177 = scmp.eq.s32.totalorder %s26, 0
      %p178 = por %p176, %p177
      %p179 = scmp.ne.s32.totalorder %s165, %s166
      %p180 = scmp.eq.s32.totalorder %s27, 5
      %p181 = por %p179, %p180
      %p183 = scmp.ne.s32.totalorder %s166, %s182
      %p184 = scmp.eq.s32.totalorder %s27, 0
      %p185 = por %p183, %p184
      %p186 = scmp.le.s32.totalorder 1, %s21
      %p187 = scmp.lt.s32.totalorder %s21, 7
      %p188 = pnand %p186, %p187
      %p189 = pneg %p188
      // Predicated region
      $region9: #{tpu_custom_call.1} parent=5 // pred_check
        _
      $region10: #{tpu_custom_call.1} parent=5 // pred_check_branch
        %191 = sbr.rel (%p188) target = $region12
      $region11: #{tpu_custom_call.1} parent=5 // pred_region
        %s192 = ssub.s32 %s21, 1
        // Predicated region
        $region13: #{tpu_custom_call.1} parent=11 // pred_check
          %p193 = pneg %p68
        $region14: #{tpu_custom_call.1} parent=11 // pred_check_branch
          %195 = sbr.rel (%p193) target = $region16
        $region15: #{tpu_custom_call.1} parent=11 // pred_region
          %s197 = ssub.s32 64, 64
          %198 = vsyncadd [#allocation6], %s197
          %s200 = sshll.u32 [#allocation5], 4
          %s201 = int_to_ptr.vmem [resolvable:$true] %s200
          %203 = dma.hbm_to_vmem [thread:$0]  %s1, 64, %s201, [#allocation6]
        $region16: #{tpu_custom_call.1} parent=11 // pred_fallthru
          _
        // Predicated region
        $region17: #{tpu_custom_call.1} parent=11 // pred_check
          %p204 = pneg %p89
        $region18: #{tpu_custom_call.1} parent=11 // pred_check_branch
          %206 = sbr.rel (%p204) target = $region20
        $region19: #{tpu_custom_call.1} parent=11 // pred_region
          %s208 = ssub.s32 64, 64
          %209 = vsyncadd [#allocation6], %s208
          %s211 = sshll.u32 [#allocation7], 4
          %s212 = int_to_ptr.vmem [resolvable:$true] %s211
          %214 = dma.hbm_to_vmem [thread:$0]  %s2, 64, %s212, [#allocation6]
        $region20: #{tpu_custom_call.1} parent=11 // pred_fallthru
          _
        // Predicated region
        $region21: #{tpu_custom_call.1} parent=11 // pred_check
          %p215 = pneg %p110
        $region22: #{tpu_custom_call.1} parent=11 // pred_check_branch
          %217 = sbr.rel (%p215) target = $region24
        $region23: #{tpu_custom_call.1} parent=11 // pred_region
          %s219 = ssub.s32 64, 64
          %220 = vsyncadd [#allocation9], %s219
          %s222 = sshll.u32 [#allocation8], 4
          %s223 = int_to_ptr.vmem [resolvable:$true] %s222
          %225 = dma.hbm_to_vmem [thread:$0]  %s3, 64, %s223, [#allocation9]
        $region24: #{tpu_custom_call.1} parent=11 // pred_fallthru
          _
        // Predicated region
        $region25: #{tpu_custom_call.1} parent=11 // pred_check
          %p226 = pneg %p131
        $region26: #{tpu_custom_call.1} parent=11 // pred_check_branch
          %228 = sbr.rel (%p226) target = $region28
        $region27: #{tpu_custom_call.1} parent=11 // pred_region
          %s230 = ssub.s32 25600, 25600
          %231 = vsyncadd [#allocation9], %s230
          %s232 = sshll.u32 [#allocation10], 4
          %s233 = int_to_ptr.vmem [resolvable:$true] %s232
          %238 = dma.hbm_to_vmem [thread:$0]  %s4, 25600, %s233, [#allocation9], 512, 512, 32
        $region28: #{tpu_custom_call.1} parent=11 // pred_fallthru
          _
        // Predicated region
        $region29: #{tpu_custom_call.1} parent=11 // pred_check
          %p239 = pneg %p152
        $region30: #{tpu_custom_call.1} parent=11 // pred_check_branch
          %241 = sbr.rel (%p239) target = $region32
        $region31: #{tpu_custom_call.1} parent=11 // pred_region
          %s243 = ssub.s32 64, 64
          %244 = vsyncadd [#allocation12], %s243
          %s246 = sshll.u32 [#allocation11], 4
          %s247 = int_to_ptr.vmem [resolvable:$true] %s246
          %249 = dma.hbm_to_vmem [thread:$0]  %s5, 64, %s247, [#allocation12]
        $region32: #{tpu_custom_call.1} parent=11 // pred_fallthru
          _
      $region12: #{tpu_custom_call.1} parent=5 // pred_fallthru
        _
      %p250 = scmp.lt.s32.totalorder %s21, 6
      // Predicated region
      $region33: #{tpu_custom_call.1} parent=5 // pred_check
        %p251 = pneg %p250
      $region34: #{tpu_custom_call.1} parent=5 // pred_check_branch
        %253 = sbr.rel (%p251) target = $region36
      $region35: #{tpu_custom_call.1} parent=5 // pred_region
        // Predicated region
        $region37: #{tpu_custom_call.1} parent=35 // pred_check
          %p254 = pneg %p41
        $region38: #{tpu_custom_call.1} parent=35 // pred_check_branch
          %256 = sbr.rel (%p254) target = $region40
        $region39: #{tpu_custom_call.1} parent=35 // pred_region
          %s257 = sand.u32 %s31, 1
          %s258 = scalar_lea.sflag [#allocation3], %s257
          %s259 = sand.u32 %s31, 1
          %s260 = smul.addr %s259, 1600
          %s261 = scalar_lea.vmem [#allocation2], %s260
          %s263 = ssub.s32 25600, 25600
          %264 = vsyncadd %s258, %s263
          %s265 = smul.addr %s21, 200
          %s266 = smul.addr %s265, 128
          %s267 = scalar_lea.hbm %s0, %s266
          %s268 = sshll.u32 %s261, 4
          %s269 = int_to_ptr.vmem [resolvable:$true] %s268
          %274 = dma.hbm_to_vmem [thread:$0]  %s267, 25600, %s269, %s258, 512, 512, 32
        $region40: #{tpu_custom_call.1} parent=35 // pred_fallthru
          _
      $region36: #{tpu_custom_call.1} parent=5 // pred_fallthru
        _
      %p275 = scmp.le.s32.totalorder 1, %s21
      %p276 = scmp.lt.s32.totalorder %s21, 7
      %p277 = pnand %p275, %p276
      %p278 = pneg %p277
      // Predicated region
      $region41: #{tpu_custom_call.1} parent=5 // pred_check
        _
      $region42: #{tpu_custom_call.1} parent=5 // pred_check_branch
        %280 = sbr.rel (%p277) target = $region44
      $region43: #{tpu_custom_call.1} parent=5 // pred_region
        %s281 = ssub.s32 %s21, 1
        %s282 = sand.u32 %s34, 1
        %s283 = scalar_lea.sflag [#allocation3], %s282
        %s284 = sand.u32 %s34, 1
        %s285 = smul.addr %s284, 1600
        %s286 = scalar_lea.vmem [#allocation2], %s285
        // Predicated region
        $region45: #{tpu_custom_call.1} parent=43 // pred_check
          %p287 = pneg %p47
        $region46: #{tpu_custom_call.1} parent=43 // pred_check_branch
          %289 = sbr.rel (%p287) target = $region48
        $region47: #{tpu_custom_call.1} parent=43 // pred_region
          %290 = dma.done %s283, 25600
        $region48: #{tpu_custom_call.1} parent=43 // pred_fallthru
          _
        // Predicated region
        $region49: #{tpu_custom_call.1} parent=43 // pred_check
          %p291 = pneg %p68
        $region50: #{tpu_custom_call.1} parent=43 // pred_check_branch
          %293 = sbr.rel (%p291) target = $region52
        $region51: #{tpu_custom_call.1} parent=43 // pred_region
          %294 = dma.done [#allocation6], 64
        $region52: #{tpu_custom_call.1} parent=43 // pred_fallthru
          _
        // Predicated region
        $region53: #{tpu_custom_call.1} parent=43 // pred_check
          %p295 = pneg %p89
        $region54: #{tpu_custom_call.1} parent=43 // pred_check_branch
          %297 = sbr.rel (%p295) target = $region56
        $region55: #{tpu_custom_call.1} parent=43 // pred_region
          %298 = dma.done [#allocation6], 64
        $region56: #{tpu_custom_call.1} parent=43 // pred_fallthru
          _
        // Predicated region
        $region57: #{tpu_custom_call.1} parent=43 // pred_check
          %p299 = pneg %p110
        $region58: #{tpu_custom_call.1} parent=43 // pred_check_branch
          %301 = sbr.rel (%p299) target = $region60
        $region59: #{tpu_custom_call.1} parent=43 // pred_region
          %302 = dma.done [#allocation9], 64
        $region60: #{tpu_custom_call.1} parent=43 // pred_fallthru
          _
        // Predicated region
        $region61: #{tpu_custom_call.1} parent=43 // pred_check
          %p303 = pneg %p131
        $region62: #{tpu_custom_call.1} parent=43 // pred_check_branch
          %305 = sbr.rel (%p303) target = $region64
        $region63: #{tpu_custom_call.1} parent=43 // pred_region
          %306 = dma.done [#allocation9], 25600
        $region64: #{tpu_custom_call.1} parent=43 // pred_fallthru
          _
        // Predicated region
        $region65: #{tpu_custom_call.1} parent=43 // pred_check
          %p307 = pneg %p152
        $region66: #{tpu_custom_call.1} parent=43 // pred_check_branch
          %309 = sbr.rel (%p307) target = $region68
        $region67: #{tpu_custom_call.1} parent=43 // pred_region
          %310 = dma.done [#allocation12], 64
        $region68: #{tpu_custom_call.1} parent=43 // pred_fallthru
          _
        %s311 = sand.u32 %s34, 1
        %s312 = scalar_lea.sflag [#allocation3], %s311
        %s313 = sand.u32 %s34, 1
        %s314 = smul.addr %s313, 1600
        %s315 = scalar_lea.vmem [#allocation2], %s314
        %p316 = pneg %p47
        %p317 = pneg %p44
        %p318 = pneg %p68
        %p319 = pneg %p65
        %p320 = pneg %p89
        %p321 = pneg %p86
        %p322 = pneg %p110
        %p323 = pneg %p107
        %p324 = pneg %p131
        %p325 = pneg %p128
        %p326 = pneg %p152
        %p327 = pneg %p149
        %p328 = pneg %p178
        %p329 = pneg %p175
        %s330 = sand.u32 %s165, 1
        %s331 = scalar_lea.sflag [#allocation4], %s330
        %s332 = sand.u32 %s165, 1
        %s333 = smul.addr %s332, 4
        %s334 = scalar_lea.vmem [#allocation13], %s333
        %v335 = vld [vmem:[%s286] sm:$0xff]
        %v336 = vld [vmem:[%s286 + $0x8] sm:$0xff]
        %v337 = vld [vmem:[%s286 + $0x10] sm:$0xff]
        %v338 = vld [vmem:[%s286 + $0x18] sm:$0xff]
        %v339 = vld [vmem:[%s286 + $0x20] sm:$0xff]
        %v340 = vld [vmem:[%s286 + $0x28] sm:$0xff]
        %v341 = vld [vmem:[%s286 + $0x30] sm:$0xff]
        %v342 = vld [vmem:[%s286 + $0x38] sm:$0xff]
        %v343 = vld [vmem:[%s286 + $0x40] sm:$0xff]
        %v344 = vld [vmem:[%s286 + $0x48] sm:$0xff]
        %v345 = vld [vmem:[%s286 + $0x50] sm:$0xff]
        %v346 = vld [vmem:[%s286 + $0x58] sm:$0xff]
        %v347 = vld [vmem:[%s286 + $0x60] sm:$0xff]
        %v348 = vld [vmem:[%s286 + $0x68] sm:$0xff]
        %v349 = vld [vmem:[%s286 + $0x70] sm:$0xff]
        %v350 = vld [vmem:[%s286 + $0x78] sm:$0xff]
        %v351 = vld [vmem:[%s286 + $0x80] sm:$0xff]
        %v352 = vld [vmem:[%s286 + $0x88] sm:$0xff]
        %v353 = vld [vmem:[%s286 + $0x90] sm:$0xff]
        %v354 = vld [vmem:[%s286 + $0x98] sm:$0xff]
        %v355 = vld [vmem:[%s286 + $0xa0] sm:$0xff]
        %v356 = vld [vmem:[%s286 + $0xa8] sm:$0xff]
        %v357 = vld [vmem:[%s286 + $0xb0] sm:$0xff]
        %v358 = vld [vmem:[%s286 + $0xb8] sm:$0xff]
        %v359 = vld [vmem:[%s286 + $0xc0] sm:$0xff]
        %v360 = vld [vmem:[%s286 + $0xc8] sm:$0xff]
        %v361 = vld [vmem:[%s286 + $0xd0] sm:$0xff]
        %v362 = vld [vmem:[%s286 + $0xd8] sm:$0xff]
        %v363 = vld [vmem:[%s286 + $0xe0] sm:$0xff]
        %v364 = vld [vmem:[%s286 + $0xe8] sm:$0xff]
        %v365 = vld [vmem:[%s286 + $0xf0] sm:$0xff]
        %v366 = vld [vmem:[%s286 + $0xf8] sm:$0xff]
        %v367 = vld [vmem:[%s286 + $0x100] sm:$0xff]
        %v368 = vld [vmem:[%s286 + $0x108] sm:$0xff]
        %v369 = vld [vmem:[%s286 + $0x110] sm:$0xff]
        %v370 = vld [vmem:[%s286 + $0x118] sm:$0xff]
        %v371 = vld [vmem:[%s286 + $0x120] sm:$0xff]
        %v372 = vld [vmem:[%s286 + $0x128] sm:$0xff]
        %v373 = vld [vmem:[%s286 + $0x130] sm:$0xff]
        %v374 = vld [vmem:[%s286 + $0x138] sm:$0xff]
        %v375 = vld [vmem:[%s286 + $0x140] sm:$0xff]
        %v376 = vld [vmem:[%s286 + $0x148] sm:$0xff]
        %v377 = vld [vmem:[%s286 + $0x150] sm:$0xff]
        %v378 = vld [vmem:[%s286 + $0x158] sm:$0xff]
        %v379 = vld [vmem:[%s286 + $0x160] sm:$0xff]
        %v380 = vld [vmem:[%s286 + $0x168] sm:$0xff]
        %v381 = vld [vmem:[%s286 + $0x170] sm:$0xff]
        %v382 = vld [vmem:[%s286 + $0x178] sm:$0xff]
        %v383 = vld [vmem:[%s286 + $0x180] sm:$0xff]
        %v384 = vld [vmem:[%s286 + $0x188] sm:$0xff]
        %v385 = vld [vmem:[%s286 + $0x190] sm:$0xff]
        %v386 = vld [vmem:[%s286 + $0x198] sm:$0xff]
        %v387 = vld [vmem:[%s286 + $0x1a0] sm:$0xff]
        %v388 = vld [vmem:[%s286 + $0x1a8] sm:$0xff]
        %v389 = vld [vmem:[%s286 + $0x1b0] sm:$0xff]
        %v390 = vld [vmem:[%s286 + $0x1b8] sm:$0xff]
        %v391 = vld [vmem:[%s286 + $0x1c0] sm:$0xff]
        %v392 = vld [vmem:[%s286 + $0x1c8] sm:$0xff]
        %v393 = vld [vmem:[%s286 + $0x1d0] sm:$0xff]
        %v394 = vld [vmem:[%s286 + $0x1d8] sm:$0xff]
        %v395 = vld [vmem:[%s286 + $0x1e0] sm:$0xff]
        %v396 = vld [vmem:[%s286 + $0x1e8] sm:$0xff]
        %v397 = vld [vmem:[%s286 + $0x1f0] sm:$0xff]
        %v398 = vld [vmem:[%s286 + $0x1f8] sm:$0xff]
        %v399 = vld [vmem:[%s286 + $0x200] sm:$0xff]
        %v400 = vld [vmem:[%s286 + $0x208] sm:$0xff]
        %v401 = vld [vmem:[%s286 + $0x210] sm:$0xff]
        %v402 = vld [vmem:[%s286 + $0x218] sm:$0xff]
        %v403 = vld [vmem:[%s286 + $0x220] sm:$0xff]
        %v404 = vld [vmem:[%s286 + $0x228] sm:$0xff]
        %v405 = vld [vmem:[%s286 + $0x230] sm:$0xff]
        %v406 = vld [vmem:[%s286 + $0x238] sm:$0xff]
        %v407 = vld [vmem:[%s286 + $0x240] sm:$0xff]
        %v408 = vld [vmem:[%s286 + $0x248] sm:$0xff]
        %v409 = vld [vmem:[%s286 + $0x250] sm:$0xff]
        %v410 = vld [vmem:[%s286 + $0x258] sm:$0xff]
        %v411 = vld [vmem:[%s286 + $0x260] sm:$0xff]
        %v412 = vld [vmem:[%s286 + $0x268] sm:$0xff]
        %v413 = vld [vmem:[%s286 + $0x270] sm:$0xff]
        %v414 = vld [vmem:[%s286 + $0x278] sm:$0xff]
        %v415 = vld [vmem:[%s286 + $0x280] sm:$0xff]
        %v416 = vld [vmem:[%s286 + $0x288] sm:$0xff]
        %v417 = vld [vmem:[%s286 + $0x290] sm:$0xff]
        %v418 = vld [vmem:[%s286 + $0x298] sm:$0xff]
        %v419 = vld [vmem:[%s286 + $0x2a0] sm:$0xff]
        %v420 = vld [vmem:[%s286 + $0x2a8] sm:$0xff]
        %v421 = vld [vmem:[%s286 + $0x2b0] sm:$0xff]
        %v422 = vld [vmem:[%s286 + $0x2b8] sm:$0xff]
        %v423 = vld [vmem:[%s286 + $0x2c0] sm:$0xff]
        %v424 = vld [vmem:[%s286 + $0x2c8] sm:$0xff]
        %v425 = vld [vmem:[%s286 + $0x2d0] sm:$0xff]
        %v426 = vld [vmem:[%s286 + $0x2d8] sm:$0xff]
        %v427 = vld [vmem:[%s286 + $0x2e0] sm:$0xff]
        %v428 = vld [vmem:[%s286 + $0x2e8] sm:$0xff]
        %v429 = vld [vmem:[%s286 + $0x2f0] sm:$0xff]
        %v430 = vld [vmem:[%s286 + $0x2f8] sm:$0xff]
        %v431 = vld [vmem:[%s286 + $0x300] sm:$0xff]
        %v432 = vld [vmem:[%s286 + $0x308] sm:$0xff]
        %v433 = vld [vmem:[%s286 + $0x310] sm:$0xff]
        %v434 = vld [vmem:[%s286 + $0x318] sm:$0xff]
        %v435 = vld [vmem:[%s286 + $0x320] sm:$0xff]
        %v436 = vld [vmem:[%s286 + $0x328] sm:$0xff]
        %v437 = vld [vmem:[%s286 + $0x330] sm:$0xff]
        %v438 = vld [vmem:[%s286 + $0x338] sm:$0xff]
        %v439 = vld [vmem:[%s286 + $0x340] sm:$0xff]
        %v440 = vld [vmem:[%s286 + $0x348] sm:$0xff]
        %v441 = vld [vmem:[%s286 + $0x350] sm:$0xff]
        %v442 = vld [vmem:[%s286 + $0x358] sm:$0xff]
        %v443 = vld [vmem:[%s286 + $0x360] sm:$0xff]
        %v444 = vld [vmem:[%s286 + $0x368] sm:$0xff]
        %v445 = vld [vmem:[%s286 + $0x370] sm:$0xff]
        %v446 = vld [vmem:[%s286 + $0x378] sm:$0xff]
        %v447 = vld [vmem:[%s286 + $0x380] sm:$0xff]
        %v448 = vld [vmem:[%s286 + $0x388] sm:$0xff]
        %v449 = vld [vmem:[%s286 + $0x390] sm:$0xff]
        %v450 = vld [vmem:[%s286 + $0x398] sm:$0xff]
        %v451 = vld [vmem:[%s286 + $0x3a0] sm:$0xff]
        %v452 = vld [vmem:[%s286 + $0x3a8] sm:$0xff]
        %v453 = vld [vmem:[%s286 + $0x3b0] sm:$0xff]
        %v454 = vld [vmem:[%s286 + $0x3b8] sm:$0xff]
        %v455 = vld [vmem:[%s286 + $0x3c0] sm:$0xff]
        %v456 = vld [vmem:[%s286 + $0x3c8] sm:$0xff]
        %v457 = vld [vmem:[%s286 + $0x3d0] sm:$0xff]
        %v458 = vld [vmem:[%s286 + $0x3d8] sm:$0xff]
        %v459 = vld [vmem:[%s286 + $0x3e0] sm:$0xff]
        %v460 = vld [vmem:[%s286 + $0x3e8] sm:$0xff]
        %v461 = vld [vmem:[%s286 + $0x3f0] sm:$0xff]
        %v462 = vld [vmem:[%s286 + $0x3f8] sm:$0xff]
        %v463 = vld [vmem:[%s286 + $0x400] sm:$0xff]
        %v464 = vld [vmem:[%s286 + $0x408] sm:$0xff]
        %v465 = vld [vmem:[%s286 + $0x410] sm:$0xff]
        %v466 = vld [vmem:[%s286 + $0x418] sm:$0xff]
        %v467 = vld [vmem:[%s286 + $0x420] sm:$0xff]
        %v468 = vld [vmem:[%s286 + $0x428] sm:$0xff]
        %v469 = vld [vmem:[%s286 + $0x430] sm:$0xff]
        %v470 = vld [vmem:[%s286 + $0x438] sm:$0xff]
        %v471 = vld [vmem:[%s286 + $0x440] sm:$0xff]
        %v472 = vld [vmem:[%s286 + $0x448] sm:$0xff]
        %v473 = vld [vmem:[%s286 + $0x450] sm:$0xff]
        %v474 = vld [vmem:[%s286 + $0x458] sm:$0xff]
        %v475 = vld [vmem:[%s286 + $0x460] sm:$0xff]
        %v476 = vld [vmem:[%s286 + $0x468] sm:$0xff]
        %v477 = vld [vmem:[%s286 + $0x470] sm:$0xff]
        %v478 = vld [vmem:[%s286 + $0x478] sm:$0xff]
        %v479 = vld [vmem:[%s286 + $0x480] sm:$0xff]
        %v480 = vld [vmem:[%s286 + $0x488] sm:$0xff]
        %v481 = vld [vmem:[%s286 + $0x490] sm:$0xff]
        %v482 = vld [vmem:[%s286 + $0x498] sm:$0xff]
        %v483 = vld [vmem:[%s286 + $0x4a0] sm:$0xff]
        %v484 = vld [vmem:[%s286 + $0x4a8] sm:$0xff]
        %v485 = vld [vmem:[%s286 + $0x4b0] sm:$0xff]
        %v486 = vld [vmem:[%s286 + $0x4b8] sm:$0xff]
        %v487 = vld [vmem:[%s286 + $0x4c0] sm:$0xff]
        %v488 = vld [vmem:[%s286 + $0x4c8] sm:$0xff]
        %v489 = vld [vmem:[%s286 + $0x4d0] sm:$0xff]
        %v490 = vld [vmem:[%s286 + $0x4d8] sm:$0xff]
        %v491 = vld [vmem:[%s286 + $0x4e0] sm:$0xff]
        %v492 = vld [vmem:[%s286 + $0x4e8] sm:$0xff]
        %v493 = vld [vmem:[%s286 + $0x4f0] sm:$0xff]
        %v494 = vld [vmem:[%s286 + $0x4f8] sm:$0xff]
        %v495 = vld [vmem:[%s286 + $0x500] sm:$0xff]
        %v496 = vld [vmem:[%s286 + $0x508] sm:$0xff]
        %v497 = vld [vmem:[%s286 + $0x510] sm:$0xff]
        %v498 = vld [vmem:[%s286 + $0x518] sm:$0xff]
        %v499 = vld [vmem:[%s286 + $0x520] sm:$0xff]
        %v500 = vld [vmem:[%s286 + $0x528] sm:$0xff]
        %v501 = vld [vmem:[%s286 + $0x530] sm:$0xff]
        %v502 = vld [vmem:[%s286 + $0x538] sm:$0xff]
        %v503 = vld [vmem:[%s286 + $0x540] sm:$0xff]
        %v504 = vld [vmem:[%s286 + $0x548] sm:$0xff]
        %v505 = vld [vmem:[%s286 + $0x550] sm:$0xff]
        %v506 = vld [vmem:[%s286 + $0x558] sm:$0xff]
        %v507 = vld [vmem:[%s286 + $0x560] sm:$0xff]
        %v508 = vld [vmem:[%s286 + $0x568] sm:$0xff]
        %v509 = vld [vmem:[%s286 + $0x570] sm:$0xff]
        %v510 = vld [vmem:[%s286 + $0x578] sm:$0xff]
        %v511 = vld [vmem:[%s286 + $0x580] sm:$0xff]
        %v512 = vld [vmem:[%s286 + $0x588] sm:$0xff]
        %v513 = vld [vmem:[%s286 + $0x590] sm:$0xff]
        %v514 = vld [vmem:[%s286 + $0x598] sm:$0xff]
        %v515 = vld [vmem:[%s286 + $0x5a0] sm:$0xff]
        %v516 = vld [vmem:[%s286 + $0x5a8] sm:$0xff]
        %v517 = vld [vmem:[%s286 + $0x5b0] sm:$0xff]
        %v518 = vld [vmem:[%s286 + $0x5b8] sm:$0xff]
        %v519 = vld [vmem:[%s286 + $0x5c0] sm:$0xff]
        %v520 = vld [vmem:[%s286 + $0x5c8] sm:$0xff]
        %v521 = vld [vmem:[%s286 + $0x5d0] sm:$0xff]
        %v522 = vld [vmem:[%s286 + $0x5d8] sm:$0xff]
        %v523 = vld [vmem:[%s286 + $0x5e0] sm:$0xff]
        %v524 = vld [vmem:[%s286 + $0x5e8] sm:$0xff]
        %v525 = vld [vmem:[%s286 + $0x5f0] sm:$0xff]
        %v526 = vld [vmem:[%s286 + $0x5f8] sm:$0xff]
        %v527 = vld [vmem:[%s286 + $0x600] sm:$0xff]
        %v528 = vld [vmem:[%s286 + $0x608] sm:$0xff]
        %v529 = vld [vmem:[%s286 + $0x610] sm:$0xff]
        %v530 = vld [vmem:[%s286 + $0x618] sm:$0xff]
        %v531 = vld [vmem:[%s286 + $0x620] sm:$0xff]
        %v532 = vld [vmem:[%s286 + $0x628] sm:$0xff]
        %v533 = vld [vmem:[%s286 + $0x630] sm:$0xff]
        %v534 = vld [vmem:[%s286 + $0x638] sm:$0xff]
        %v535 = vadd.f32 %v335, %v336
        %v536 = vadd.f32 %v535, %v337
        %vm537 = vcmask 130048
        %v538 = vsel %vm537, %v338, 0.0
        %v539 = vadd.f32 %v536, %v538
        %540 = vadd.xlane.f32.xlu0 %v539
        %v541 = vpop.xlane.xlu0 %540
        %v542 = vadd.f32 %v339, %v340
        %v543 = vadd.f32 %v542, %v341
        %v544 = vsel %vm537, %v342, 0.0
        %v545 = vadd.f32 %v543, %v544
        %546 = vadd.xlane.f32.xlu0 %v545
        %v547 = vpop.xlane.xlu0 %546
        %v548 = vadd.f32 %v343, %v344
        %v549 = vadd.f32 %v548, %v345
        %v550 = vsel %vm537, %v346, 0.0
        %v551 = vadd.f32 %v549, %v550
        %552 = vadd.xlane.f32.xlu0 %v551
        %v553 = vpop.xlane.xlu0 %552
        %v554 = vadd.f32 %v347, %v348
        %v555 = vadd.f32 %v554, %v349
        %v556 = vsel %vm537, %v350, 0.0
        %v557 = vadd.f32 %v555, %v556
        %558 = vadd.xlane.f32.xlu0 %v557
        %v559 = vpop.xlane.xlu0 %558
        %v560 = vadd.f32 %v351, %v352
        %v561 = vadd.f32 %v560, %v353
        %v562 = vsel %vm537, %v354, 0.0
        %v563 = vadd.f32 %v561, %v562
        %564 = vadd.xlane.f32.xlu0 %v563
        %v565 = vpop.xlane.xlu0 %564
        %v566 = vadd.f32 %v355, %v356
        %v567 = vadd.f32 %v566, %v357
        %v568 = vsel %vm537, %v358, 0.0
        %v569 = vadd.f32 %v567, %v568
        %570 = vadd.xlane.f32.xlu0 %v569
        %v571 = vpop.xlane.xlu0 %570
        %v572 = vadd.f32 %v359, %v360
        %v573 = vadd.f32 %v572, %v361
        %v574 = vsel %vm537, %v362, 0.0
        %v575 = vadd.f32 %v573, %v574
        %576 = vadd.xlane.f32.xlu0 %v575
        %v577 = vpop.xlane.xlu0 %576
        %v578 = vadd.f32 %v363, %v364
        %v579 = vadd.f32 %v578, %v365
        %v580 = vsel %vm537, %v366, 0.0
        %v581 = vadd.f32 %v579, %v580
        %582 = vadd.xlane.f32.xlu0 %v581
        %v583 = vpop.xlane.xlu0 %582
        %v584 = vadd.f32 %v367, %v368
        %v585 = vadd.f32 %v584, %v369
        %v586 = vsel %vm537, %v370, 0.0
        %v587 = vadd.f32 %v585, %v586
        %588 = vadd.xlane.f32.xlu0 %v587
        %v589 = vpop.xlane.xlu0 %588
        %v590 = vadd.f32 %v371, %v372
        %v591 = vadd.f32 %v590, %v373
        %v592 = vsel %vm537, %v374, 0.0
        %v593 = vadd.f32 %v591, %v592
        %594 = vadd.xlane.f32.xlu0 %v593
        %v595 = vpop.xlane.xlu0 %594
        %v596 = vadd.f32 %v375, %v376
        %v597 = vadd.f32 %v596, %v377
        %v598 = vsel %vm537, %v378, 0.0
        %v599 = vadd.f32 %v597, %v598
        %600 = vadd.xlane.f32.xlu0 %v599
        %v601 = vpop.xlane.xlu0 %600
        %v602 = vadd.f32 %v379, %v380
        %v603 = vadd.f32 %v602, %v381
        %v604 = vsel %vm537, %v382, 0.0
        %v605 = vadd.f32 %v603, %v604
        %606 = vadd.xlane.f32.xlu0 %v605
        %v607 = vpop.xlane.xlu0 %606
        %v608 = vadd.f32 %v383, %v384
        %v609 = vadd.f32 %v608, %v385
        %v610 = vsel %vm537, %v386, 0.0
        %v611 = vadd.f32 %v609, %v610
        %612 = vadd.xlane.f32.xlu0 %v611
        %v613 = vpop.xlane.xlu0 %612
        %v614 = vadd.f32 %v387, %v388
        %v615 = vadd.f32 %v614, %v389
        %v616 = vsel %vm537, %v390, 0.0
        %v617 = vadd.f32 %v615, %v616
        %618 = vadd.xlane.f32.xlu0 %v617
        %v619 = vpop.xlane.xlu0 %618
        %v620 = vadd.f32 %v391, %v392
        %v621 = vadd.f32 %v620, %v393
        %v622 = vsel %vm537, %v394, 0.0
        %v623 = vadd.f32 %v621, %v622
        %624 = vadd.xlane.f32.xlu0 %v623
        %v625 = vpop.xlane.xlu0 %624
        %v626 = vadd.f32 %v395, %v396
        %v627 = vadd.f32 %v626, %v397
        %v628 = vsel %vm537, %v398, 0.0
        %v629 = vadd.f32 %v627, %v628
        %630 = vadd.xlane.f32.xlu0 %v629
        %v631 = vpop.xlane.xlu0 %630
        %v632 = vadd.f32 %v399, %v400
        %v633 = vadd.f32 %v632, %v401
        %v634 = vsel %vm537, %v402, 0.0
        %v635 = vadd.f32 %v633, %v634
        %636 = vadd.xlane.f32.xlu0 %v635
        %v637 = vpop.xlane.xlu0 %636
        %v638 = vadd.f32 %v403, %v404
        %v639 = vadd.f32 %v638, %v405
        %v640 = vsel %vm537, %v406, 0.0
        %v641 = vadd.f32 %v639, %v640
        %642 = vadd.xlane.f32.xlu0 %v641
        %v643 = vpop.xlane.xlu0 %642
        %v644 = vadd.f32 %v407, %v408
        %v645 = vadd.f32 %v644, %v409
        %v646 = vsel %vm537, %v410, 0.0
        %v647 = vadd.f32 %v645, %v646
        %648 = vadd.xlane.f32.xlu0 %v647
        %v649 = vpop.xlane.xlu0 %648
        %v650 = vadd.f32 %v411, %v412
        %v651 = vadd.f32 %v650, %v413
        %v652 = vsel %vm537, %v414, 0.0
        %v653 = vadd.f32 %v651, %v652
        %654 = vadd.xlane.f32.xlu0 %v653
        %v655 = vpop.xlane.xlu0 %654
        %v656 = vadd.f32 %v415, %v416
        %v657 = vadd.f32 %v656, %v417
        %v658 = vsel %vm537, %v418, 0.0
        %v659 = vadd.f32 %v657, %v658
        %660 = vadd.xlane.f32.xlu0 %v659
        %v661 = vpop.xlane.xlu0 %660
        %v662 = vadd.f32 %v419, %v420
        %v663 = vadd.f32 %v662, %v421
        %v664 = vsel %vm537, %v422, 0.0
        %v665 = vadd.f32 %v663, %v664
        %666 = vadd.xlane.f32.xlu0 %v665
        %v667 = vpop.xlane.xlu0 %666
        %v668 = vadd.f32 %v423, %v424
        %v669 = vadd.f32 %v668, %v425
        %v670 = vsel %vm537, %v426, 0.0
        %v671 = vadd.f32 %v669, %v670
        %672 = vadd.xlane.f32.xlu0 %v671
        %v673 = vpop.xlane.xlu0 %672
        %v674 = vadd.f32 %v427, %v428
        %v675 = vadd.f32 %v674, %v429
        %v676 = vsel %vm537, %v430, 0.0
        %v677 = vadd.f32 %v675, %v676
        %678 = vadd.xlane.f32.xlu0 %v677
        %v679 = vpop.xlane.xlu0 %678
        %v680 = vadd.f32 %v431, %v432
        %v681 = vadd.f32 %v680, %v433
        %v682 = vsel %vm537, %v434, 0.0
        %v683 = vadd.f32 %v681, %v682
        %684 = vadd.xlane.f32.xlu0 %v683
        %v685 = vpop.xlane.xlu0 %684
        %v686 = vadd.f32 %v435, %v436
        %v687 = vadd.f32 %v686, %v437
        %v688 = vsel %vm537, %v438, 0.0
        %v689 = vadd.f32 %v687, %v688
        %690 = vadd.xlane.f32.xlu0 %v689
        %v691 = vpop.xlane.xlu0 %690
        %v692 = vadd.f32 %v439, %v440
        %v693 = vadd.f32 %v692, %v441
        %v694 = vsel %vm537, %v442, 0.0
        %v695 = vadd.f32 %v693, %v694
        %696 = vadd.xlane.f32.xlu0 %v695
        %v697 = vpop.xlane.xlu0 %696
        %v698 = vadd.f32 %v443, %v444
        %v699 = vadd.f32 %v698, %v445
        %v700 = vsel %vm537, %v446, 0.0
        %v701 = vadd.f32 %v699, %v700
        %702 = vadd.xlane.f32.xlu0 %v701
        %v703 = vpop.xlane.xlu0 %702
        %v704 = vadd.f32 %v447, %v448
        %v705 = vadd.f32 %v704, %v449
        %v706 = vsel %vm537, %v450, 0.0
        %v707 = vadd.f32 %v705, %v706
        %708 = vadd.xlane.f32.xlu0 %v707
        %v709 = vpop.xlane.xlu0 %708
        %v710 = vadd.f32 %v451, %v452
        %v711 = vadd.f32 %v710, %v453
        %v712 = vsel %vm537, %v454, 0.0
        %v713 = vadd.f32 %v711, %v712
        %714 = vadd.xlane.f32.xlu0 %v713
        %v715 = vpop.xlane.xlu0 %714
        %v716 = vadd.f32 %v455, %v456
        %v717 = vadd.f32 %v716, %v457
        %v718 = vsel %vm537, %v458, 0.0
        %v719 = vadd.f32 %v717, %v718
        %720 = vadd.xlane.f32.xlu0 %v719
        %v721 = vpop.xlane.xlu0 %720
        %v722 = vadd.f32 %v459, %v460
        %v723 = vadd.f32 %v722, %v461
        %v724 = vsel %vm537, %v462, 0.0
        %v725 = vadd.f32 %v723, %v724
        %726 = vadd.xlane.f32.xlu0 %v725
        %v727 = vpop.xlane.xlu0 %726
        %v728 = vadd.f32 %v463, %v464
        %v729 = vadd.f32 %v728, %v465
        %v730 = vsel %vm537, %v466, 0.0
        %v731 = vadd.f32 %v729, %v730
        %732 = vadd.xlane.f32.xlu0 %v731
        %v733 = vpop.xlane.xlu0 %732
        %v734 = vadd.f32 %v467, %v468
        %v735 = vadd.f32 %v734, %v469
        %v736 = vsel %vm537, %v470, 0.0
        %v737 = vadd.f32 %v735, %v736
        %738 = vadd.xlane.f32.xlu0 %v737
        %v739 = vpop.xlane.xlu0 %738
        %v740 = vadd.f32 %v471, %v472
        %v741 = vadd.f32 %v740, %v473
        %v742 = vsel %vm537, %v474, 0.0
        %v743 = vadd.f32 %v741, %v742
        %744 = vadd.xlane.f32.xlu0 %v743
        %v745 = vpop.xlane.xlu0 %744
        %v746 = vadd.f32 %v475, %v476
        %v747 = vadd.f32 %v746, %v477
        %v748 = vsel %vm537, %v478, 0.0
        %v749 = vadd.f32 %v747, %v748
        %750 = vadd.xlane.f32.xlu0 %v749
        %v751 = vpop.xlane.xlu0 %750
        %v752 = vadd.f32 %v479, %v480
        %v753 = vadd.f32 %v752, %v481
        %v754 = vsel %vm537, %v482, 0.0
        %v755 = vadd.f32 %v753, %v754
        %756 = vadd.xlane.f32.xlu0 %v755
        %v757 = vpop.xlane.xlu0 %756
        %v758 = vadd.f32 %v483, %v484
        %v759 = vadd.f32 %v758, %v485
        %v760 = vsel %vm537, %v486, 0.0
        %v761 = vadd.f32 %v759, %v760
        %762 = vadd.xlane.f32.xlu0 %v761
        %v763 = vpop.xlane.xlu0 %762
        %v764 = vadd.f32 %v487, %v488
        %v765 = vadd.f32 %v764, %v489
        %v766 = vsel %vm537, %v490, 0.0
        %v767 = vadd.f32 %v765, %v766
        %768 = vadd.xlane.f32.xlu0 %v767
        %v769 = vpop.xlane.xlu0 %768
        %v770 = vadd.f32 %v491, %v492
        %v771 = vadd.f32 %v770, %v493
        %v772 = vsel %vm537, %v494, 0.0
        %v773 = vadd.f32 %v771, %v772
        %774 = vadd.xlane.f32.xlu0 %v773
        %v775 = vpop.xlane.xlu0 %774
        %v776 = vadd.f32 %v495, %v496
        %v777 = vadd.f32 %v776, %v497
        %v778 = vsel %vm537, %v498, 0.0
        %v779 = vadd.f32 %v777, %v778
        %780 = vadd.xlane.f32.xlu0 %v779
        %v781 = vpop.xlane.xlu0 %780
        %v782 = vadd.f32 %v499, %v500
        %v783 = vadd.f32 %v782, %v501
        %v784 = vsel %vm537, %v502, 0.0
        %v785 = vadd.f32 %v783, %v784
        %786 = vadd.xlane.f32.xlu0 %v785
        %v787 = vpop.xlane.xlu0 %786
        %v788 = vadd.f32 %v503, %v504
        %v789 = vadd.f32 %v788, %v505
        %v790 = vsel %vm537, %v506, 0.0
        %v791 = vadd.f32 %v789, %v790
        %792 = vadd.xlane.f32.xlu0 %v791
        %v793 = vpop.xlane.xlu0 %792
        %v794 = vadd.f32 %v507, %v508
        %v795 = vadd.f32 %v794, %v509
        %v796 = vsel %vm537, %v510, 0.0
        %v797 = vadd.f32 %v795, %v796
        %798 = vadd.xlane.f32.xlu0 %v797
        %v799 = vpop.xlane.xlu0 %798
        %v800 = vadd.f32 %v511, %v512
        %v801 = vadd.f32 %v800, %v513
        %v802 = vsel %vm537, %v514, 0.0
        %v803 = vadd.f32 %v801, %v802
        %804 = vadd.xlane.f32.xlu0 %v803
        %v805 = vpop.xlane.xlu0 %804
        %v806 = vadd.f32 %v515, %v516
        %v807 = vadd.f32 %v806, %v517
        %v808 = vsel %vm537, %v518, 0.0
        %v809 = vadd.f32 %v807, %v808
        %810 = vadd.xlane.f32.xlu0 %v809
        %v811 = vpop.xlane.xlu0 %810
        %v812 = vadd.f32 %v519, %v520
        %v813 = vadd.f32 %v812, %v521
        %v814 = vsel %vm537, %v522, 0.0
        %v815 = vadd.f32 %v813, %v814
        %816 = vadd.xlane.f32.xlu0 %v815
        %v817 = vpop.xlane.xlu0 %816
        %v818 = vadd.f32 %v523, %v524
        %v819 = vadd.f32 %v818, %v525
        %v820 = vsel %vm537, %v526, 0.0
        %v821 = vadd.f32 %v819, %v820
        %822 = vadd.xlane.f32.xlu0 %v821
        %v823 = vpop.xlane.xlu0 %822
        %v824 = vadd.f32 %v527, %v528
        %v825 = vadd.f32 %v824, %v529
        %v826 = vsel %vm537, %v530, 0.0
        %v827 = vadd.f32 %v825, %v826
        %828 = vadd.xlane.f32.xlu0 %v827
        %v829 = vpop.xlane.xlu0 %828
        %v830 = vadd.f32 %v531, %v532
        %v831 = vadd.f32 %v830, %v533
        %v832 = vsel %vm537, %v534, 0.0
        %v833 = vadd.f32 %v831, %v832
        %834 = vadd.xlane.f32.xlu0 %v833
        %v835 = vpop.xlane.xlu0 %834
        %v836 = vmax.f32 %v541, 1.0
        %v837 = vmax.f32 %v547, 1.0
        %v838 = vmax.f32 %v553, 1.0
        %v839 = vmax.f32 %v559, 1.0
        %v840 = vmax.f32 %v565, 1.0
        %v841 = vmax.f32 %v571, 1.0
        %v842 = vmax.f32 %v577, 1.0
        %v843 = vmax.f32 %v583, 1.0
        %v844 = vmax.f32 %v589, 1.0
        %v845 = vmax.f32 %v595, 1.0
        %v846 = vmax.f32 %v601, 1.0
        %v847 = vmax.f32 %v607, 1.0
        %v848 = vmax.f32 %v613, 1.0
        %v849 = vmax.f32 %v619, 1.0
        %v850 = vmax.f32 %v625, 1.0
        %v851 = vmax.f32 %v631, 1.0
        %v852 = vmax.f32 %v637, 1.0
        %v853 = vmax.f32 %v643, 1.0
        %v854 = vmax.f32 %v649, 1.0
        %v855 = vmax.f32 %v655, 1.0
        %v856 = vmax.f32 %v661, 1.0
        %v857 = vmax.f32 %v667, 1.0
        %v858 = vmax.f32 %v673, 1.0
        %v859 = vmax.f32 %v679, 1.0
        %v860 = vmax.f32 %v685, 1.0
        %v861 = vmax.f32 %v691, 1.0
        %v862 = vmax.f32 %v697, 1.0
        %v863 = vmax.f32 %v703, 1.0
        %v864 = vmax.f32 %v709, 1.0
        %v865 = vmax.f32 %v715, 1.0
        %v866 = vmax.f32 %v721, 1.0
        %v867 = vmax.f32 %v727, 1.0
        %v868 = vmax.f32 %v733, 1.0
        %v869 = vmax.f32 %v739, 1.0
        %v870 = vmax.f32 %v745, 1.0
        %v871 = vmax.f32 %v751, 1.0
        %v872 = vmax.f32 %v757, 1.0
        %v873 = vmax.f32 %v763, 1.0
        %v874 = vmax.f32 %v769, 1.0
        %v875 = vmax.f32 %v775, 1.0
        %v876 = vmax.f32 %v781, 1.0
        %v877 = vmax.f32 %v787, 1.0
        %v878 = vmax.f32 %v793, 1.0
        %v879 = vmax.f32 %v799, 1.0
        %v880 = vmax.f32 %v805, 1.0
        %v881 = vmax.f32 %v811, 1.0
        %v882 = vmax.f32 %v817, 1.0
        %v883 = vmax.f32 %v823, 1.0
        %v884 = vmax.f32 %v829, 1.0
        %v885 = vmax.f32 %v835, 1.0
        %v886 = vrsqrt.pop %v836
        %v887 = vrsqrt.pop %v837
        %v888 = vrsqrt.pop %v838
        %v889 = vrsqrt.pop %v839
        %v890 = vrsqrt.pop %v840
        %v891 = vrsqrt.pop %v841
        %v892 = vrsqrt.pop %v842
        %v893 = vrsqrt.pop %v843
        %v894 = vrsqrt.pop %v844
        %v895 = vrsqrt.pop %v845
        %v896 = vrsqrt.pop %v846
        %v897 = vrsqrt.pop %v847
        %v898 = vrsqrt.pop %v848
        %v899 = vrsqrt.pop %v849
        %v900 = vrsqrt.pop %v850
        %v901 = vrsqrt.pop %v851
        %v902 = vrsqrt.pop %v852
        %v903 = vrsqrt.pop %v853
        %v904 = vrsqrt.pop %v854
        %v905 = vrsqrt.pop %v855
        %v906 = vrsqrt.pop %v856
        %v907 = vrsqrt.pop %v857
        %v908 = vrsqrt.pop %v858
        %v909 = vrsqrt.pop %v859
        %v910 = vrsqrt.pop %v860
        %v911 = vrsqrt.pop %v861
        %v912 = vrsqrt.pop %v862
        %v913 = vrsqrt.pop %v863
        %v914 = vrsqrt.pop %v864
        %v915 = vrsqrt.pop %v865
        %v916 = vrsqrt.pop %v866
        %v917 = vrsqrt.pop %v867
        %v918 = vrsqrt.pop %v868
        %v919 = vrsqrt.pop %v869
        %v920 = vrsqrt.pop %v870
        %v921 = vrsqrt.pop %v871
        %v922 = vrsqrt.pop %v872
        %v923 = vrsqrt.pop %v873
        %v924 = vrsqrt.pop %v874
        %v925 = vrsqrt.pop %v875
        %v926 = vrsqrt.pop %v876
        %v927 = vrsqrt.pop %v877
        %v928 = vrsqrt.pop %v878
        %v929 = vrsqrt.pop %v879
        %v930 = vrsqrt.pop %v880
        %v931 = vrsqrt.pop %v881
        %v932 = vrsqrt.pop %v882
        %v933 = vrsqrt.pop %v883
        %v934 = vrsqrt.pop %v884
        %v935 = vrsqrt.pop %v885
        %v936 = vmul.f32 %v886, %v335
        %v937 = vmul.f32 %v886, %v336
        %v938 = vmul.f32 %v886, %v337
        %v939 = vmul.f32 %v886, %v338
        %v940 = vmul.f32 %v887, %v339
        %v941 = vmul.f32 %v887, %v340
        %v942 = vmul.f32 %v887, %v341
        %v943 = vmul.f32 %v887, %v342
        %v944 = vmul.f32 %v888, %v343
        %v945 = vmul.f32 %v888, %v344
        %v946 = vmul.f32 %v888, %v345
        %v947 = vmul.f32 %v888, %v346
        %v948 = vmul.f32 %v889, %v347
        %v949 = vmul.f32 %v889, %v348
        %v950 = vmul.f32 %v889, %v349
        %v951 = vmul.f32 %v889, %v350
        %v952 = vmul.f32 %v890, %v351
        %v953 = vmul.f32 %v890, %v352
        %v954 = vmul.f32 %v890, %v353
        %v955 = vmul.f32 %v890, %v354
        %v956 = vmul.f32 %v891, %v355
        %v957 = vmul.f32 %v891, %v356
        %v958 = vmul.f32 %v891, %v357
        %v959 = vmul.f32 %v891, %v358
        %v960 = vmul.f32 %v892, %v359
        %v961 = vmul.f32 %v892, %v360
        %v962 = vmul.f32 %v892, %v361
        %v963 = vmul.f32 %v892, %v362
        %v964 = vmul.f32 %v893, %v363
        %v965 = vmul.f32 %v893, %v364
        %v966 = vmul.f32 %v893, %v365
        %v967 = vmul.f32 %v893, %v366
        %v968 = vmul.f32 %v894, %v367
        %v969 = vmul.f32 %v894, %v368
        %v970 = vmul.f32 %v894, %v369
        %v971 = vmul.f32 %v894, %v370
        %v972 = vmul.f32 %v895, %v371
        %v973 = vmul.f32 %v895, %v372
        %v974 = vmul.f32 %v895, %v373
        %v975 = vmul.f32 %v895, %v374
        %v976 = vmul.f32 %v896, %v375
        %v977 = vmul.f32 %v896, %v376
        %v978 = vmul.f32 %v896, %v377
        %v979 = vmul.f32 %v896, %v378
        %v980 = vmul.f32 %v897, %v379
        %v981 = vmul.f32 %v897, %v380
        %v982 = vmul.f32 %v897, %v381
        %v983 = vmul.f32 %v897, %v382
        %v984 = vmul.f32 %v898, %v383
        %v985 = vmul.f32 %v898, %v384
        %v986 = vmul.f32 %v898, %v385
        %v987 = vmul.f32 %v898, %v386
        %v988 = vmul.f32 %v899, %v387
        %v989 = vmul.f32 %v899, %v388
        %v990 = vmul.f32 %v899, %v389
        %v991 = vmul.f32 %v899, %v390
        %v992 = vmul.f32 %v900, %v391
        %v993 = vmul.f32 %v900, %v392
        %v994 = vmul.f32 %v900, %v393
        %v995 = vmul.f32 %v900, %v394
        %v996 = vmul.f32 %v901, %v395
        %v997 = vmul.f32 %v901, %v396
        %v998 = vmul.f32 %v901, %v397
        %v999 = vmul.f32 %v901, %v398
        %v1000 = vmul.f32 %v902, %v399
        %v1001 = vmul.f32 %v902, %v400
        %v1002 = vmul.f32 %v902, %v401
        %v1003 = vmul.f32 %v902, %v402
        %v1004 = vmul.f32 %v903, %v403
        %v1005 = vmul.f32 %v903, %v404
        %v1006 = vmul.f32 %v903, %v405
        %v1007 = vmul.f32 %v903, %v406
        %v1008 = vmul.f32 %v904, %v407
        %v1009 = vmul.f32 %v904, %v408
        %v1010 = vmul.f32 %v904, %v409
        %v1011 = vmul.f32 %v904, %v410
        %v1012 = vmul.f32 %v905, %v411
        %v1013 = vmul.f32 %v905, %v412
        %v1014 = vmul.f32 %v905, %v413
        %v1015 = vmul.f32 %v905, %v414
        %v1016 = vmul.f32 %v906, %v415
        %v1017 = vmul.f32 %v906, %v416
        %v1018 = vmul.f32 %v906, %v417
        %v1019 = vmul.f32 %v906, %v418
        %v1020 = vmul.f32 %v907, %v419
        %v1021 = vmul.f32 %v907, %v420
        %v1022 = vmul.f32 %v907, %v421
        %v1023 = vmul.f32 %v907, %v422
        %v1024 = vmul.f32 %v908, %v423
        %v1025 = vmul.f32 %v908, %v424
        %v1026 = vmul.f32 %v908, %v425
        %v1027 = vmul.f32 %v908, %v426
        %v1028 = vmul.f32 %v909, %v427
        %v1029 = vmul.f32 %v909, %v428
        %v1030 = vmul.f32 %v909, %v429
        %v1031 = vmul.f32 %v909, %v430
        %v1032 = vmul.f32 %v910, %v431
        %v1033 = vmul.f32 %v910, %v432
        %v1034 = vmul.f32 %v910, %v433
        %v1035 = vmul.f32 %v910, %v434
        %v1036 = vmul.f32 %v911, %v435
        %v1037 = vmul.f32 %v911, %v436
        %v1038 = vmul.f32 %v911, %v437
        %v1039 = vmul.f32 %v911, %v438
        %v1040 = vmul.f32 %v912, %v439
        %v1041 = vmul.f32 %v912, %v440
        %v1042 = vmul.f32 %v912, %v441
        %v1043 = vmul.f32 %v912, %v442
        %v1044 = vmul.f32 %v913, %v443
        %v1045 = vmul.f32 %v913, %v444
        %v1046 = vmul.f32 %v913, %v445
        %v1047 = vmul.f32 %v913, %v446
        %v1048 = vmul.f32 %v914, %v447
        %v1049 = vmul.f32 %v914, %v448
        %v1050 = vmul.f32 %v914, %v449
        %v1051 = vmul.f32 %v914, %v450
        %v1052 = vmul.f32 %v915, %v451
        %v1053 = vmul.f32 %v915, %v452
        %v1054 = vmul.f32 %v915, %v453
        %v1055 = vmul.f32 %v915, %v454
        %v1056 = vmul.f32 %v916, %v455
        %v1057 = vmul.f32 %v916, %v456
        %v1058 = vmul.f32 %v916, %v457
        %v1059 = vmul.f32 %v916, %v458
        %v1060 = vmul.f32 %v917, %v459
        %v1061 = vmul.f32 %v917, %v460
        %v1062 = vmul.f32 %v917, %v461
        %v1063 = vmul.f32 %v917, %v462
        %v1064 = vmul.f32 %v918, %v463
        %v1065 = vmul.f32 %v918, %v464
        %v1066 = vmul.f32 %v918, %v465
        %v1067 = vmul.f32 %v918, %v466
        %v1068 = vmul.f32 %v919, %v467
        %v1069 = vmul.f32 %v919, %v468
        %v1070 = vmul.f32 %v919, %v469
        %v1071 = vmul.f32 %v919, %v470
        %v1072 = vmul.f32 %v920, %v471
        %v1073 = vmul.f32 %v920, %v472
        %v1074 = vmul.f32 %v920, %v473
        %v1075 = vmul.f32 %v920, %v474
        %v1076 = vmul.f32 %v921, %v475
        %v1077 = vmul.f32 %v921, %v476
        %v1078 = vmul.f32 %v921, %v477
        %v1079 = vmul.f32 %v921, %v478
        %v1080 = vmul.f32 %v922, %v479
        %v1081 = vmul.f32 %v922, %v480
        %v1082 = vmul.f32 %v922, %v481
        %v1083 = vmul.f32 %v922, %v482
        %v1084 = vmul.f32 %v923, %v483
        %v1085 = vmul.f32 %v923, %v484
        %v1086 = vmul.f32 %v923, %v485
        %v1087 = vmul.f32 %v923, %v486
        %v1088 = vmul.f32 %v924, %v487
        %v1089 = vmul.f32 %v924, %v488
        %v1090 = vmul.f32 %v924, %v489
        %v1091 = vmul.f32 %v924, %v490
        %v1092 = vmul.f32 %v925, %v491
        %v1093 = vmul.f32 %v925, %v492
        %v1094 = vmul.f32 %v925, %v493
        %v1095 = vmul.f32 %v925, %v494
        %v1096 = vmul.f32 %v926, %v495
        %v1097 = vmul.f32 %v926, %v496
        %v1098 = vmul.f32 %v926, %v497
        %v1099 = vmul.f32 %v926, %v498
        %v1100 = vmul.f32 %v927, %v499
        %v1101 = vmul.f32 %v927, %v500
        %v1102 = vmul.f32 %v927, %v501
        %v1103 = vmul.f32 %v927, %v502
        %v1104 = vmul.f32 %v928, %v503
        %v1105 = vmul.f32 %v928, %v504
        %v1106 = vmul.f32 %v928, %v505
        %v1107 = vmul.f32 %v928, %v506
        %v1108 = vmul.f32 %v929, %v507
        %v1109 = vmul.f32 %v929, %v508
        %v1110 = vmul.f32 %v929, %v509
        %v1111 = vmul.f32 %v929, %v510
        %v1112 = vmul.f32 %v930, %v511
        %v1113 = vmul.f32 %v930, %v512
        %v1114 = vmul.f32 %v930, %v513
        %v1115 = vmul.f32 %v930, %v514
        %v1116 = vmul.f32 %v931, %v515
        %v1117 = vmul.f32 %v931, %v516
        %v1118 = vmul.f32 %v931, %v517
        %v1119 = vmul.f32 %v931, %v518
        %v1120 = vmul.f32 %v932, %v519
        %v1121 = vmul.f32 %v932, %v520
        %v1122 = vmul.f32 %v932, %v521
        %v1123 = vmul.f32 %v932, %v522
        %v1124 = vmul.f32 %v933, %v523
        %v1125 = vmul.f32 %v933, %v524
        %v1126 = vmul.f32 %v933, %v525
        %v1127 = vmul.f32 %v933, %v526
        %v1128 = vmul.f32 %v934, %v527
        %v1129 = vmul.f32 %v934, %v528
        %v1130 = vmul.f32 %v934, %v529
        %v1131 = vmul.f32 %v934, %v530
        %v1132 = vmul.f32 %v935, %v531
        %v1133 = vmul.f32 %v935, %v532
        %v1134 = vmul.f32 %v935, %v533
        %v1135 = vmul.f32 %v935, %v534
        %v1137 = vsel %vm537, %v939, 0
        %v1140 = vsel %vm537, %v943, 0
        %v1143 = vsel %vm537, %v947, 0
        %v1146 = vsel %vm537, %v951, 0
        %v1149 = vsel %vm537, %v955, 0
        %v1152 = vsel %vm537, %v959, 0
        %v1155 = vsel %vm537, %v963, 0
        %v1158 = vsel %vm537, %v967, 0
        %v1161 = vsel %vm537, %v971, 0
        %v1164 = vsel %vm537, %v975, 0
        %v1167 = vsel %vm537, %v979, 0
        %v1170 = vsel %vm537, %v983, 0
        %v1173 = vsel %vm537, %v987, 0
        %v1176 = vsel %vm537, %v991, 0
        %v1179 = vsel %vm537, %v995, 0
        %v1182 = vsel %vm537, %v999, 0
        %v1185 = vsel %vm537, %v1003, 0
        %v1188 = vsel %vm537, %v1007, 0
        %v1191 = vsel %vm537, %v1011, 0
        %v1194 = vsel %vm537, %v1015, 0
        %v1197 = vsel %vm537, %v1019, 0
        %v1200 = vsel %vm537, %v1023, 0
        %v1203 = vsel %vm537, %v1027, 0
        %v1206 = vsel %vm537, %v1031, 0
        %v1209 = vsel %vm537, %v1035, 0
        %v1212 = vsel %vm537, %v1039, 0
        %v1215 = vsel %vm537, %v1043, 0
        %v1218 = vsel %vm537, %v1047, 0
        %v1221 = vsel %vm537, %v1051, 0
        %v1224 = vsel %vm537, %v1055, 0
        %v1227 = vsel %vm537, %v1059, 0
        %v1230 = vsel %vm537, %v1063, 0
        %v1233 = vsel %vm537, %v1067, 0
        %v1236 = vsel %vm537, %v1071, 0
        %v1239 = vsel %vm537, %v1075, 0
        %v1242 = vsel %vm537, %v1079, 0
        %v1245 = vsel %vm537, %v1083, 0
        %v1248 = vsel %vm537, %v1087, 0
        %v1251 = vsel %vm537, %v1091, 0
        %v1254 = vsel %vm537, %v1095, 0
        %v1257 = vsel %vm537, %v1099, 0
        %v1260 = vsel %vm537, %v1103, 0
        %v1263 = vsel %vm537, %v1107, 0
        %v1266 = vsel %vm537, %v1111, 0
        %v1269 = vsel %vm537, %v1115, 0
        %v1272 = vsel %vm537, %v1119, 0
        %v1275 = vsel %vm537, %v1123, 0
        %v1278 = vsel %vm537, %v1127, 0
        %v1281 = vsel %vm537, %v1131, 0
        %v1284 = vsel %vm537, %v1135, 0
        %1286 = vmatprep.subr.mxu0 0.0
        %1287 = vmatpush1.msra.mxu0 %v886
        %1288 = vmatprep.subr.mxu0 0.0
        %1289 = vmatpush1.msra.mxu0 %v887
        %1290 = vmatprep.subr.mxu0 0.0
        %1291 = vmatpush1.msra.mxu0 %v888
        %1292 = vmatprep.subr.mxu0 0.0
        %1293 = vmatpush1.msra.mxu0 %v889
        %1294 = vmatprep.subr.mxu0 0.0
        %1295 = vmatpush1.msra.mxu0 %v890
        %1296 = vmatprep.subr.mxu0 0.0
        %1297 = vmatpush1.msra.mxu0 %v891
        %1298 = vmatprep.subr.mxu0 0.0
        %1299 = vmatpush1.msra.mxu0 %v892
        %1300 = vmatprep.subr.mxu0 0.0
        %1301 = vmatpush1.msra.mxu0 %v893
        %1302 = vmatprep.subr.mxu0 0.0
        %1303 = vmatpush1.msra.mxu0 %v894
        %1304 = vmatprep.subr.mxu0 0.0
        %1305 = vmatpush1.msra.mxu0 %v895
        %1306 = vmatprep.subr.mxu0 0.0
        %1307 = vmatpush1.msra.mxu0 %v896
        %1308 = vmatprep.subr.mxu0 0.0
        %1309 = vmatpush1.msra.mxu0 %v897
        %1310 = vmatprep.subr.mxu0 0.0
        %1311 = vmatpush1.msra.mxu0 %v898
        %1312 = vmatprep.subr.mxu0 0.0
        %1313 = vmatpush1.msra.mxu0 %v899
        %1314 = vmatprep.subr.mxu0 0.0
        %1315 = vmatpush1.msra.mxu0 %v900
        %1316 = vmatprep.subr.mxu0 0.0
        %1317 = vmatpush1.msra.mxu0 %v901
        %1318 = vmatprep.subr.mxu0 0.0
        %1319 = vmatpush1.msra.mxu0 %v902
        %1320 = vmatprep.subr.mxu0 0.0
        %1321 = vmatpush1.msra.mxu0 %v903
        %1322 = vmatprep.subr.mxu0 0.0
        %1323 = vmatpush1.msra.mxu0 %v904
        %1324 = vmatprep.subr.mxu0 0.0
        %1325 = vmatpush1.msra.mxu0 %v905
        %1326 = vmatprep.subr.mxu0 0.0
        %1327 = vmatpush1.msra.mxu0 %v906
        %1328 = vmatprep.subr.mxu0 0.0
        %1329 = vmatpush1.msra.mxu0 %v907
        %1330 = vmatprep.subr.mxu0 0.0
        %1331 = vmatpush1.msra.mxu0 %v908
        %1332 = vmatprep.subr.mxu0 0.0
        %1333 = vmatpush1.msra.mxu0 %v909
        %1334 = vmatprep.subr.mxu0 0.0
        %1335 = vmatpush1.msra.mxu0 %v910
        %1336 = vmatprep.subr.mxu0 0.0
        %1337 = vmatpush1.msra.mxu0 %v911
        %1338 = vmatprep.subr.mxu0 0.0
        %1339 = vmatpush1.msra.mxu0 %v912
        %1340 = vmatprep.subr.mxu0 0.0
        %1341 = vmatpush1.msra.mxu0 %v913
        %1342 = vmatprep.subr.mxu0 0.0
        %1343 = vmatpush1.msra.mxu0 %v914
        %1344 = vmatprep.subr.mxu0 0.0
        %1345 = vmatpush1.msra.mxu0 %v915
        %1346 = vmatprep.subr.mxu0 0.0
        %1347 = vmatpush1.msra.mxu0 %v916
        %1348 = vmatprep.subr.mxu0 0.0
        %1349 = vmatpush1.msra.mxu0 %v917
        %1350 = vmatprep.mubr.f32.mxu0 %v937
        %1351 = vmatmul.mubr.f32.gmra.mrb[0].mxu0 %v936
        %v1352 = vpop.f32.mrb[0].mxu0
        %v1353 = vadd.f32 0.0, %v1352
        %v1354 = vpop.f32.mrb[0].mxu0
        %1355 = vmatprep.mubr.f32.mxu0 %v941
        %1356 = vmatmul.mubr.f32.gmra.mrb[0].mxu0 %v940
        %v1357 = vpop.f32.mrb[0].mxu0
        %v1358 = vadd.f32 0.0, %v1357
        %v1359 = vpop.f32.mrb[0].mxu0
        %1360 = vmatprep.mubr.f32.mxu0 %v945
        %1361 = vmatmul.mubr.f32.gmra.mrb[0].mxu0 %v944
        %v1362 = vpop.f32.mrb[0].mxu0
        %v1363 = vadd.f32 0.0, %v1362
        %v1364 = vpop.f32.mrb[0].mxu0
        %1365 = vmatprep.mubr.f32.mxu0 %v949
        %1366 = vmatmul.mubr.f32.gmra.mrb[0].mxu0 %v948
        %v1367 = vpop.f32.mrb[0].mxu0
        %v1368 = vadd.f32 0.0, %v1367
        %v1369 = vpop.f32.mrb[0].mxu0
        %1370 = vmatprep.mubr.f32.mxu0 %v953
        %1371 = vmatmul.mubr.f32.gmra.mrb[0].mxu0 %v952
        %v1372 = vpop.f32.mrb[0].mxu0
        %v1373 = vadd.f32 0.0, %v1372
        %v1374 = vpop.f32.mrb[0].mxu0
        %1375 = vmatprep.mubr.f32.mxu0 %v957
        %1376 = vmatmul.mubr.f32.gmra.mrb[0].mxu0 %v956
        %v1377 = vpop.f32.mrb[0].mxu0
        %v1378 = vadd.f32 0.0, %v1377
        %v1379 = vpop.f32.mrb[0].mxu0
        %1380 = vmatprep.mubr.f32.mxu0 %v961
        %1381 = vmatmul.mubr.f32.gmra.mrb[0].mxu0 %v960
        %v1382 = vpop.f32.mrb[0].mxu0
        %v1383 = vadd.f32 0.0, %v1382
        %v1384 = vpop.f32.mrb[0].mxu0
        %1385 = vmatprep.mubr.f32.mxu0 %v965
        %1386 = vmatmul.mubr.f32.gmra.mrb[0].mxu0 %v964
        %v1387 = vpop.f32.mrb[0].mxu0
        %v1388 = vadd.f32 0.0, %v1387
        %v1389 = vpop.f32.mrb[0].mxu0
        %1390 = vmatprep.mubr.f32.mxu0 %v969
        %1391 = vmatmul.mubr.f32.gmra.mrb[0].mxu0 %v968
        %v1392 = vpop.f32.mrb[0].mxu0
        %v1393 = vadd.f32 0.0, %v1392
        %v1394 = vpop.f32.mrb[0].mxu0
        %1395 = vmatprep.mubr.f32.mxu0 %v973
        %1396 = vmatmul.mubr.f32.gmra.mrb[0].mxu0 %v972
        %v1397 = vpop.f32.mrb[0].mxu0
        %v1398 = vadd.f32 0.0, %v1397
        %v1399 = vpop.f32.mrb[0].mxu0
        %1400 = vmatprep.mubr.f32.mxu0 %v977
        %1401 = vmatmul.mubr.f32.gmra.mrb[0].mxu0 %v976
        %v1402 = vpop.f32.mrb[0].mxu0
        %v1403 = vadd.f32 0.0, %v1402
        %v1404 = vpop.f32.mrb[0].mxu0
        %1405 = vmatprep.mubr.f32.mxu0 %v981
        %1406 = vmatmul.mubr.f32.gmra.mrb[0].mxu0 %v980
        %v1407 = vpop.f32.mrb[0].mxu0
        %v1408 = vadd.f32 0.0, %v1407
        %v1409 = vpop.f32.mrb[0].mxu0
        %1410 = vmatprep.mubr.f32.mxu0 %v985
        %1411 = vmatmul.mubr.f32.gmra.mrb[0].mxu0 %v984
        %v1412 = vpop.f32.mrb[0].mxu0
        %v1413 = vadd.f32 0.0, %v1412
        %v1414 = vpop.f32.mrb[0].mxu0
        %1415 = vmatprep.mubr.f32.mxu0 %v989
        %1416 = vmatmul.mubr.f32.gmra.mrb[0].mxu0 %v988
        %v1417 = vpop.f32.mrb[0].mxu0
        %v1418 = vadd.f32 0.0, %v1417
        %v1419 = vpop.f32.mrb[0].mxu0
        %1420 = vmatprep.mubr.f32.mxu0 %v993
        %1421 = vmatmul.mubr.f32.gmra.mrb[0].mxu0 %v992
        %v1422 = vpop.f32.mrb[0].mxu0
        %v1423 = vadd.f32 0.0, %v1422
        %v1424 = vpop.f32.mrb[0].mxu0
        %1425 = vmatprep.mubr.f32.mxu0 %v997
        %1426 = vmatmul.mubr.f32.gmra.mrb[0].mxu0 %v996
        %v1427 = vpop.f32.mrb[0].mxu0
        %v1428 = vadd.f32 0.0, %v1427
        %v1429 = vpop.f32.mrb[0].mxu0
        %1430 = vmatprep.mubr.f32.mxu0 %v1001
        %1431 = vmatmul.mubr.f32.gmra.mrb[0].mxu0 %v1000
        %v1432 = vpop.f32.mrb[0].mxu0
        %v1433 = vadd.f32 0.0, %v1432
        %v1434 = vpop.f32.mrb[0].mxu0
        %1435 = vmatprep.mubr.f32.mxu0 %v1005
        %1436 = vmatmul.mubr.f32.gmra.mrb[0].mxu0 %v1004
        %v1437 = vpop.f32.mrb[0].mxu0
        %v1438 = vadd.f32 0.0, %v1437
        %v1439 = vpop.f32.mrb[0].mxu0
        %1440 = vmatprep.mubr.f32.mxu0 %v1009
        %1441 = vmatmul.mubr.f32.gmra.mrb[0].mxu0 %v1008
        %v1442 = vpop.f32.mrb[0].mxu0
        %v1443 = vadd.f32 0.0, %v1442
        %v1444 = vpop.f32.mrb[0].mxu0
        %1445 = vmatprep.mubr.f32.mxu0 %v1013
        %1446 = vmatmul.mubr.f32.gmra.mrb[0].mxu0 %v1012
        %v1447 = vpop.f32.mrb[0].mxu0
        %v1448 = vadd.f32 0.0, %v1447
        %v1449 = vpop.f32.mrb[0].mxu0
        %1450 = vmatprep.mubr.f32.mxu0 %v1017
        %1451 = vmatmul.mubr.f32.gmra.mrb[0].mxu0 %v1016
        %v1452 = vpop.f32.mrb[0].mxu0
        %v1453 = vadd.f32 0.0, %v1452
        %v1454 = vpop.f32.mrb[0].mxu0
        %1455 = vmatprep.mubr.f32.mxu0 %v1021
        %1456 = vmatmul.mubr.f32.gmra.mrb[0].mxu0 %v1020
        %v1457 = vpop.f32.mrb[0].mxu0
        %v1458 = vadd.f32 0.0, %v1457
        %v1459 = vpop.f32.mrb[0].mxu0
        %1460 = vmatprep.mubr.f32.mxu0 %v1025
        %1461 = vmatmul.mubr.f32.gmra.mrb[0].mxu0 %v1024
        %v1462 = vpop.f32.mrb[0].mxu0
        %v1463 = vadd.f32 0.0, %v1462
        %v1464 = vpop.f32.mrb[0].mxu0
        %1465 = vmatprep.mubr.f32.mxu0 %v1029
        %1466 = vmatmul.mubr.f32.gmra.mrb[0].mxu0 %v1028
        %v1467 = vpop.f32.mrb[0].mxu0
        %v1468 = vadd.f32 0.0, %v1467
        %v1469 = vpop.f32.mrb[0].mxu0
        %1470 = vmatprep.mubr.f32.mxu0 %v1033
        %1471 = vmatmul.mubr.f32.gmra.mrb[0].mxu0 %v1032
        %v1472 = vpop.f32.mrb[0].mxu0
        %v1473 = vadd.f32 0.0, %v1472
        %v1474 = vpop.f32.mrb[0].mxu0
        %1475 = vmatprep.mubr.f32.mxu0 %v1037
        %1476 = vmatmul.mubr.f32.gmra.mrb[0].mxu0 %v1036
        %v1477 = vpop.f32.mrb[0].mxu0
        %v1478 = vadd.f32 0.0, %v1477
        %v1479 = vpop.f32.mrb[0].mxu0
        %1480 = vmatprep.mubr.f32.mxu0 %v1041
        %1481 = vmatmul.mubr.f32.gmra.mrb[0].mxu0 %v1040
        %v1482 = vpop.f32.mrb[0].mxu0
        %v1483 = vadd.f32 0.0, %v1482
        %v1484 = vpop.f32.mrb[0].mxu0
        %1485 = vmatprep.mubr.f32.mxu0 %v1045
        %1486 = vmatmul.mubr.f32.gmra.mrb[0].mxu0 %v1044
        %v1487 = vpop.f32.mrb[0].mxu0
        %v1488 = vadd.f32 0.0, %v1487
        %v1489 = vpop.f32.mrb[0].mxu0
        %1490 = vmatprep.mubr.f32.mxu0 %v1049
        %1491 = vmatmul.mubr.f32.gmra.mrb[0].mxu0 %v1048
        %v1492 = vpop.f32.mrb[0].mxu0
        %v1493 = vadd.f32 0.0, %v1492
        %v1494 = vpop.f32.mrb[0].mxu0
        %1495 = vmatprep.mubr.f32.mxu0 %v1053
        %1496 = vmatmul.mubr.f32.gmra.mrb[0].mxu0 %v1052
        %v1497 = vpop.f32.mrb[0].mxu0
        %v1498 = vadd.f32 0.0, %v1497
        %v1499 = vpop.f32.mrb[0].mxu0
        %1500 = vmatprep.mubr.f32.mxu0 %v1057
        %1501 = vmatmul.mubr.f32.gmra.mrb[0].mxu0 %v1056
        %v1502 = vpop.f32.mrb[0].mxu0
        %v1503 = vadd.f32 0.0, %v1502
        %v1504 = vpop.f32.mrb[0].mxu0
        %1505 = vmatprep.mubr.f32.mxu0 %v1061
        %1506 = vmatmul.mubr.f32.gmra.mrb[0].mxu0 %v1060
        %v1507 = vpop.f32.mrb[0].mxu0
        %v1508 = vadd.f32 0.0, %v1507
        %v1509 = vpop.f32.mrb[0].mxu0
        %1510 = vmatprep.mubr.f32.mxu0 %v1065
        %1511 = vmatmul.mubr.f32.gmra.mrb[0].mxu0 %v1064
        %v1512 = vpop.f32.mrb[0].mxu0
        %v1513 = vadd.f32 0.0, %v1512
        %v1514 = vpop.f32.mrb[0].mxu0
        %1515 = vmatprep.mubr.f32.mxu0 %v1069
        %1516 = vmatmul.mubr.f32.gmra.mrb[0].mxu0 %v1068
        %v1517 = vpop.f32.mrb[0].mxu0
        %v1518 = vadd.f32 0.0, %v1517
        %v1519 = vpop.f32.mrb[0].mxu0
        %1520 = vmatprep.mubr.f32.mxu0 %v1073
        %1521 = vmatmul.mubr.f32.gmra.mrb[0].mxu0 %v1072
        %v1522 = vpop.f32.mrb[0].mxu0
        %v1523 = vadd.f32 0.0, %v1522
        %v1524 = vpop.f32.mrb[0].mxu0
        %1525 = vmatprep.mubr.f32.mxu0 %v1077
        %1526 = vmatmul.mubr.f32.gmra.mrb[0].mxu0 %v1076
        %v1527 = vpop.f32.mrb[0].mxu0
        %v1528 = vadd.f32 0.0, %v1527
        %v1529 = vpop.f32.mrb[0].mxu0
        %1530 = vmatprep.mubr.f32.mxu0 %v1081
        %1531 = vmatmul.mubr.f32.gmra.mrb[0].mxu0 %v1080
        %v1532 = vpop.f32.mrb[0].mxu0
        %v1533 = vadd.f32 0.0, %v1532
        %v1534 = vpop.f32.mrb[0].mxu0
        %1535 = vmatprep.mubr.f32.mxu0 %v1085
        %1536 = vmatmul.mubr.f32.gmra.mrb[0].mxu0 %v1084
        %v1537 = vpop.f32.mrb[0].mxu0
        %v1538 = vadd.f32 0.0, %v1537
        %v1539 = vpop.f32.mrb[0].mxu0
        %1540 = vmatprep.mubr.f32.mxu0 %v1089
        %1541 = vmatmul.mubr.f32.gmra.mrb[0].mxu0 %v1088
        %v1542 = vpop.f32.mrb[0].mxu0
        %v1543 = vadd.f32 0.0, %v1542
        %v1544 = vpop.f32.mrb[0].mxu0
        %1545 = vmatprep.mubr.f32.mxu0 %v1093
        %1546 = vmatmul.mubr.f32.gmra.mrb[0].mxu0 %v1092
        %v1547 = vpop.f32.mrb[0].mxu0
        %v1548 = vadd.f32 0.0, %v1547
        %v1549 = vpop.f32.mrb[0].mxu0
        %1550 = vmatprep.mubr.f32.mxu0 %v1097
        %1551 = vmatmul.mubr.f32.gmra.mrb[0].mxu0 %v1096
        %v1552 = vpop.f32.mrb[0].mxu0
        %v1553 = vadd.f32 0.0, %v1552
        %v1554 = vpop.f32.mrb[0].mxu0
        %1555 = vmatprep.mubr.f32.mxu0 %v1101
        %1556 = vmatmul.mubr.f32.gmra.mrb[0].mxu0 %v1100
        %v1557 = vpop.f32.mrb[0].mxu0
        %v1558 = vadd.f32 0.0, %v1557
        %v1559 = vpop.f32.mrb[0].mxu0
        %1560 = vmatprep.mubr.f32.mxu0 %v1105
        %1561 = vmatmul.mubr.f32.gmra.mrb[0].mxu0 %v1104
        %v1562 = vpop.f32.mrb[0].mxu0
        %v1563 = vadd.f32 0.0, %v1562
        %v1564 = vpop.f32.mrb[0].mxu0
        %1565 = vmatprep.mubr.f32.mxu0 %v1109
        %1566 = vmatmul.mubr.f32.gmra.mrb[0].mxu0 %v1108
        %v1567 = vpop.f32.mrb[0].mxu0
        %v1568 = vadd.f32 0.0, %v1567
        %v1569 = vpop.f32.mrb[0].mxu0
        %1570 = vmatprep.mubr.f32.mxu0 %v1113
        %1571 = vmatmul.mubr.f32.gmra.mrb[0].mxu0 %v1112
        %v1572 = vpop.f32.mrb[0].mxu0
        %v1573 = vadd.f32 0.0, %v1572
        %v1574 = vpop.f32.mrb[0].mxu0
        %1575 = vmatprep.mubr.f32.mxu0 %v1117
        %1576 = vmatmul.mubr.f32.gmra.mrb[0].mxu0 %v1116
        %v1577 = vpop.f32.mrb[0].mxu0
        %v1578 = vadd.f32 0.0, %v1577
        %v1579 = vpop.f32.mrb[0].mxu0
        %1580 = vmatprep.mubr.f32.mxu0 %v1121
        %1581 = vmatmul.mubr.f32.gmra.mrb[0].mxu0 %v1120
        %v1582 = vpop.f32.mrb[0].mxu0
        %v1583 = vadd.f32 0.0, %v1582
        %v1584 = vpop.f32.mrb[0].mxu0
        %1585 = vmatprep.mubr.f32.mxu0 %v1125
        %1586 = vmatmul.mubr.f32.gmra.mrb[0].mxu0 %v1124
        %v1587 = vpop.f32.mrb[0].mxu0
        %v1588 = vadd.f32 0.0, %v1587
        %v1589 = vpop.f32.mrb[0].mxu0
        %1590 = vmatprep.mubr.f32.mxu0 %v1129
        %1591 = vmatmul.mubr.f32.gmra.mrb[0].mxu0 %v1128
        %v1592 = vpop.f32.mrb[0].mxu0
        %v1593 = vadd.f32 0.0, %v1592
        %v1594 = vpop.f32.mrb[0].mxu0
        %1595 = vmatprep.mubr.f32.mxu0 %v1133
        %1596 = vmatmul.mubr.f32.gmra.mrb[0].mxu0 %v1132
        %v1597 = vpop.f32.mrb[0].mxu0
        %v1598 = vadd.f32 0.0, %v1597
        %v1599 = vpop.f32.mrb[0].mxu0
        %1600 = vdwg.mxu0
        %1601 = vmatprep.subr.mxu0 0.0
        %1602 = vmatpush1.msra.mxu0 %v918
        %1603 = vmatprep.subr.mxu0 0.0
        %1604 = vmatpush1.msra.mxu0 %v919
        %1605 = vmatprep.subr.mxu0 0.0
        %1606 = vmatpush1.msra.mxu0 %v920
        %1607 = vmatprep.subr.mxu0 0.0
        %1608 = vmatpush1.msra.mxu0 %v921
        %1609 = vmatprep.subr.mxu0 0.0
        %1610 = vmatpush1.msra.mxu0 %v922
        %1611 = vmatprep.subr.mxu0 0.0
        %1612 = vmatpush1.msra.mxu0 %v923
        %1613 = vmatprep.subr.mxu0 0.0
        %1614 = vmatpush1.msra.mxu0 %v924
        %1615 = vmatprep.subr.mxu0 0.0
        %1616 = vmatpush1.msra.mxu0 %v925
        %1617 = vmatprep.subr.mxu0 0.0
        %1618 = vmatpush1.msra.mxu0 %v926
        %1619 = vmatprep.subr.mxu0 0.0
        %1620 = vmatpush1.msra.mxu0 %v927
        %1621 = vmatprep.subr.mxu0 0.0
        %1622 = vmatpush1.msra.mxu0 %v928
        %1623 = vmatprep.subr.mxu0 0.0
        %1624 = vmatpush1.msra.mxu0 %v929
        %1625 = vmatprep.subr.mxu0 0.0
        %1626 = vmatpush1.msra.mxu0 %v930
        %1627 = vmatprep.subr.mxu0 0.0
        %1628 = vmatpush1.msra.mxu0 %v931
        %1629 = vmatprep.subr.mxu0 0.0
        %1630 = vmatpush1.msra.mxu0 %v932
        %1631 = vmatprep.subr.mxu0 0.0
        %1632 = vmatpush1.msra.mxu0 %v933
        %1633 = vmatprep.subr.mxu0 0.0
        %1634 = vmatpush1.msra.mxu0 %v934
        %1635 = vmatprep.subr.mxu0 0.0
        %1636 = vmatpush1.msra.mxu0 %v935
        %1637 = vmatprep.subr.mxu0 0.0
        %1638 = vmatpush1.msra.mxu0 0.0
        %1639 = vmatprep.subr.mxu0 0.0
        %1640 = vmatpush1.msra.mxu0 0.0
        %1641 = vmatprep.subr.mxu0 0.0
        %1642 = vmatpush1.msra.mxu0 0.0
        %1643 = vmatprep.subr.mxu0 0.0
        %1644 = vmatpush1.msra.mxu0 0.0
        %1645 = vmatprep.subr.mxu0 0.0
        %1646 = vmatpush1.msra.mxu0 0.0
        %1647 = vmatprep.subr.mxu0 0.0
        %1648 = vmatpush1.msra.mxu0 0.0
        %1649 = vmatprep.subr.mxu0 0.0
        %1650 = vmatpush1.msra.mxu0 0.0
        %1651 = vmatprep.subr.mxu0 0.0
        %1652 = vmatpush1.msra.mxu0 0.0
        %1653 = vmatprep.subr.mxu0 0.0
        %1654 = vmatpush1.msra.mxu0 0.0
        %1655 = vmatprep.subr.mxu0 0.0
        %1656 = vmatpush1.msra.mxu0 0.0
        %1657 = vmatprep.subr.mxu0 0.0
        %1658 = vmatpush1.msra.mxu0 0.0
        %1659 = vmatprep.subr.mxu0 0.0
        %1660 = vmatpush1.msra.mxu0 0.0
        %1661 = vmatprep.subr.mxu0 0.0
        %1662 = vmatpush1.msra.mxu0 0.0
        %1663 = vmatprep.subr.mxu0 0.0
        %1664 = vmatpush1.msra.mxu0 0.0
        %1665 = vmatprep.mubr.f32.mxu0 %v1137
        %1666 = vmatmul.mubr.f32.gmra.mrb[0].mxu0 %v938
        %v1667 = vpop.f32.mrb[0].mxu0
        %v1668 = vadd.f32 %v1353, %v1667
        %v1669 = vpop.f32.mrb[0].mxu0
        %1670 = vmatprep.mubr.f32.mxu0 %v1140
        %1671 = vmatmul.mubr.f32.gmra.mrb[0].mxu0 %v942
        %v1672 = vpop.f32.mrb[0].mxu0
        %v1673 = vadd.f32 %v1358, %v1672
        %v1674 = vpop.f32.mrb[0].mxu0
        %1675 = vmatprep.mubr.f32.mxu0 %v1143
        %1676 = vmatmul.mubr.f32.gmra.mrb[0].mxu0 %v946
        %v1677 = vpop.f32.mrb[0].mxu0
        %v1678 = vadd.f32 %v1363, %v1677
        %v1679 = vpop.f32.mrb[0].mxu0
        %1680 = vmatprep.mubr.f32.mxu0 %v1146
        %1681 = vmatmul.mubr.f32.gmra.mrb[0].mxu0 %v950
        %v1682 = vpop.f32.mrb[0].mxu0
        %v1683 = vadd.f32 %v1368, %v1682
        %v1684 = vpop.f32.mrb[0].mxu0
        %1685 = vmatprep.mubr.f32.mxu0 %v1149
        %1686 = vmatmul.mubr.f32.gmra.mrb[0].mxu0 %v954
        %v1687 = vpop.f32.mrb[0].mxu0
        %v1688 = vadd.f32 %v1373, %v1687
        %v1689 = vpop.f32.mrb[0].mxu0
        %1690 = vmatprep.mubr.f32.mxu0 %v1152
        %1691 = vmatmul.mubr.f32.gmra.mrb[0].mxu0 %v958
        %v1692 = vpop.f32.mrb[0].mxu0
        %v1693 = vadd.f32 %v1378, %v1692
        %v1694 = vpop.f32.mrb[0].mxu0
        %1695 = vmatprep.mubr.f32.mxu0 %v1155
        %1696 = vmatmul.mubr.f32.gmra.mrb[0].mxu0 %v962
        %v1697 = vpop.f32.mrb[0].mxu0
        %v1698 = vadd.f32 %v1383, %v1697
        %v1699 = vpop.f32.mrb[0].mxu0
        %1700 = vmatprep.mubr.f32.mxu0 %v1158
        %1701 = vmatmul.mubr.f32.gmra.mrb[0].mxu0 %v966
        %v1702 = vpop.f32.mrb[0].mxu0
        %v1703 = vadd.f32 %v1388, %v1702
        %v1704 = vpop.f32.mrb[0].mxu0
        %1705 = vmatprep.mubr.f32.mxu0 %v1161
        %1706 = vmatmul.mubr.f32.gmra.mrb[0].mxu0 %v970
        %v1707 = vpop.f32.mrb[0].mxu0
        %v1708 = vadd.f32 %v1393, %v1707
        %v1709 = vpop.f32.mrb[0].mxu0
        %1710 = vmatprep.mubr.f32.mxu0 %v1164
        %1711 = vmatmul.mubr.f32.gmra.mrb[0].mxu0 %v974
        %v1712 = vpop.f32.mrb[0].mxu0
        %v1713 = vadd.f32 %v1398, %v1712
        %v1714 = vpop.f32.mrb[0].mxu0
        %1715 = vmatprep.mubr.f32.mxu0 %v1167
        %1716 = vmatmul.mubr.f32.gmra.mrb[0].mxu0 %v978
        %v1717 = vpop.f32.mrb[0].mxu0
        %v1718 = vadd.f32 %v1403, %v1717
        %v1719 = vpop.f32.mrb[0].mxu0
        %1720 = vmatprep.mubr.f32.mxu0 %v1170
        %1721 = vmatmul.mubr.f32.gmra.mrb[0].mxu0 %v982
        %v1722 = vpop.f32.mrb[0].mxu0
        %v1723 = vadd.f32 %v1408, %v1722
        %v1724 = vpop.f32.mrb[0].mxu0
        %1725 = vmatprep.mubr.f32.mxu0 %v1173
        %1726 = vmatmul.mubr.f32.gmra.mrb[0].mxu0 %v986
        %v1727 = vpop.f32.mrb[0].mxu0
        %v1728 = vadd.f32 %v1413, %v1727
        %v1729 = vpop.f32.mrb[0].mxu0
        %1730 = vmatprep.mubr.f32.mxu0 %v1176
        %1731 = vmatmul.mubr.f32.gmra.mrb[0].mxu0 %v990
        %v1732 = vpop.f32.mrb[0].mxu0
        %v1733 = vadd.f32 %v1418, %v1732
        %v1734 = vpop.f32.mrb[0].mxu0
        %1735 = vmatprep.mubr.f32.mxu0 %v1179
        %1736 = vmatmul.mubr.f32.gmra.mrb[0].mxu0 %v994
        %v1737 = vpop.f32.mrb[0].mxu0
        %v1738 = vadd.f32 %v1423, %v1737
        %v1739 = vpop.f32.mrb[0].mxu0
        %1740 = vmatprep.mubr.f32.mxu0 %v1182
        %1741 = vmatmul.mubr.f32.gmra.mrb[0].mxu0 %v998
        %v1742 = vpop.f32.mrb[0].mxu0
        %v1743 = vadd.f32 %v1428, %v1742
        %v1744 = vpop.f32.mrb[0].mxu0
        %1745 = vmatprep.mubr.f32.mxu0 %v1185
        %1746 = vmatmul.mubr.f32.gmra.mrb[0].mxu0 %v1002
        %v1747 = vpop.f32.mrb[0].mxu0
        %v1748 = vadd.f32 %v1433, %v1747
        %v1749 = vpop.f32.mrb[0].mxu0
        %1750 = vmatprep.mubr.f32.mxu0 %v1188
        %1751 = vmatmul.mubr.f32.gmra.mrb[0].mxu0 %v1006
        %v1752 = vpop.f32.mrb[0].mxu0
        %v1753 = vadd.f32 %v1438, %v1752
        %v1754 = vpop.f32.mrb[0].mxu0
        %1755 = vmatprep.mubr.f32.mxu0 %v1191
        %1756 = vmatmul.mubr.f32.gmra.mrb[0].mxu0 %v1010
        %v1757 = vpop.f32.mrb[0].mxu0
        %v1758 = vadd.f32 %v1443, %v1757
        %v1759 = vpop.f32.mrb[0].mxu0
        %1760 = vmatprep.mubr.f32.mxu0 %v1194
        %1761 = vmatmul.mubr.f32.gmra.mrb[0].mxu0 %v1014
        %v1762 = vpop.f32.mrb[0].mxu0
        %v1763 = vadd.f32 %v1448, %v1762
        %v1764 = vpop.f32.mrb[0].mxu0
        %1765 = vmatprep.mubr.f32.mxu0 %v1197
        %1766 = vmatmul.mubr.f32.gmra.mrb[0].mxu0 %v1018
        %v1767 = vpop.f32.mrb[0].mxu0
        %v1768 = vadd.f32 %v1453, %v1767
        %v1769 = vpop.f32.mrb[0].mxu0
        %1770 = vmatprep.mubr.f32.mxu0 %v1200
        %1771 = vmatmul.mubr.f32.gmra.mrb[0].mxu0 %v1022
        %v1772 = vpop.f32.mrb[0].mxu0
        %v1773 = vadd.f32 %v1458, %v1772
        %v1774 = vpop.f32.mrb[0].mxu0
        %1775 = vmatprep.mubr.f32.mxu0 %v1203
        %1776 = vmatmul.mubr.f32.gmra.mrb[0].mxu0 %v1026
        %v1777 = vpop.f32.mrb[0].mxu0
        %v1778 = vadd.f32 %v1463, %v1777
        %v1779 = vpop.f32.mrb[0].mxu0
        %1780 = vmatprep.mubr.f32.mxu0 %v1206
        %1781 = vmatmul.mubr.f32.gmra.mrb[0].mxu0 %v1030
        %v1782 = vpop.f32.mrb[0].mxu0
        %v1783 = vadd.f32 %v1468, %v1782
        %v1784 = vpop.f32.mrb[0].mxu0
        %1785 = vmatprep.mubr.f32.mxu0 %v1209
        %1786 = vmatmul.mubr.f32.gmra.mrb[0].mxu0 %v1034
        %v1787 = vpop.f32.mrb[0].mxu0
        %v1788 = vadd.f32 %v1473, %v1787
        %v1789 = vpop.f32.mrb[0].mxu0
        %1790 = vmatprep.mubr.f32.mxu0 %v1212
        %1791 = vmatmul.mubr.f32.gmra.mrb[0].mxu0 %v1038
        %v1792 = vpop.f32.mrb[0].mxu0
        %v1793 = vadd.f32 %v1478, %v1792
        %v1794 = vpop.f32.mrb[0].mxu0
        %1795 = vmatprep.mubr.f32.mxu0 %v1215
        %1796 = vmatmul.mubr.f32.gmra.mrb[0].mxu0 %v1042
        %v1797 = vpop.f32.mrb[0].mxu0
        %v1798 = vadd.f32 %v1483, %v1797
        %v1799 = vpop.f32.mrb[0].mxu0
        %1800 = vmatprep.mubr.f32.mxu0 %v1218
        %1801 = vmatmul.mubr.f32.gmra.mrb[0].mxu0 %v1046
        %v1802 = vpop.f32.mrb[0].mxu0
        %v1803 = vadd.f32 %v1488, %v1802
        %v1804 = vpop.f32.mrb[0].mxu0
        %1805 = vmatprep.mubr.f32.mxu0 %v1221
        %1806 = vmatmul.mubr.f32.gmra.mrb[0].mxu0 %v1050
        %v1807 = vpop.f32.mrb[0].mxu0
        %v1808 = vadd.f32 %v1493, %v1807
        %v1809 = vpop.f32.mrb[0].mxu0
        %1810 = vmatprep.mubr.f32.mxu0 %v1224
        %1811 = vmatmul.mubr.f32.gmra.mrb[0].mxu0 %v1054
        %v1812 = vpop.f32.mrb[0].mxu0
        %v1813 = vadd.f32 %v1498, %v1812
        %v1814 = vpop.f32.mrb[0].mxu0
        %1815 = vmatprep.mubr.f32.mxu0 %v1227
        %1816 = vmatmul.mubr.f32.gmra.mrb[0].mxu0 %v1058
        %v1817 = vpop.f32.mrb[0].mxu0
        %v1818 = vadd.f32 %v1503, %v1817
        %v1819 = vpop.f32.mrb[0].mxu0
        %1820 = vmatprep.mubr.f32.mxu0 %v1230
        %1821 = vmatmul.mubr.f32.gmra.mrb[0].mxu0 %v1062
        %v1822 = vpop.f32.mrb[0].mxu0
        %v1823 = vadd.f32 %v1508, %v1822
        %v1824 = vpop.f32.mrb[0].mxu0
        %1825 = vmatprep.mubr.f32.mxu0 %v1233
        %1826 = vmatmul.mubr.f32.gmra.mrb[0].mxu0 %v1066
        %v1827 = vpop.f32.mrb[0].mxu0
        %v1828 = vadd.f32 %v1513, %v1827
        %v1829 = vpop.f32.mrb[0].mxu0
        %1830 = vmatprep.mubr.f32.mxu0 %v1236
        %1831 = vmatmul.mubr.f32.gmra.mrb[0].mxu0 %v1070
        %v1832 = vpop.f32.mrb[0].mxu0
        %v1833 = vadd.f32 %v1518, %v1832
        %v1834 = vpop.f32.mrb[0].mxu0
        %1835 = vmatprep.mubr.f32.mxu0 %v1239
        %1836 = vmatmul.mubr.f32.gmra.mrb[0].mxu0 %v1074
        %v1837 = vpop.f32.mrb[0].mxu0
        %v1838 = vadd.f32 %v1523, %v1837
        %v1839 = vpop.f32.mrb[0].mxu0
        %1840 = vmatprep.mubr.f32.mxu0 %v1242
        %1841 = vmatmul.mubr.f32.gmra.mrb[0].mxu0 %v1078
        %v1842 = vpop.f32.mrb[0].mxu0
        %v1843 = vadd.f32 %v1528, %v1842
        %v1844 = vpop.f32.mrb[0].mxu0
        %1845 = vmatprep.mubr.f32.mxu0 %v1245
        %1846 = vmatmul.mubr.f32.gmra.mrb[0].mxu0 %v1082
        %v1847 = vpop.f32.mrb[0].mxu0
        %v1848 = vadd.f32 %v1533, %v1847
        %v1849 = vpop.f32.mrb[0].mxu0
        %1850 = vmatprep.mubr.f32.mxu0 %v1248
        %1851 = vmatmul.mubr.f32.gmra.mrb[0].mxu0 %v1086
        %v1852 = vpop.f32.mrb[0].mxu0
        %v1853 = vadd.f32 %v1538, %v1852
        %v1854 = vpop.f32.mrb[0].mxu0
        %1855 = vmatprep.mubr.f32.mxu0 %v1251
        %1856 = vmatmul.mubr.f32.gmra.mrb[0].mxu0 %v1090
        %v1857 = vpop.f32.mrb[0].mxu0
        %v1858 = vadd.f32 %v1543, %v1857
        %v1859 = vpop.f32.mrb[0].mxu0
        %1860 = vmatprep.mubr.f32.mxu0 %v1254
        %1861 = vmatmul.mubr.f32.gmra.mrb[0].mxu0 %v1094
        %v1862 = vpop.f32.mrb[0].mxu0
        %v1863 = vadd.f32 %v1548, %v1862
        %v1864 = vpop.f32.mrb[0].mxu0
        %1865 = vmatprep.mubr.f32.mxu0 %v1257
        %1866 = vmatmul.mubr.f32.gmra.mrb[0].mxu0 %v1098
        %v1867 = vpop.f32.mrb[0].mxu0
        %v1868 = vadd.f32 %v1553, %v1867
        %v1869 = vpop.f32.mrb[0].mxu0
        %1870 = vmatprep.mubr.f32.mxu0 %v1260
        %1871 = vmatmul.mubr.f32.gmra.mrb[0].mxu0 %v1102
        %v1872 = vpop.f32.mrb[0].mxu0
        %v1873 = vadd.f32 %v1558, %v1872
        %v1874 = vpop.f32.mrb[0].mxu0
        %1875 = vmatprep.mubr.f32.mxu0 %v1263
        %1876 = vmatmul.mubr.f32.gmra.mrb[0].mxu0 %v1106
        %v1877 = vpop.f32.mrb[0].mxu0
        %v1878 = vadd.f32 %v1563, %v1877
        %v1879 = vpop.f32.mrb[0].mxu0
        %1880 = vmatprep.mubr.f32.mxu0 %v1266
        %1881 = vmatmul.mubr.f32.gmra.mrb[0].mxu0 %v1110
        %v1882 = vpop.f32.mrb[0].mxu0
        %v1883 = vadd.f32 %v1568, %v1882
        %v1884 = vpop.f32.mrb[0].mxu0
        %1885 = vmatprep.mubr.f32.mxu0 %v1269
        %1886 = vmatmul.mubr.f32.gmra.mrb[0].mxu0 %v1114
        %v1887 = vpop.f32.mrb[0].mxu0
        %v1888 = vadd.f32 %v1573, %v1887
        %v1889 = vpop.f32.mrb[0].mxu0
        %1890 = vmatprep.mubr.f32.mxu0 %v1272
        %1891 = vmatmul.mubr.f32.gmra.mrb[0].mxu0 %v1118
        %v1892 = vpop.f32.mrb[0].mxu0
        %v1893 = vadd.f32 %v1578, %v1892
        %v1894 = vpop.f32.mrb[0].mxu0
        %1895 = vmatprep.mubr.f32.mxu0 %v1275
        %1896 = vmatmul.mubr.f32.gmra.mrb[0].mxu0 %v1122
        %v1897 = vpop.f32.mrb[0].mxu0
        %v1898 = vadd.f32 %v1583, %v1897
        %v1899 = vpop.f32.mrb[0].mxu0
        %1900 = vmatprep.mubr.f32.mxu0 %v1278
        %1901 = vmatmul.mubr.f32.gmra.mrb[0].mxu0 %v1126
        %v1902 = vpop.f32.mrb[0].mxu0
        %v1903 = vadd.f32 %v1588, %v1902
        %v1904 = vpop.f32.mrb[0].mxu0
        %1905 = vmatprep.mubr.f32.mxu0 %v1281
        %1906 = vmatmul.mubr.f32.gmra.mrb[0].mxu0 %v1130
        %v1907 = vpop.f32.mrb[0].mxu0
        %v1908 = vadd.f32 %v1593, %v1907
        %v1909 = vpop.f32.mrb[0].mxu0
        %1910 = vmatprep.mubr.f32.mxu0 %v1284
        %1911 = vmatmul.mubr.f32.gmra.mrb[0].mxu0 %v1134
        %v1912 = vpop.f32.mrb[0].mxu0
        %v1913 = vadd.f32 %v1598, %v1912
        %v1914 = vpop.f32.mrb[0].mxu0
        %1915 = vdwg.mxu0
        %v1916 = vld [vmem:[#allocation5] sm:$0xf]
        %1918 = vset.pattern.permute.xlu0 0
        %1919 = vperm.xlu0 %1918, %v1668
        %v1920 = vpop.permute.xlu0 %1919
        %1923 = vset.pattern.permute.xlu0 0
        %1924 = vperm.xlu0 %1923, %v1673
        %v1925 = vpop.permute.xlu0 %1924
        %1928 = vset.pattern.permute.xlu0 0
        %1929 = vperm.xlu0 %1928, %v1678
        %v1930 = vpop.permute.xlu0 %1929
        %1933 = vset.pattern.permute.xlu0 0
        %1934 = vperm.xlu0 %1933, %v1683
        %v1935 = vpop.permute.xlu0 %1934
        %1938 = vset.pattern.permute.xlu0 0
        %1939 = vperm.xlu0 %1938, %v1688
        %v1940 = vpop.permute.xlu0 %1939
        %1943 = vset.pattern.permute.xlu0 0
        %1944 = vperm.xlu0 %1943, %v1693
        %v1945 = vpop.permute.xlu0 %1944
        %1948 = vset.pattern.permute.xlu0 0
        %1949 = vperm.xlu0 %1948, %v1698
        %v1950 = vpop.permute.xlu0 %1949
        %1953 = vset.pattern.permute.xlu0 0
        %1954 = vperm.xlu0 %1953, %v1703
        %v1955 = vpop.permute.xlu0 %1954
        %1958 = vset.pattern.permute.xlu0 0
        %1959 = vperm.xlu0 %1958, %v1708
        %v1960 = vpop.permute.xlu0 %1959
        %1963 = vset.pattern.permute.xlu0 0
        %1964 = vperm.xlu0 %1963, %v1713
        %v1965 = vpop.permute.xlu0 %1964
        %1968 = vset.pattern.permute.xlu0 0
        %1969 = vperm.xlu0 %1968, %v1718
        %v1970 = vpop.permute.xlu0 %1969
        %1973 = vset.pattern.permute.xlu0 0
        %1974 = vperm.xlu0 %1973, %v1723
        %v1975 = vpop.permute.xlu0 %1974
        %1978 = vset.pattern.permute.xlu0 0
        %1979 = vperm.xlu0 %1978, %v1728
        %v1980 = vpop.permute.xlu0 %1979
        %1983 = vset.pattern.permute.xlu0 0
        %1984 = vperm.xlu0 %1983, %v1733
        %v1985 = vpop.permute.xlu0 %1984
        %1988 = vset.pattern.permute.xlu0 0
        %1989 = vperm.xlu0 %1988, %v1738
        %v1990 = vpop.permute.xlu0 %1989
        %1993 = vset.pattern.permute.xlu0 0
        %1994 = vperm.xlu0 %1993, %v1743
        %v1995 = vpop.permute.xlu0 %1994
        %1998 = vset.pattern.permute.xlu0 0
        %1999 = vperm.xlu0 %1998, %v1748
        %v2000 = vpop.permute.xlu0 %1999
        %2003 = vset.pattern.permute.xlu0 0
        %2004 = vperm.xlu0 %2003, %v1753
        %v2005 = vpop.permute.xlu0 %2004
        %2008 = vset.pattern.permute.xlu0 0
        %2009 = vperm.xlu0 %2008, %v1758
        %v2010 = vpop.permute.xlu0 %2009
        %2013 = vset.pattern.permute.xlu0 0
        %2014 = vperm.xlu0 %2013, %v1763
        %v2015 = vpop.permute.xlu0 %2014
        %2018 = vset.pattern.permute.xlu0 0
        %2019 = vperm.xlu0 %2018, %v1768
        %v2020 = vpop.permute.xlu0 %2019
        %2023 = vset.pattern.permute.xlu0 0
        %2024 = vperm.xlu0 %2023, %v1773
        %v2025 = vpop.permute.xlu0 %2024
        %2028 = vset.pattern.permute.xlu0 0
        %2029 = vperm.xlu0 %2028, %v1778
        %v2030 = vpop.permute.xlu0 %2029
        %2033 = vset.pattern.permute.xlu0 0
        %2034 = vperm.xlu0 %2033, %v1783
        %v2035 = vpop.permute.xlu0 %2034
        %2038 = vset.pattern.permute.xlu0 0
        %2039 = vperm.xlu0 %2038, %v1788
        %v2040 = vpop.permute.xlu0 %2039
        %2043 = vset.pattern.permute.xlu0 0
        %2044 = vperm.xlu0 %2043, %v1793
        %v2045 = vpop.permute.xlu0 %2044
        %2048 = vset.pattern.permute.xlu0 0
        %2049 = vperm.xlu0 %2048, %v1798
        %v2050 = vpop.permute.xlu0 %2049
        %2053 = vset.pattern.permute.xlu0 0
        %2054 = vperm.xlu0 %2053, %v1803
        %v2055 = vpop.permute.xlu0 %2054
        %2058 = vset.pattern.permute.xlu0 0
        %2059 = vperm.xlu0 %2058, %v1808
        %v2060 = vpop.permute.xlu0 %2059
        %2063 = vset.pattern.permute.xlu0 0
        %2064 = vperm.xlu0 %2063, %v1813
        %v2065 = vpop.permute.xlu0 %2064
        %2068 = vset.pattern.permute.xlu0 0
        %2069 = vperm.xlu0 %2068, %v1818
        %v2070 = vpop.permute.xlu0 %2069
        %2073 = vset.pattern.permute.xlu0 0
        %2074 = vperm.xlu0 %2073, %v1823
        %v2075 = vpop.permute.xlu0 %2074
        %2078 = vset.pattern.permute.xlu0 0
        %2079 = vperm.xlu0 %2078, %v1828
        %v2080 = vpop.permute.xlu0 %2079
        %2083 = vset.pattern.permute.xlu0 0
        %2084 = vperm.xlu0 %2083, %v1833
        %v2085 = vpop.permute.xlu0 %2084
        %2088 = vset.pattern.permute.xlu0 0
        %2089 = vperm.xlu0 %2088, %v1838
        %v2090 = vpop.permute.xlu0 %2089
        %2093 = vset.pattern.permute.xlu0 0
        %2094 = vperm.xlu0 %2093, %v1843
        %v2095 = vpop.permute.xlu0 %2094
        %2098 = vset.pattern.permute.xlu0 0
        %2099 = vperm.xlu0 %2098, %v1848
        %v2100 = vpop.permute.xlu0 %2099
        %2103 = vset.pattern.permute.xlu0 0
        %2104 = vperm.xlu0 %2103, %v1853
        %v2105 = vpop.permute.xlu0 %2104
        %2108 = vset.pattern.permute.xlu0 0
        %2109 = vperm.xlu0 %2108, %v1858
        %v2110 = vpop.permute.xlu0 %2109
        %2113 = vset.pattern.permute.xlu0 0
        %2114 = vperm.xlu0 %2113, %v1863
        %v2115 = vpop.permute.xlu0 %2114
        %2118 = vset.pattern.permute.xlu0 0
        %2119 = vperm.xlu0 %2118, %v1868
        %v2120 = vpop.permute.xlu0 %2119
        %2123 = vset.pattern.permute.xlu0 0
        %2124 = vperm.xlu0 %2123, %v1873
        %v2125 = vpop.permute.xlu0 %2124
        %2128 = vset.pattern.permute.xlu0 0
        %2129 = vperm.xlu0 %2128, %v1878
        %v2130 = vpop.permute.xlu0 %2129
        %2133 = vset.pattern.permute.xlu0 0
        %2134 = vperm.xlu0 %2133, %v1883
        %v2135 = vpop.permute.xlu0 %2134
        %2138 = vset.pattern.permute.xlu0 0
        %2139 = vperm.xlu0 %2138, %v1888
        %v2140 = vpop.permute.xlu0 %2139
        %2143 = vset.pattern.permute.xlu0 0
        %2144 = vperm.xlu0 %2143, %v1893
        %v2145 = vpop.permute.xlu0 %2144
        %2148 = vset.pattern.permute.xlu0 0
        %2149 = vperm.xlu0 %2148, %v1898
        %v2150 = vpop.permute.xlu0 %2149
        %2153 = vset.pattern.permute.xlu0 0
        %2154 = vperm.xlu0 %2153, %v1903
        %v2155 = vpop.permute.xlu0 %2154
        %2158 = vset.pattern.permute.xlu0 0
        %2159 = vperm.xlu0 %2158, %v1908
        %v2160 = vpop.permute.xlu0 %2159
        %2163 = vset.pattern.permute.xlu0 0
        %2164 = vperm.xlu0 %2163, %v1913
        %v2165 = vpop.permute.xlu0 %2164
        %v2168 = vlaneseq
        %v2169 = vshrl.u32 %v2168, 7
        %v2170 = vsub.s32 0, %v2169
        %v2171 = vrot.slane %v1916, %v2170
        %v2172 = vlaneseq
        %v2173 = vshrl.u32 %v2172, 7
        %v2174 = vsub.s32 1, %v2173
        %v2175 = vrot.slane %v1916, %v2174
        %v2176 = vlaneseq
        %v2177 = vshrl.u32 %v2176, 7
        %v2178 = vsub.s32 2, %v2177
        %v2179 = vrot.slane %v1916, %v2178
        %v2180 = vlaneseq
        %v2181 = vshrl.u32 %v2180, 7
        %v2182 = vsub.s32 3, %v2181
        %v2183 = vrot.slane %v1916, %v2182
        %v2188 = vmul.f32 %v1920, %v2171
        %v2189 = vmul.f32 %v1920, %v2175
        %v2190 = vmul.f32 %v1920, %v2179
        %v2191 = vmul.f32 %v1920, %v2183
        %v2192 = vmul.f32 %v1925, %v2171
        %v2193 = vmul.f32 %v1925, %v2175
        %v2194 = vmul.f32 %v1925, %v2179
        %v2195 = vmul.f32 %v1925, %v2183
        %v2196 = vmul.f32 %v1930, %v2171
        %v2197 = vmul.f32 %v1930, %v2175
        %v2198 = vmul.f32 %v1930, %v2179
        %v2199 = vmul.f32 %v1930, %v2183
        %v2200 = vmul.f32 %v1935, %v2171
        %v2201 = vmul.f32 %v1935, %v2175
        %v2202 = vmul.f32 %v1935, %v2179
        %v2203 = vmul.f32 %v1935, %v2183
        %v2204 = vmul.f32 %v1940, %v2171
        %v2205 = vmul.f32 %v1940, %v2175
        %v2206 = vmul.f32 %v1940, %v2179
        %v2207 = vmul.f32 %v1940, %v2183
        %v2208 = vmul.f32 %v1945, %v2171
        %v2209 = vmul.f32 %v1945, %v2175
        %v2210 = vmul.f32 %v1945, %v2179
        %v2211 = vmul.f32 %v1945, %v2183
        %v2212 = vmul.f32 %v1950, %v2171
        %v2213 = vmul.f32 %v1950, %v2175
        %v2214 = vmul.f32 %v1950, %v2179
        %v2215 = vmul.f32 %v1950, %v2183
        %v2216 = vmul.f32 %v1955, %v2171
        %v2217 = vmul.f32 %v1955, %v2175
        %v2218 = vmul.f32 %v1955, %v2179
        %v2219 = vmul.f32 %v1955, %v2183
        %v2220 = vmul.f32 %v1960, %v2171
        %v2221 = vmul.f32 %v1960, %v2175
        %v2222 = vmul.f32 %v1960, %v2179
        %v2223 = vmul.f32 %v1960, %v2183
        %v2224 = vmul.f32 %v1965, %v2171
        %v2225 = vmul.f32 %v1965, %v2175
        %v2226 = vmul.f32 %v1965, %v2179
        %v2227 = vmul.f32 %v1965, %v2183
        %v2228 = vmul.f32 %v1970, %v2171
        %v2229 = vmul.f32 %v1970, %v2175
        %v2230 = vmul.f32 %v1970, %v2179
        %v2231 = vmul.f32 %v1970, %v2183
        %v2232 = vmul.f32 %v1975, %v2171
        %v2233 = vmul.f32 %v1975, %v2175
        %v2234 = vmul.f32 %v1975, %v2179
        %v2235 = vmul.f32 %v1975, %v2183
        %v2236 = vmul.f32 %v1980, %v2171
        %v2237 = vmul.f32 %v1980, %v2175
        %v2238 = vmul.f32 %v1980, %v2179
        %v2239 = vmul.f32 %v1980, %v2183
        %v2240 = vmul.f32 %v1985, %v2171
        %v2241 = vmul.f32 %v1985, %v2175
        %v2242 = vmul.f32 %v1985, %v2179
        %v2243 = vmul.f32 %v1985, %v2183
        %v2244 = vmul.f32 %v1990, %v2171
        %v2245 = vmul.f32 %v1990, %v2175
        %v2246 = vmul.f32 %v1990, %v2179
        %v2247 = vmul.f32 %v1990, %v2183
        %v2248 = vmul.f32 %v1995, %v2171
        %v2249 = vmul.f32 %v1995, %v2175
        %v2250 = vmul.f32 %v1995, %v2179
        %v2251 = vmul.f32 %v1995, %v2183
        %v2252 = vmul.f32 %v2000, %v2171
        %v2253 = vmul.f32 %v2000, %v2175
        %v2254 = vmul.f32 %v2000, %v2179
        %v2255 = vmul.f32 %v2000, %v2183
        %v2256 = vmul.f32 %v2005, %v2171
        %v2257 = vmul.f32 %v2005, %v2175
        %v2258 = vmul.f32 %v2005, %v2179
        %v2259 = vmul.f32 %v2005, %v2183
        %v2260 = vmul.f32 %v2010, %v2171
        %v2261 = vmul.f32 %v2010, %v2175
        %v2262 = vmul.f32 %v2010, %v2179
        %v2263 = vmul.f32 %v2010, %v2183
        %v2264 = vmul.f32 %v2015, %v2171
        %v2265 = vmul.f32 %v2015, %v2175
        %v2266 = vmul.f32 %v2015, %v2179
        %v2267 = vmul.f32 %v2015, %v2183
        %v2268 = vmul.f32 %v2020, %v2171
        %v2269 = vmul.f32 %v2020, %v2175
        %v2270 = vmul.f32 %v2020, %v2179
        %v2271 = vmul.f32 %v2020, %v2183
        %v2272 = vmul.f32 %v2025, %v2171
        %v2273 = vmul.f32 %v2025, %v2175
        %v2274 = vmul.f32 %v2025, %v2179
        %v2275 = vmul.f32 %v2025, %v2183
        %v2276 = vmul.f32 %v2030, %v2171
        %v2277 = vmul.f32 %v2030, %v2175
        %v2278 = vmul.f32 %v2030, %v2179
        %v2279 = vmul.f32 %v2030, %v2183
        %v2280 = vmul.f32 %v2035, %v2171
        %v2281 = vmul.f32 %v2035, %v2175
        %v2282 = vmul.f32 %v2035, %v2179
        %v2283 = vmul.f32 %v2035, %v2183
        %v2284 = vmul.f32 %v2040, %v2171
        %v2285 = vmul.f32 %v2040, %v2175
        %v2286 = vmul.f32 %v2040, %v2179
        %v2287 = vmul.f32 %v2040, %v2183
        %v2288 = vmul.f32 %v2045, %v2171
        %v2289 = vmul.f32 %v2045, %v2175
        %v2290 = vmul.f32 %v2045, %v2179
        %v2291 = vmul.f32 %v2045, %v2183
        %v2292 = vmul.f32 %v2050, %v2171
        %v2293 = vmul.f32 %v2050, %v2175
        %v2294 = vmul.f32 %v2050, %v2179
        %v2295 = vmul.f32 %v2050, %v2183
        %v2296 = vmul.f32 %v2055, %v2171
        %v2297 = vmul.f32 %v2055, %v2175
        %v2298 = vmul.f32 %v2055, %v2179
        %v2299 = vmul.f32 %v2055, %v2183
        %v2300 = vmul.f32 %v2060, %v2171
        %v2301 = vmul.f32 %v2060, %v2175
        %v2302 = vmul.f32 %v2060, %v2179
        %v2303 = vmul.f32 %v2060, %v2183
        %v2304 = vmul.f32 %v2065, %v2171
        %v2305 = vmul.f32 %v2065, %v2175
        %v2306 = vmul.f32 %v2065, %v2179
        %v2307 = vmul.f32 %v2065, %v2183
        %v2308 = vmul.f32 %v2070, %v2171
        %v2309 = vmul.f32 %v2070, %v2175
        %v2310 = vmul.f32 %v2070, %v2179
        %v2311 = vmul.f32 %v2070, %v2183
        %v2312 = vmul.f32 %v2075, %v2171
        %v2313 = vmul.f32 %v2075, %v2175
        %v2314 = vmul.f32 %v2075, %v2179
        %v2315 = vmul.f32 %v2075, %v2183
        %v2316 = vmul.f32 %v2080, %v2171
        %v2317 = vmul.f32 %v2080, %v2175
        %v2318 = vmul.f32 %v2080, %v2179
        %v2319 = vmul.f32 %v2080, %v2183
        %v2320 = vmul.f32 %v2085, %v2171
        %v2321 = vmul.f32 %v2085, %v2175
        %v2322 = vmul.f32 %v2085, %v2179
        %v2323 = vmul.f32 %v2085, %v2183
        %v2324 = vmul.f32 %v2090, %v2171
        %v2325 = vmul.f32 %v2090, %v2175
        %v2326 = vmul.f32 %v2090, %v2179
        %v2327 = vmul.f32 %v2090, %v2183
        %v2328 = vmul.f32 %v2095, %v2171
        %v2329 = vmul.f32 %v2095, %v2175
        %v2330 = vmul.f32 %v2095, %v2179
        %v2331 = vmul.f32 %v2095, %v2183
        %v2332 = vmul.f32 %v2100, %v2171
        %v2333 = vmul.f32 %v2100, %v2175
        %v2334 = vmul.f32 %v2100, %v2179
        %v2335 = vmul.f32 %v2100, %v2183
        %v2336 = vmul.f32 %v2105, %v2171
        %v2337 = vmul.f32 %v2105, %v2175
        %v2338 = vmul.f32 %v2105, %v2179
        %v2339 = vmul.f32 %v2105, %v2183
        %v2340 = vmul.f32 %v2110, %v2171
        %v2341 = vmul.f32 %v2110, %v2175
        %v2342 = vmul.f32 %v2110, %v2179
        %v2343 = vmul.f32 %v2110, %v2183
        %v2344 = vmul.f32 %v2115, %v2171
        %v2345 = vmul.f32 %v2115, %v2175
        %v2346 = vmul.f32 %v2115, %v2179
        %v2347 = vmul.f32 %v2115, %v2183
        %v2348 = vmul.f32 %v2120, %v2171
        %v2349 = vmul.f32 %v2120, %v2175
        %v2350 = vmul.f32 %v2120, %v2179
        %v2351 = vmul.f32 %v2120, %v2183
        %v2352 = vmul.f32 %v2125, %v2171
        %v2353 = vmul.f32 %v2125, %v2175
        %v2354 = vmul.f32 %v2125, %v2179
        %v2355 = vmul.f32 %v2125, %v2183
        %v2356 = vmul.f32 %v2130, %v2171
        %v2357 = vmul.f32 %v2130, %v2175
        %v2358 = vmul.f32 %v2130, %v2179
        %v2359 = vmul.f32 %v2130, %v2183
        %v2360 = vmul.f32 %v2135, %v2171
        %v2361 = vmul.f32 %v2135, %v2175
        %v2362 = vmul.f32 %v2135, %v2179
        %v2363 = vmul.f32 %v2135, %v2183
        %v2364 = vmul.f32 %v2140, %v2171
        %v2365 = vmul.f32 %v2140, %v2175
        %v2366 = vmul.f32 %v2140, %v2179
        %v2367 = vmul.f32 %v2140, %v2183
        %v2368 = vmul.f32 %v2145, %v2171
        %v2369 = vmul.f32 %v2145, %v2175
        %v2370 = vmul.f32 %v2145, %v2179
        %v2371 = vmul.f32 %v2145, %v2183
        %v2372 = vmul.f32 %v2150, %v2171
        %v2373 = vmul.f32 %v2150, %v2175
        %v2374 = vmul.f32 %v2150, %v2179
        %v2375 = vmul.f32 %v2150, %v2183
        %v2376 = vmul.f32 %v2155, %v2171
        %v2377 = vmul.f32 %v2155, %v2175
        %v2378 = vmul.f32 %v2155, %v2179
        %v2379 = vmul.f32 %v2155, %v2183
        %v2380 = vmul.f32 %v2160, %v2171
        %v2381 = vmul.f32 %v2160, %v2175
        %v2382 = vmul.f32 %v2160, %v2179
        %v2383 = vmul.f32 %v2160, %v2183
        %v2384 = vmul.f32 %v2165, %v2171
        %v2385 = vmul.f32 %v2165, %v2175
        %v2386 = vmul.f32 %v2165, %v2179
        %v2387 = vmul.f32 %v2165, %v2183
        %v2388 = vld [vmem:[#allocation7] sm:$0xf]
        %v2390 = vlaneseq
        %v2391 = vshrl.u32 %v2390, 7
        %v2392 = vsub.s32 0, %v2391
        %v2393 = vrot.slane %v2388, %v2392
        %v2394 = vlaneseq
        %v2395 = vshrl.u32 %v2394, 7
        %v2396 = vsub.s32 1, %v2395
        %v2397 = vrot.slane %v2388, %v2396
        %v2398 = vlaneseq
        %v2399 = vshrl.u32 %v2398, 7
        %v2400 = vsub.s32 2, %v2399
        %v2401 = vrot.slane %v2388, %v2400
        %v2402 = vlaneseq
        %v2403 = vshrl.u32 %v2402, 7
        %v2404 = vsub.s32 3, %v2403
        %v2405 = vrot.slane %v2388, %v2404
        %v2410 = vadd.f32 %v2188, %v2393
        %v2411 = vadd.f32 %v2189, %v2397
        %v2412 = vadd.f32 %v2190, %v2401
        %v2413 = vadd.f32 %v2191, %v2405
        %v2414 = vadd.f32 %v2192, %v2393
        %v2415 = vadd.f32 %v2193, %v2397
        %v2416 = vadd.f32 %v2194, %v2401
        %v2417 = vadd.f32 %v2195, %v2405
        %v2418 = vadd.f32 %v2196, %v2393
        %v2419 = vadd.f32 %v2197, %v2397
        %v2420 = vadd.f32 %v2198, %v2401
        %v2421 = vadd.f32 %v2199, %v2405
        %v2422 = vadd.f32 %v2200, %v2393
        %v2423 = vadd.f32 %v2201, %v2397
        %v2424 = vadd.f32 %v2202, %v2401
        %v2425 = vadd.f32 %v2203, %v2405
        %v2426 = vadd.f32 %v2204, %v2393
        %v2427 = vadd.f32 %v2205, %v2397
        %v2428 = vadd.f32 %v2206, %v2401
        %v2429 = vadd.f32 %v2207, %v2405
        %v2430 = vadd.f32 %v2208, %v2393
        %v2431 = vadd.f32 %v2209, %v2397
        %v2432 = vadd.f32 %v2210, %v2401
        %v2433 = vadd.f32 %v2211, %v2405
        %v2434 = vadd.f32 %v2212, %v2393
        %v2435 = vadd.f32 %v2213, %v2397
        %v2436 = vadd.f32 %v2214, %v2401
        %v2437 = vadd.f32 %v2215, %v2405
        %v2438 = vadd.f32 %v2216, %v2393
        %v2439 = vadd.f32 %v2217, %v2397
        %v2440 = vadd.f32 %v2218, %v2401
        %v2441 = vadd.f32 %v2219, %v2405
        %v2442 = vadd.f32 %v2220, %v2393
        %v2443 = vadd.f32 %v2221, %v2397
        %v2444 = vadd.f32 %v2222, %v2401
        %v2445 = vadd.f32 %v2223, %v2405
        %v2446 = vadd.f32 %v2224, %v2393
        %v2447 = vadd.f32 %v2225, %v2397
        %v2448 = vadd.f32 %v2226, %v2401
        %v2449 = vadd.f32 %v2227, %v2405
        %v2450 = vadd.f32 %v2228, %v2393
        %v2451 = vadd.f32 %v2229, %v2397
        %v2452 = vadd.f32 %v2230, %v2401
        %v2453 = vadd.f32 %v2231, %v2405
        %v2454 = vadd.f32 %v2232, %v2393
        %v2455 = vadd.f32 %v2233, %v2397
        %v2456 = vadd.f32 %v2234, %v2401
        %v2457 = vadd.f32 %v2235, %v2405
        %v2458 = vadd.f32 %v2236, %v2393
        %v2459 = vadd.f32 %v2237, %v2397
        %v2460 = vadd.f32 %v2238, %v2401
        %v2461 = vadd.f32 %v2239, %v2405
        %v2462 = vadd.f32 %v2240, %v2393
        %v2463 = vadd.f32 %v2241, %v2397
        %v2464 = vadd.f32 %v2242, %v2401
        %v2465 = vadd.f32 %v2243, %v2405
        %v2466 = vadd.f32 %v2244, %v2393
        %v2467 = vadd.f32 %v2245, %v2397
        %v2468 = vadd.f32 %v2246, %v2401
        %v2469 = vadd.f32 %v2247, %v2405
        %v2470 = vadd.f32 %v2248, %v2393
        %v2471 = vadd.f32 %v2249, %v2397
        %v2472 = vadd.f32 %v2250, %v2401
        %v2473 = vadd.f32 %v2251, %v2405
        %v2474 = vadd.f32 %v2252, %v2393
        %v2475 = vadd.f32 %v2253, %v2397
        %v2476 = vadd.f32 %v2254, %v2401
        %v2477 = vadd.f32 %v2255, %v2405
        %v2478 = vadd.f32 %v2256, %v2393
        %v2479 = vadd.f32 %v2257, %v2397
        %v2480 = vadd.f32 %v2258, %v2401
        %v2481 = vadd.f32 %v2259, %v2405
        %v2482 = vadd.f32 %v2260, %v2393
        %v2483 = vadd.f32 %v2261, %v2397
        %v2484 = vadd.f32 %v2262, %v2401
        %v2485 = vadd.f32 %v2263, %v2405
        %v2486 = vadd.f32 %v2264, %v2393
        %v2487 = vadd.f32 %v2265, %v2397
        %v2488 = vadd.f32 %v2266, %v2401
        %v2489 = vadd.f32 %v2267, %v2405
        %v2490 = vadd.f32 %v2268, %v2393
        %v2491 = vadd.f32 %v2269, %v2397
        %v2492 = vadd.f32 %v2270, %v2401
        %v2493 = vadd.f32 %v2271, %v2405
        %v2494 = vadd.f32 %v2272, %v2393
        %v2495 = vadd.f32 %v2273, %v2397
        %v2496 = vadd.f32 %v2274, %v2401
        %v2497 = vadd.f32 %v2275, %v2405
        %v2498 = vadd.f32 %v2276, %v2393
        %v2499 = vadd.f32 %v2277, %v2397
        %v2500 = vadd.f32 %v2278, %v2401
        %v2501 = vadd.f32 %v2279, %v2405
        %v2502 = vadd.f32 %v2280, %v2393
        %v2503 = vadd.f32 %v2281, %v2397
        %v2504 = vadd.f32 %v2282, %v2401
        %v2505 = vadd.f32 %v2283, %v2405
        %v2506 = vadd.f32 %v2284, %v2393
        %v2507 = vadd.f32 %v2285, %v2397
        %v2508 = vadd.f32 %v2286, %v2401
        %v2509 = vadd.f32 %v2287, %v2405
        %v2510 = vadd.f32 %v2288, %v2393
        %v2511 = vadd.f32 %v2289, %v2397
        %v2512 = vadd.f32 %v2290, %v2401
        %v2513 = vadd.f32 %v2291, %v2405
        %v2514 = vadd.f32 %v2292, %v2393
        %v2515 = vadd.f32 %v2293, %v2397
        %v2516 = vadd.f32 %v2294, %v2401
        %v2517 = vadd.f32 %v2295, %v2405
        %v2518 = vadd.f32 %v2296, %v2393
        %v2519 = vadd.f32 %v2297, %v2397
        %v2520 = vadd.f32 %v2298, %v2401
        %v2521 = vadd.f32 %v2299, %v2405
        %v2522 = vadd.f32 %v2300, %v2393
        %v2523 = vadd.f32 %v2301, %v2397
        %v2524 = vadd.f32 %v2302, %v2401
        %v2525 = vadd.f32 %v2303, %v2405
        %v2526 = vadd.f32 %v2304, %v2393
        %v2527 = vadd.f32 %v2305, %v2397
        %v2528 = vadd.f32 %v2306, %v2401
        %v2529 = vadd.f32 %v2307, %v2405
        %v2530 = vadd.f32 %v2308, %v2393
        %v2531 = vadd.f32 %v2309, %v2397
        %v2532 = vadd.f32 %v2310, %v2401
        %v2533 = vadd.f32 %v2311, %v2405
        %v2534 = vadd.f32 %v2312, %v2393
        %v2535 = vadd.f32 %v2313, %v2397
        %v2536 = vadd.f32 %v2314, %v2401
        %v2537 = vadd.f32 %v2315, %v2405
        %v2538 = vadd.f32 %v2316, %v2393
        %v2539 = vadd.f32 %v2317, %v2397
        %v2540 = vadd.f32 %v2318, %v2401
        %v2541 = vadd.f32 %v2319, %v2405
        %v2542 = vadd.f32 %v2320, %v2393
        %v2543 = vadd.f32 %v2321, %v2397
        %v2544 = vadd.f32 %v2322, %v2401
        %v2545 = vadd.f32 %v2323, %v2405
        %v2546 = vadd.f32 %v2324, %v2393
        %v2547 = vadd.f32 %v2325, %v2397
        %v2548 = vadd.f32 %v2326, %v2401
        %v2549 = vadd.f32 %v2327, %v2405
        %v2550 = vadd.f32 %v2328, %v2393
        %v2551 = vadd.f32 %v2329, %v2397
        %v2552 = vadd.f32 %v2330, %v2401
        %v2553 = vadd.f32 %v2331, %v2405
        %v2554 = vadd.f32 %v2332, %v2393
        %v2555 = vadd.f32 %v2333, %v2397
        %v2556 = vadd.f32 %v2334, %v2401
        %v2557 = vadd.f32 %v2335, %v2405
        %v2558 = vadd.f32 %v2336, %v2393
        %v2559 = vadd.f32 %v2337, %v2397
        %v2560 = vadd.f32 %v2338, %v2401
        %v2561 = vadd.f32 %v2339, %v2405
        %v2562 = vadd.f32 %v2340, %v2393
        %v2563 = vadd.f32 %v2341, %v2397
        %v2564 = vadd.f32 %v2342, %v2401
        %v2565 = vadd.f32 %v2343, %v2405
        %v2566 = vadd.f32 %v2344, %v2393
        %v2567 = vadd.f32 %v2345, %v2397
        %v2568 = vadd.f32 %v2346, %v2401
        %v2569 = vadd.f32 %v2347, %v2405
        %v2570 = vadd.f32 %v2348, %v2393
        %v2571 = vadd.f32 %v2349, %v2397
        %v2572 = vadd.f32 %v2350, %v2401
        %v2573 = vadd.f32 %v2351, %v2405
        %v2574 = vadd.f32 %v2352, %v2393
        %v2575 = vadd.f32 %v2353, %v2397
        %v2576 = vadd.f32 %v2354, %v2401
        %v2577 = vadd.f32 %v2355, %v2405
        %v2578 = vadd.f32 %v2356, %v2393
        %v2579 = vadd.f32 %v2357, %v2397
        %v2580 = vadd.f32 %v2358, %v2401
        %v2581 = vadd.f32 %v2359, %v2405
        %v2582 = vadd.f32 %v2360, %v2393
        %v2583 = vadd.f32 %v2361, %v2397
        %v2584 = vadd.f32 %v2362, %v2401
        %v2585 = vadd.f32 %v2363, %v2405
        %v2586 = vadd.f32 %v2364, %v2393
        %v2587 = vadd.f32 %v2365, %v2397
        %v2588 = vadd.f32 %v2366, %v2401
        %v2589 = vadd.f32 %v2367, %v2405
        %v2590 = vadd.f32 %v2368, %v2393
        %v2591 = vadd.f32 %v2369, %v2397
        %v2592 = vadd.f32 %v2370, %v2401
        %v2593 = vadd.f32 %v2371, %v2405
        %v2594 = vadd.f32 %v2372, %v2393
        %v2595 = vadd.f32 %v2373, %v2397
        %v2596 = vadd.f32 %v2374, %v2401
        %v2597 = vadd.f32 %v2375, %v2405
        %v2598 = vadd.f32 %v2376, %v2393
        %v2599 = vadd.f32 %v2377, %v2397
        %v2600 = vadd.f32 %v2378, %v2401
        %v2601 = vadd.f32 %v2379, %v2405
        %v2602 = vadd.f32 %v2380, %v2393
        %v2603 = vadd.f32 %v2381, %v2397
        %v2604 = vadd.f32 %v2382, %v2401
        %v2605 = vadd.f32 %v2383, %v2405
        %v2606 = vadd.f32 %v2384, %v2393
        %v2607 = vadd.f32 %v2385, %v2397
        %v2608 = vadd.f32 %v2386, %v2401
        %v2609 = vadd.f32 %v2387, %v2405
        %v2610 = vmax.f32 %v2410, 0.0
        %v2611 = vmax.f32 %v2411, 0.0
        %v2612 = vmax.f32 %v2412, 0.0
        %v2613 = vmax.f32 %v2413, 0.0
        %v2614 = vmax.f32 %v2414, 0.0
        %v2615 = vmax.f32 %v2415, 0.0
        %v2616 = vmax.f32 %v2416, 0.0
        %v2617 = vmax.f32 %v2417, 0.0
        %v2618 = vmax.f32 %v2418, 0.0
        %v2619 = vmax.f32 %v2419, 0.0
        %v2620 = vmax.f32 %v2420, 0.0
        %v2621 = vmax.f32 %v2421, 0.0
        %v2622 = vmax.f32 %v2422, 0.0
        %v2623 = vmax.f32 %v2423, 0.0
        %v2624 = vmax.f32 %v2424, 0.0
        %v2625 = vmax.f32 %v2425, 0.0
        %v2626 = vmax.f32 %v2426, 0.0
        %v2627 = vmax.f32 %v2427, 0.0
        %v2628 = vmax.f32 %v2428, 0.0
        %v2629 = vmax.f32 %v2429, 0.0
        %v2630 = vmax.f32 %v2430, 0.0
        %v2631 = vmax.f32 %v2431, 0.0
        %v2632 = vmax.f32 %v2432, 0.0
        %v2633 = vmax.f32 %v2433, 0.0
        %v2634 = vmax.f32 %v2434, 0.0
        %v2635 = vmax.f32 %v2435, 0.0
        %v2636 = vmax.f32 %v2436, 0.0
        %v2637 = vmax.f32 %v2437, 0.0
        %v2638 = vmax.f32 %v2438, 0.0
        %v2639 = vmax.f32 %v2439, 0.0
        %v2640 = vmax.f32 %v2440, 0.0
        %v2641 = vmax.f32 %v2441, 0.0
        %v2642 = vmax.f32 %v2442, 0.0
        %v2643 = vmax.f32 %v2443, 0.0
        %v2644 = vmax.f32 %v2444, 0.0
        %v2645 = vmax.f32 %v2445, 0.0
        %v2646 = vmax.f32 %v2446, 0.0
        %v2647 = vmax.f32 %v2447, 0.0
        %v2648 = vmax.f32 %v2448, 0.0
        %v2649 = vmax.f32 %v2449, 0.0
        %v2650 = vmax.f32 %v2450, 0.0
        %v2651 = vmax.f32 %v2451, 0.0
        %v2652 = vmax.f32 %v2452, 0.0
        %v2653 = vmax.f32 %v2453, 0.0
        %v2654 = vmax.f32 %v2454, 0.0
        %v2655 = vmax.f32 %v2455, 0.0
        %v2656 = vmax.f32 %v2456, 0.0
        %v2657 = vmax.f32 %v2457, 0.0
        %v2658 = vmax.f32 %v2458, 0.0
        %v2659 = vmax.f32 %v2459, 0.0
        %v2660 = vmax.f32 %v2460, 0.0
        %v2661 = vmax.f32 %v2461, 0.0
        %v2662 = vmax.f32 %v2462, 0.0
        %v2663 = vmax.f32 %v2463, 0.0
        %v2664 = vmax.f32 %v2464, 0.0
        %v2665 = vmax.f32 %v2465, 0.0
        %v2666 = vmax.f32 %v2466, 0.0
        %v2667 = vmax.f32 %v2467, 0.0
        %v2668 = vmax.f32 %v2468, 0.0
        %v2669 = vmax.f32 %v2469, 0.0
        %v2670 = vmax.f32 %v2470, 0.0
        %v2671 = vmax.f32 %v2471, 0.0
        %v2672 = vmax.f32 %v2472, 0.0
        %v2673 = vmax.f32 %v2473, 0.0
        %v2674 = vmax.f32 %v2474, 0.0
        %v2675 = vmax.f32 %v2475, 0.0
        %v2676 = vmax.f32 %v2476, 0.0
        %v2677 = vmax.f32 %v2477, 0.0
        %v2678 = vmax.f32 %v2478, 0.0
        %v2679 = vmax.f32 %v2479, 0.0
        %v2680 = vmax.f32 %v2480, 0.0
        %v2681 = vmax.f32 %v2481, 0.0
        %v2682 = vmax.f32 %v2482, 0.0
        %v2683 = vmax.f32 %v2483, 0.0
        %v2684 = vmax.f32 %v2484, 0.0
        %v2685 = vmax.f32 %v2485, 0.0
        %v2686 = vmax.f32 %v2486, 0.0
        %v2687 = vmax.f32 %v2487, 0.0
        %v2688 = vmax.f32 %v2488, 0.0
        %v2689 = vmax.f32 %v2489, 0.0
        %v2690 = vmax.f32 %v2490, 0.0
        %v2691 = vmax.f32 %v2491, 0.0
        %v2692 = vmax.f32 %v2492, 0.0
        %v2693 = vmax.f32 %v2493, 0.0
        %v2694 = vmax.f32 %v2494, 0.0
        %v2695 = vmax.f32 %v2495, 0.0
        %v2696 = vmax.f32 %v2496, 0.0
        %v2697 = vmax.f32 %v2497, 0.0
        %v2698 = vmax.f32 %v2498, 0.0
        %v2699 = vmax.f32 %v2499, 0.0
        %v2700 = vmax.f32 %v2500, 0.0
        %v2701 = vmax.f32 %v2501, 0.0
        %v2702 = vmax.f32 %v2502, 0.0
        %v2703 = vmax.f32 %v2503, 0.0
        %v2704 = vmax.f32 %v2504, 0.0
        %v2705 = vmax.f32 %v2505, 0.0
        %v2706 = vmax.f32 %v2506, 0.0
        %v2707 = vmax.f32 %v2507, 0.0
        %v2708 = vmax.f32 %v2508, 0.0
        %v2709 = vmax.f32 %v2509, 0.0
        %v2710 = vmax.f32 %v2510, 0.0
        %v2711 = vmax.f32 %v2511, 0.0
        %v2712 = vmax.f32 %v2512, 0.0
        %v2713 = vmax.f32 %v2513, 0.0
        %v2714 = vmax.f32 %v2514, 0.0
        %v2715 = vmax.f32 %v2515, 0.0
        %v2716 = vmax.f32 %v2516, 0.0
        %v2717 = vmax.f32 %v2517, 0.0
        %v2718 = vmax.f32 %v2518, 0.0
        %v2719 = vmax.f32 %v2519, 0.0
        %v2720 = vmax.f32 %v2520, 0.0
        %v2721 = vmax.f32 %v2521, 0.0
        %v2722 = vmax.f32 %v2522, 0.0
        %v2723 = vmax.f32 %v2523, 0.0
        %v2724 = vmax.f32 %v2524, 0.0
        %v2725 = vmax.f32 %v2525, 0.0
        %v2726 = vmax.f32 %v2526, 0.0
        %v2727 = vmax.f32 %v2527, 0.0
        %v2728 = vmax.f32 %v2528, 0.0
        %v2729 = vmax.f32 %v2529, 0.0
        %v2730 = vmax.f32 %v2530, 0.0
        %v2731 = vmax.f32 %v2531, 0.0
        %v2732 = vmax.f32 %v2532, 0.0
        %v2733 = vmax.f32 %v2533, 0.0
        %v2734 = vmax.f32 %v2534, 0.0
        %v2735 = vmax.f32 %v2535, 0.0
        %v2736 = vmax.f32 %v2536, 0.0
        %v2737 = vmax.f32 %v2537, 0.0
        %v2738 = vmax.f32 %v2538, 0.0
        %v2739 = vmax.f32 %v2539, 0.0
        %v2740 = vmax.f32 %v2540, 0.0
        %v2741 = vmax.f32 %v2541, 0.0
        %v2742 = vmax.f32 %v2542, 0.0
        %v2743 = vmax.f32 %v2543, 0.0
        %v2744 = vmax.f32 %v2544, 0.0
        %v2745 = vmax.f32 %v2545, 0.0
        %v2746 = vmax.f32 %v2546, 0.0
        %v2747 = vmax.f32 %v2547, 0.0
        %v2748 = vmax.f32 %v2548, 0.0
        %v2749 = vmax.f32 %v2549, 0.0
        %v2750 = vmax.f32 %v2550, 0.0
        %v2751 = vmax.f32 %v2551, 0.0
        %v2752 = vmax.f32 %v2552, 0.0
        %v2753 = vmax.f32 %v2553, 0.0
        %v2754 = vmax.f32 %v2554, 0.0
        %v2755 = vmax.f32 %v2555, 0.0
        %v2756 = vmax.f32 %v2556, 0.0
        %v2757 = vmax.f32 %v2557, 0.0
        %v2758 = vmax.f32 %v2558, 0.0
        %v2759 = vmax.f32 %v2559, 0.0
        %v2760 = vmax.f32 %v2560, 0.0
        %v2761 = vmax.f32 %v2561, 0.0
        %v2762 = vmax.f32 %v2562, 0.0
        %v2763 = vmax.f32 %v2563, 0.0
        %v2764 = vmax.f32 %v2564, 0.0
        %v2765 = vmax.f32 %v2565, 0.0
        %v2766 = vmax.f32 %v2566, 0.0
        %v2767 = vmax.f32 %v2567, 0.0
        %v2768 = vmax.f32 %v2568, 0.0
        %v2769 = vmax.f32 %v2569, 0.0
        %v2770 = vmax.f32 %v2570, 0.0
        %v2771 = vmax.f32 %v2571, 0.0
        %v2772 = vmax.f32 %v2572, 0.0
        %v2773 = vmax.f32 %v2573, 0.0
        %v2774 = vmax.f32 %v2574, 0.0
        %v2775 = vmax.f32 %v2575, 0.0
        %v2776 = vmax.f32 %v2576, 0.0
        %v2777 = vmax.f32 %v2577, 0.0
        %v2778 = vmax.f32 %v2578, 0.0
        %v2779 = vmax.f32 %v2579, 0.0
        %v2780 = vmax.f32 %v2580, 0.0
        %v2781 = vmax.f32 %v2581, 0.0
        %v2782 = vmax.f32 %v2582, 0.0
        %v2783 = vmax.f32 %v2583, 0.0
        %v2784 = vmax.f32 %v2584, 0.0
        %v2785 = vmax.f32 %v2585, 0.0
        %v2786 = vmax.f32 %v2586, 0.0
        %v2787 = vmax.f32 %v2587, 0.0
        %v2788 = vmax.f32 %v2588, 0.0
        %v2789 = vmax.f32 %v2589, 0.0
        %v2790 = vmax.f32 %v2590, 0.0
        %v2791 = vmax.f32 %v2591, 0.0
        %v2792 = vmax.f32 %v2592, 0.0
        %v2793 = vmax.f32 %v2593, 0.0
        %v2794 = vmax.f32 %v2594, 0.0
        %v2795 = vmax.f32 %v2595, 0.0
        %v2796 = vmax.f32 %v2596, 0.0
        %v2797 = vmax.f32 %v2597, 0.0
        %v2798 = vmax.f32 %v2598, 0.0
        %v2799 = vmax.f32 %v2599, 0.0
        %v2800 = vmax.f32 %v2600, 0.0
        %v2801 = vmax.f32 %v2601, 0.0
        %v2802 = vmax.f32 %v2602, 0.0
        %v2803 = vmax.f32 %v2603, 0.0
        %v2804 = vmax.f32 %v2604, 0.0
        %v2805 = vmax.f32 %v2605, 0.0
        %v2806 = vmax.f32 %v2606, 0.0
        %v2807 = vmax.f32 %v2607, 0.0
        %v2808 = vmax.f32 %v2608, 0.0
        %v2809 = vmax.f32 %v2609, 0.0
        %v2810 = vmul.f32 %v886, %v2610
        %v2811 = vmul.f32 %v886, %v2611
        %v2812 = vmul.f32 %v886, %v2612
        %v2813 = vmul.f32 %v886, %v2613
        %v2814 = vmul.f32 %v887, %v2614
        %v2815 = vmul.f32 %v887, %v2615
        %v2816 = vmul.f32 %v887, %v2616
        %v2817 = vmul.f32 %v887, %v2617
        %v2818 = vmul.f32 %v888, %v2618
        %v2819 = vmul.f32 %v888, %v2619
        %v2820 = vmul.f32 %v888, %v2620
        %v2821 = vmul.f32 %v888, %v2621
        %v2822 = vmul.f32 %v889, %v2622
        %v2823 = vmul.f32 %v889, %v2623
        %v2824 = vmul.f32 %v889, %v2624
        %v2825 = vmul.f32 %v889, %v2625
        %v2826 = vmul.f32 %v890, %v2626
        %v2827 = vmul.f32 %v890, %v2627
        %v2828 = vmul.f32 %v890, %v2628
        %v2829 = vmul.f32 %v890, %v2629
        %v2830 = vmul.f32 %v891, %v2630
        %v2831 = vmul.f32 %v891, %v2631
        %v2832 = vmul.f32 %v891, %v2632
        %v2833 = vmul.f32 %v891, %v2633
        %v2834 = vmul.f32 %v892, %v2634
        %v2835 = vmul.f32 %v892, %v2635
        %v2836 = vmul.f32 %v892, %v2636
        %v2837 = vmul.f32 %v892, %v2637
        %v2838 = vmul.f32 %v893, %v2638
        %v2839 = vmul.f32 %v893, %v2639
        %v2840 = vmul.f32 %v893, %v2640
        %v2841 = vmul.f32 %v893, %v2641
        %v2842 = vmul.f32 %v894, %v2642
        %v2843 = vmul.f32 %v894, %v2643
        %v2844 = vmul.f32 %v894, %v2644
        %v2845 = vmul.f32 %v894, %v2645
        %v2846 = vmul.f32 %v895, %v2646
        %v2847 = vmul.f32 %v895, %v2647
        %v2848 = vmul.f32 %v895, %v2648
        %v2849 = vmul.f32 %v895, %v2649
        %v2850 = vmul.f32 %v896, %v2650
        %v2851 = vmul.f32 %v896, %v2651
        %v2852 = vmul.f32 %v896, %v2652
        %v2853 = vmul.f32 %v896, %v2653
        %v2854 = vmul.f32 %v897, %v2654
        %v2855 = vmul.f32 %v897, %v2655
        %v2856 = vmul.f32 %v897, %v2656
        %v2857 = vmul.f32 %v897, %v2657
        %v2858 = vmul.f32 %v898, %v2658
        %v2859 = vmul.f32 %v898, %v2659
        %v2860 = vmul.f32 %v898, %v2660
        %v2861 = vmul.f32 %v898, %v2661
        %v2862 = vmul.f32 %v899, %v2662
        %v2863 = vmul.f32 %v899, %v2663
        %v2864 = vmul.f32 %v899, %v2664
        %v2865 = vmul.f32 %v899, %v2665
        %v2866 = vmul.f32 %v900, %v2666
        %v2867 = vmul.f32 %v900, %v2667
        %v2868 = vmul.f32 %v900, %v2668
        %v2869 = vmul.f32 %v900, %v2669
        %v2870 = vmul.f32 %v901, %v2670
        %v2871 = vmul.f32 %v901, %v2671
        %v2872 = vmul.f32 %v901, %v2672
        %v2873 = vmul.f32 %v901, %v2673
        %v2874 = vmul.f32 %v902, %v2674
        %v2875 = vmul.f32 %v902, %v2675
        %v2876 = vmul.f32 %v902, %v2676
        %v2877 = vmul.f32 %v902, %v2677
        %v2878 = vmul.f32 %v903, %v2678
        %v2879 = vmul.f32 %v903, %v2679
        %v2880 = vmul.f32 %v903, %v2680
        %v2881 = vmul.f32 %v903, %v2681
        %v2882 = vmul.f32 %v904, %v2682
        %v2883 = vmul.f32 %v904, %v2683
        %v2884 = vmul.f32 %v904, %v2684
        %v2885 = vmul.f32 %v904, %v2685
        %v2886 = vmul.f32 %v905, %v2686
        %v2887 = vmul.f32 %v905, %v2687
        %v2888 = vmul.f32 %v905, %v2688
        %v2889 = vmul.f32 %v905, %v2689
        %v2890 = vmul.f32 %v906, %v2690
        %v2891 = vmul.f32 %v906, %v2691
        %v2892 = vmul.f32 %v906, %v2692
        %v2893 = vmul.f32 %v906, %v2693
        %v2894 = vmul.f32 %v907, %v2694
        %v2895 = vmul.f32 %v907, %v2695
        %v2896 = vmul.f32 %v907, %v2696
        %v2897 = vmul.f32 %v907, %v2697
        %v2898 = vmul.f32 %v908, %v2698
        %v2899 = vmul.f32 %v908, %v2699
        %v2900 = vmul.f32 %v908, %v2700
        %v2901 = vmul.f32 %v908, %v2701
        %v2902 = vmul.f32 %v909, %v2702
        %v2903 = vmul.f32 %v909, %v2703
        %v2904 = vmul.f32 %v909, %v2704
        %v2905 = vmul.f32 %v909, %v2705
        %v2906 = vmul.f32 %v910, %v2706
        %v2907 = vmul.f32 %v910, %v2707
        %v2908 = vmul.f32 %v910, %v2708
        %v2909 = vmul.f32 %v910, %v2709
        %v2910 = vmul.f32 %v911, %v2710
        %v2911 = vmul.f32 %v911, %v2711
        %v2912 = vmul.f32 %v911, %v2712
        %v2913 = vmul.f32 %v911, %v2713
        %v2914 = vmul.f32 %v912, %v2714
        %v2915 = vmul.f32 %v912, %v2715
        %v2916 = vmul.f32 %v912, %v2716
        %v2917 = vmul.f32 %v912, %v2717
        %v2918 = vmul.f32 %v913, %v2718
        %v2919 = vmul.f32 %v913, %v2719
        %v2920 = vmul.f32 %v913, %v2720
        %v2921 = vmul.f32 %v913, %v2721
        %v2922 = vmul.f32 %v914, %v2722
        %v2923 = vmul.f32 %v914, %v2723
        %v2924 = vmul.f32 %v914, %v2724
        %v2925 = vmul.f32 %v914, %v2725
        %v2926 = vmul.f32 %v915, %v2726
        %v2927 = vmul.f32 %v915, %v2727
        %v2928 = vmul.f32 %v915, %v2728
        %v2929 = vmul.f32 %v915, %v2729
        %v2930 = vmul.f32 %v916, %v2730
        %v2931 = vmul.f32 %v916, %v2731
        %v2932 = vmul.f32 %v916, %v2732
        %v2933 = vmul.f32 %v916, %v2733
        %v2934 = vmul.f32 %v917, %v2734
        %v2935 = vmul.f32 %v917, %v2735
        %v2936 = vmul.f32 %v917, %v2736
        %v2937 = vmul.f32 %v917, %v2737
        %v2938 = vmul.f32 %v918, %v2738
        %v2939 = vmul.f32 %v918, %v2739
        %v2940 = vmul.f32 %v918, %v2740
        %v2941 = vmul.f32 %v918, %v2741
        %v2942 = vmul.f32 %v919, %v2742
        %v2943 = vmul.f32 %v919, %v2743
        %v2944 = vmul.f32 %v919, %v2744
        %v2945 = vmul.f32 %v919, %v2745
        %v2946 = vmul.f32 %v920, %v2746
        %v2947 = vmul.f32 %v920, %v2747
        %v2948 = vmul.f32 %v920, %v2748
        %v2949 = vmul.f32 %v920, %v2749
        %v2950 = vmul.f32 %v921, %v2750
        %v2951 = vmul.f32 %v921, %v2751
        %v2952 = vmul.f32 %v921, %v2752
        %v2953 = vmul.f32 %v921, %v2753
        %v2954 = vmul.f32 %v922, %v2754
        %v2955 = vmul.f32 %v922, %v2755
        %v2956 = vmul.f32 %v922, %v2756
        %v2957 = vmul.f32 %v922, %v2757
        %v2958 = vmul.f32 %v923, %v2758
        %v2959 = vmul.f32 %v923, %v2759
        %v2960 = vmul.f32 %v923, %v2760
        %v2961 = vmul.f32 %v923, %v2761
        %v2962 = vmul.f32 %v924, %v2762
        %v2963 = vmul.f32 %v924, %v2763
        %v2964 = vmul.f32 %v924, %v2764
        %v2965 = vmul.f32 %v924, %v2765
        %v2966 = vmul.f32 %v925, %v2766
        %v2967 = vmul.f32 %v925, %v2767
        %v2968 = vmul.f32 %v925, %v2768
        %v2969 = vmul.f32 %v925, %v2769
        %v2970 = vmul.f32 %v926, %v2770
        %v2971 = vmul.f32 %v926, %v2771
        %v2972 = vmul.f32 %v926, %v2772
        %v2973 = vmul.f32 %v926, %v2773
        %v2974 = vmul.f32 %v927, %v2774
        %v2975 = vmul.f32 %v927, %v2775
        %v2976 = vmul.f32 %v927, %v2776
        %v2977 = vmul.f32 %v927, %v2777
        %v2978 = vmul.f32 %v928, %v2778
        %v2979 = vmul.f32 %v928, %v2779
        %v2980 = vmul.f32 %v928, %v2780
        %v2981 = vmul.f32 %v928, %v2781
        %v2982 = vmul.f32 %v929, %v2782
        %v2983 = vmul.f32 %v929, %v2783
        %v2984 = vmul.f32 %v929, %v2784
        %v2985 = vmul.f32 %v929, %v2785
        %v2986 = vmul.f32 %v930, %v2786
        %v2987 = vmul.f32 %v930, %v2787
        %v2988 = vmul.f32 %v930, %v2788
        %v2989 = vmul.f32 %v930, %v2789
        %v2990 = vmul.f32 %v931, %v2790
        %v2991 = vmul.f32 %v931, %v2791
        %v2992 = vmul.f32 %v931, %v2792
        %v2993 = vmul.f32 %v931, %v2793
        %v2994 = vmul.f32 %v932, %v2794
        %v2995 = vmul.f32 %v932, %v2795
        %v2996 = vmul.f32 %v932, %v2796
        %v2997 = vmul.f32 %v932, %v2797
        %v2998 = vmul.f32 %v933, %v2798
        %v2999 = vmul.f32 %v933, %v2799
        %v3000 = vmul.f32 %v933, %v2800
        %v3001 = vmul.f32 %v933, %v2801
        %v3002 = vmul.f32 %v934, %v2802
        %v3003 = vmul.f32 %v934, %v2803
        %v3004 = vmul.f32 %v934, %v2804
        %v3005 = vmul.f32 %v934, %v2805
        %v3006 = vmul.f32 %v935, %v2806
        %v3007 = vmul.f32 %v935, %v2807
        %v3008 = vmul.f32 %v935, %v2808
        %v3009 = vmul.f32 %v935, %v2809
        %v3010 = vld [vmem:[#allocation8] sm:$0xf]
        %v3012 = vlaneseq
        %v3013 = vshrl.u32 %v3012, 7
        %v3014 = vsub.s32 0, %v3013
        %v3015 = vrot.slane %v3010, %v3014
        %v3016 = vlaneseq
        %v3017 = vshrl.u32 %v3016, 7
        %v3018 = vsub.s32 1, %v3017
        %v3019 = vrot.slane %v3010, %v3018
        %v3020 = vlaneseq
        %v3021 = vshrl.u32 %v3020, 7
        %v3022 = vsub.s32 2, %v3021
        %v3023 = vrot.slane %v3010, %v3022
        %v3024 = vlaneseq
        %v3025 = vshrl.u32 %v3024, 7
        %v3026 = vsub.s32 3, %v3025
        %v3027 = vrot.slane %v3010, %v3026
        %v3031 = vsel %vm537, %v3027, 0
        %3033 = vmatprep.subr.mxu0 %v937
        %3034 = vmatpush1.msra.mxu0 %v936
        %3035 = vmatprep.subr.mxu0 %v941
        %3036 = vmatpush1.msra.mxu0 %v940
        %3037 = vmatprep.subr.mxu0 %v945
        %3038 = vmatpush1.msra.mxu0 %v944
        %3039 = vmatprep.subr.mxu0 %v949
        %3040 = vmatpush1.msra.mxu0 %v948
        %3041 = vmatprep.subr.mxu0 %v953
        %3042 = vmatpush1.msra.mxu0 %v952
        %3043 = vmatprep.subr.mxu0 %v957
        %3044 = vmatpush1.msra.mxu0 %v956
        %3045 = vmatprep.subr.mxu0 %v961
        %3046 = vmatpush1.msra.mxu0 %v960
        %3047 = vmatprep.subr.mxu0 %v965
        %3048 = vmatpush1.msra.mxu0 %v964
        %3049 = vmatprep.subr.mxu0 %v969
        %3050 = vmatpush1.msra.mxu0 %v968
        %3051 = vmatprep.subr.mxu0 %v973
        %3052 = vmatpush1.msra.mxu0 %v972
        %3053 = vmatprep.subr.mxu0 %v977
        %3054 = vmatpush1.msra.mxu0 %v976
        %3055 = vmatprep.subr.mxu0 %v981
        %3056 = vmatpush1.msra.mxu0 %v980
        %3057 = vmatprep.subr.mxu0 %v985
        %3058 = vmatpush1.msra.mxu0 %v984
        %3059 = vmatprep.subr.mxu0 %v989
        %3060 = vmatpush1.msra.mxu0 %v988
        %3061 = vmatprep.subr.mxu0 %v993
        %3062 = vmatpush1.msra.mxu0 %v992
        %3063 = vmatprep.subr.mxu0 %v997
        %3064 = vmatpush1.msra.mxu0 %v996
        %3065 = vmatprep.subr.mxu0 %v1001
        %3066 = vmatpush1.msra.mxu0 %v1000
        %3067 = vmatprep.subr.mxu0 %v1005
        %3068 = vmatpush1.msra.mxu0 %v1004
        %3069 = vmatprep.subr.mxu0 %v1009
        %3070 = vmatpush1.msra.mxu0 %v1008
        %3071 = vmatprep.subr.mxu0 %v1013
        %3072 = vmatpush1.msra.mxu0 %v1012
        %3073 = vmatprep.subr.mxu0 %v1017
        %3074 = vmatpush1.msra.mxu0 %v1016
        %3075 = vmatprep.subr.mxu0 %v1021
        %3076 = vmatpush1.msra.mxu0 %v1020
        %3077 = vmatprep.subr.mxu0 %v1025
        %3078 = vmatpush1.msra.mxu0 %v1024
        %3079 = vmatprep.subr.mxu0 %v1029
        %3080 = vmatpush1.msra.mxu0 %v1028
        %3081 = vmatprep.subr.mxu0 %v1033
        %3082 = vmatpush1.msra.mxu0 %v1032
        %3083 = vmatprep.subr.mxu0 %v1037
        %3084 = vmatpush1.msra.mxu0 %v1036
        %3085 = vmatprep.subr.mxu0 %v1041
        %3086 = vmatpush1.msra.mxu0 %v1040
        %3087 = vmatprep.subr.mxu0 %v1045
        %3088 = vmatpush1.msra.mxu0 %v1044
        %3089 = vmatprep.subr.mxu0 %v1049
        %3090 = vmatpush1.msra.mxu0 %v1048
        %3091 = vmatprep.subr.mxu0 %v1053
        %3092 = vmatpush1.msra.mxu0 %v1052
        %3093 = vmatprep.subr.mxu0 %v1057
        %3094 = vmatpush1.msra.mxu0 %v1056
        %3095 = vmatprep.subr.mxu0 %v1061
        %3096 = vmatpush1.msra.mxu0 %v1060
        %3097 = vmatprep.mubr.f32.mxu0 %v3019
        %3098 = vmatmul.mubr.f32.gmra.mrb[0].mxu0 %v3015
        %v3099 = vpop.f32.mrb[0].mxu0
        %v3100 = vadd.f32 0.0, %v3099
        %v3101 = vpop.f32.mrb[0].mxu0
        %v3102 = vadd.f32 0.0, %v3101
        %3103 = vdwg.mxu0
        %3104 = vmatprep.subr.mxu0 %v1065
        %3105 = vmatpush1.msra.mxu0 %v1064
        %3106 = vmatprep.subr.mxu0 %v1069
        %3107 = vmatpush1.msra.mxu0 %v1068
        %3108 = vmatprep.subr.mxu0 %v1073
        %3109 = vmatpush1.msra.mxu0 %v1072
        %3110 = vmatprep.subr.mxu0 %v1077
        %3111 = vmatpush1.msra.mxu0 %v1076
        %3112 = vmatprep.subr.mxu0 %v1081
        %3113 = vmatpush1.msra.mxu0 %v1080
        %3114 = vmatprep.subr.mxu0 %v1085
        %3115 = vmatpush1.msra.mxu0 %v1084
        %3116 = vmatprep.subr.mxu0 %v1089
        %3117 = vmatpush1.msra.mxu0 %v1088
        %3118 = vmatprep.subr.mxu0 %v1093
        %3119 = vmatpush1.msra.mxu0 %v1092
        %3120 = vmatprep.subr.mxu0 %v1097
        %3121 = vmatpush1.msra.mxu0 %v1096
        %3122 = vmatprep.subr.mxu0 %v1101
        %3123 = vmatpush1.msra.mxu0 %v1100
        %3124 = vmatprep.subr.mxu0 %v1105
        %3125 = vmatpush1.msra.mxu0 %v1104
        %3126 = vmatprep.subr.mxu0 %v1109
        %3127 = vmatpush1.msra.mxu0 %v1108
        %3128 = vmatprep.subr.mxu0 %v1113
        %3129 = vmatpush1.msra.mxu0 %v1112
        %3130 = vmatprep.subr.mxu0 %v1117
        %3131 = vmatpush1.msra.mxu0 %v1116
        %3132 = vmatprep.subr.mxu0 %v1121
        %3133 = vmatpush1.msra.mxu0 %v1120
        %3134 = vmatprep.subr.mxu0 %v1125
        %3135 = vmatpush1.msra.mxu0 %v1124
        %3136 = vmatprep.subr.mxu0 %v1129
        %3137 = vmatpush1.msra.mxu0 %v1128
        %3138 = vmatprep.subr.mxu0 %v1133
        %3139 = vmatpush1.msra.mxu0 %v1132
        %3140 = vmatprep.subr.mxu0 0.0
        %3141 = vmatpush1.msra.mxu0 0.0
        %3142 = vmatprep.subr.mxu0 0.0
        %3143 = vmatpush1.msra.mxu0 0.0
        %3144 = vmatprep.subr.mxu0 0.0
        %3145 = vmatpush1.msra.mxu0 0.0
        %3146 = vmatprep.subr.mxu0 0.0
        %3147 = vmatpush1.msra.mxu0 0.0
        %3148 = vmatprep.subr.mxu0 0.0
        %3149 = vmatpush1.msra.mxu0 0.0
        %3150 = vmatprep.subr.mxu0 0.0
        %3151 = vmatpush1.msra.mxu0 0.0
        %3152 = vmatprep.subr.mxu0 0.0
        %3153 = vmatpush1.msra.mxu0 0.0
        %3154 = vmatprep.subr.mxu0 0.0
        %3155 = vmatpush1.msra.mxu0 0.0
        %3156 = vmatprep.subr.mxu0 0.0
        %3157 = vmatpush1.msra.mxu0 0.0
        %3158 = vmatprep.subr.mxu0 0.0
        %3159 = vmatpush1.msra.mxu0 0.0
        %3160 = vmatprep.subr.mxu0 0.0
        %3161 = vmatpush1.msra.mxu0 0.0
        %3162 = vmatprep.subr.mxu0 0.0
        %3163 = vmatpush1.msra.mxu0 0.0
        %3164 = vmatprep.subr.mxu0 0.0
        %3165 = vmatpush1.msra.mxu0 0.0
        %3166 = vmatprep.subr.mxu0 0.0
        %3167 = vmatpush1.msra.mxu0 0.0
        %3168 = vmatprep.mubr.f32.mxu0 %v3031
        %3169 = vmatmul.mubr.f32.gmra.mrb[0].mxu0 %v3023
        %v3170 = vpop.f32.mrb[0].mxu0
        %v3171 = vadd.f32 %v3100, %v3170
        %v3172 = vpop.f32.mrb[0].mxu0
        %v3173 = vadd.f32 %v3102, %v3172
        %3174 = vdwg.mxu0
        %3175 = vmatprep.subr.mxu0 %v939
        %3176 = vmatpush1.msra.mxu0 %v938
        %3177 = vmatprep.subr.mxu0 %v943
        %3178 = vmatpush1.msra.mxu0 %v942
        %3179 = vmatprep.subr.mxu0 %v947
        %3180 = vmatpush1.msra.mxu0 %v946
        %3181 = vmatprep.subr.mxu0 %v951
        %3182 = vmatpush1.msra.mxu0 %v950
        %3183 = vmatprep.subr.mxu0 %v955
        %3184 = vmatpush1.msra.mxu0 %v954
        %3185 = vmatprep.subr.mxu0 %v959
        %3186 = vmatpush1.msra.mxu0 %v958
        %3187 = vmatprep.subr.mxu0 %v963
        %3188 = vmatpush1.msra.mxu0 %v962
        %3189 = vmatprep.subr.mxu0 %v967
        %3190 = vmatpush1.msra.mxu0 %v966
        %3191 = vmatprep.subr.mxu0 %v971
        %3192 = vmatpush1.msra.mxu0 %v970
        %3193 = vmatprep.subr.mxu0 %v975
        %3194 = vmatpush1.msra.mxu0 %v974
        %3195 = vmatprep.subr.mxu0 %v979
        %3196 = vmatpush1.msra.mxu0 %v978
        %3197 = vmatprep.subr.mxu0 %v983
        %3198 = vmatpush1.msra.mxu0 %v982
        %3199 = vmatprep.subr.mxu0 %v987
        %3200 = vmatpush1.msra.mxu0 %v986
        %3201 = vmatprep.subr.mxu0 %v991
        %3202 = vmatpush1.msra.mxu0 %v990
        %3203 = vmatprep.subr.mxu0 %v995
        %3204 = vmatpush1.msra.mxu0 %v994
        %3205 = vmatprep.subr.mxu0 %v999
        %3206 = vmatpush1.msra.mxu0 %v998
        %3207 = vmatprep.subr.mxu0 %v1003
        %3208 = vmatpush1.msra.mxu0 %v1002
        %3209 = vmatprep.subr.mxu0 %v1007
        %3210 = vmatpush1.msra.mxu0 %v1006
        %3211 = vmatprep.subr.mxu0 %v1011
        %3212 = vmatpush1.msra.mxu0 %v1010
        %3213 = vmatprep.subr.mxu0 %v1015
        %3214 = vmatpush1.msra.mxu0 %v1014
        %3215 = vmatprep.subr.mxu0 %v1019
        %3216 = vmatpush1.msra.mxu0 %v1018
        %3217 = vmatprep.subr.mxu0 %v1023
        %3218 = vmatpush1.msra.mxu0 %v1022
        %3219 = vmatprep.subr.mxu0 %v1027
        %3220 = vmatpush1.msra.mxu0 %v1026
        %3221 = vmatprep.subr.mxu0 %v1031
        %3222 = vmatpush1.msra.mxu0 %v1030
        %3223 = vmatprep.subr.mxu0 %v1035
        %3224 = vmatpush1.msra.mxu0 %v1034
        %3225 = vmatprep.subr.mxu0 %v1039
        %3226 = vmatpush1.msra.mxu0 %v1038
        %3227 = vmatprep.subr.mxu0 %v1043
        %3228 = vmatpush1.msra.mxu0 %v1042
        %3229 = vmatprep.subr.mxu0 %v1047
        %3230 = vmatpush1.msra.mxu0 %v1046
        %3231 = vmatprep.subr.mxu0 %v1051
        %3232 = vmatpush1.msra.mxu0 %v1050
        %3233 = vmatprep.subr.mxu0 %v1055
        %3234 = vmatpush1.msra.mxu0 %v1054
        %3235 = vmatprep.subr.mxu0 %v1059
        %3236 = vmatpush1.msra.mxu0 %v1058
        %3237 = vmatprep.subr.mxu0 %v1063
        %3238 = vmatpush1.msra.mxu0 %v1062
        %3239 = vmatprep.mubr.f32.mxu0 %v3019
        %3240 = vmatmul.mubr.f32.gmra.mrb[0].mxu0 %v3015
        %v3241 = vpop.f32.mrb[0].mxu0
        %v3242 = vadd.f32 0.0, %v3241
        %v3243 = vpop.f32.mrb[0].mxu0
        %v3244 = vadd.f32 0.0, %v3243
        %3245 = vdwg.mxu0
        %3246 = vmatprep.subr.mxu0 %v1067
        %3247 = vmatpush1.msra.mxu0 %v1066
        %3248 = vmatprep.subr.mxu0 %v1071
        %3249 = vmatpush1.msra.mxu0 %v1070
        %3250 = vmatprep.subr.mxu0 %v1075
        %3251 = vmatpush1.msra.mxu0 %v1074
        %3252 = vmatprep.subr.mxu0 %v1079
        %3253 = vmatpush1.msra.mxu0 %v1078
        %3254 = vmatprep.subr.mxu0 %v1083
        %3255 = vmatpush1.msra.mxu0 %v1082
        %3256 = vmatprep.subr.mxu0 %v1087
        %3257 = vmatpush1.msra.mxu0 %v1086
        %3258 = vmatprep.subr.mxu0 %v1091
        %3259 = vmatpush1.msra.mxu0 %v1090
        %3260 = vmatprep.subr.mxu0 %v1095
        %3261 = vmatpush1.msra.mxu0 %v1094
        %3262 = vmatprep.subr.mxu0 %v1099
        %3263 = vmatpush1.msra.mxu0 %v1098
        %3264 = vmatprep.subr.mxu0 %v1103
        %3265 = vmatpush1.msra.mxu0 %v1102
        %3266 = vmatprep.subr.mxu0 %v1107
        %3267 = vmatpush1.msra.mxu0 %v1106
        %3268 = vmatprep.subr.mxu0 %v1111
        %3269 = vmatpush1.msra.mxu0 %v1110
        %3270 = vmatprep.subr.mxu0 %v1115
        %3271 = vmatpush1.msra.mxu0 %v1114
        %3272 = vmatprep.subr.mxu0 %v1119
        %3273 = vmatpush1.msra.mxu0 %v1118
        %3274 = vmatprep.subr.mxu0 %v1123
        %3275 = vmatpush1.msra.mxu0 %v1122
        %3276 = vmatprep.subr.mxu0 %v1127
        %3277 = vmatpush1.msra.mxu0 %v1126
        %3278 = vmatprep.subr.mxu0 %v1131
        %3279 = vmatpush1.msra.mxu0 %v1130
        %3280 = vmatprep.subr.mxu0 %v1135
        %3281 = vmatpush1.msra.mxu0 %v1134
        %3282 = vmatprep.subr.mxu0 0.0
        %3283 = vmatpush1.msra.mxu0 0.0
        %3284 = vmatprep.subr.mxu0 0.0
        %3285 = vmatpush1.msra.mxu0 0.0
        %3286 = vmatprep.subr.mxu0 0.0
        %3287 = vmatpush1.msra.mxu0 0.0
        %3288 = vmatprep.subr.mxu0 0.0
        %3289 = vmatpush1.msra.mxu0 0.0
        %3290 = vmatprep.subr.mxu0 0.0
        %3291 = vmatpush1.msra.mxu0 0.0
        %3292 = vmatprep.subr.mxu0 0.0
        %3293 = vmatpush1.msra.mxu0 0.0
        %3294 = vmatprep.subr.mxu0 0.0
        %3295 = vmatpush1.msra.mxu0 0.0
        %3296 = vmatprep.subr.mxu0 0.0
        %3297 = vmatpush1.msra.mxu0 0.0
        %3298 = vmatprep.subr.mxu0 0.0
        %3299 = vmatpush1.msra.mxu0 0.0
        %3300 = vmatprep.subr.mxu0 0.0
        %3301 = vmatpush1.msra.mxu0 0.0
        %3302 = vmatprep.subr.mxu0 0.0
        %3303 = vmatpush1.msra.mxu0 0.0
        %3304 = vmatprep.subr.mxu0 0.0
        %3305 = vmatpush1.msra.mxu0 0.0
        %3306 = vmatprep.subr.mxu0 0.0
        %3307 = vmatpush1.msra.mxu0 0.0
        %3308 = vmatprep.subr.mxu0 0.0
        %3309 = vmatpush1.msra.mxu0 0.0
        %3310 = vmatprep.mubr.f32.mxu0 %v3031
        %3311 = vmatmul.mubr.f32.gmra.mrb[0].mxu0 %v3023
        %v3312 = vpop.f32.mrb[0].mxu0
        %v3313 = vadd.f32 %v3242, %v3312
        %v3314 = vpop.f32.mrb[0].mxu0
        %v3315 = vadd.f32 %v3244, %v3314
        %3316 = vdwg.mxu0
        %v3318 = vsel %vm537, %v3315, 0
        %3320 = vmatprep.subr.mxu0 %v2811
        %3321 = vmatpush1.msra.mxu0 %v2810
        %3322 = vmatprep.subr.mxu0 %v2815
        %3323 = vmatpush1.msra.mxu0 %v2814
        %3324 = vmatprep.subr.mxu0 %v2819
        %3325 = vmatpush1.msra.mxu0 %v2818
        %3326 = vmatprep.subr.mxu0 %v2823
        %3327 = vmatpush1.msra.mxu0 %v2822
        %3328 = vmatprep.subr.mxu0 %v2827
        %3329 = vmatpush1.msra.mxu0 %v2826
        %3330 = vmatprep.subr.mxu0 %v2831
        %3331 = vmatpush1.msra.mxu0 %v2830
        %3332 = vmatprep.subr.mxu0 %v2835
        %3333 = vmatpush1.msra.mxu0 %v2834
        %3334 = vmatprep.subr.mxu0 %v2839
        %3335 = vmatpush1.msra.mxu0 %v2838
        %3336 = vmatprep.subr.mxu0 %v2843
        %3337 = vmatpush1.msra.mxu0 %v2842
        %3338 = vmatprep.subr.mxu0 %v2847
        %3339 = vmatpush1.msra.mxu0 %v2846
        %3340 = vmatprep.subr.mxu0 %v2851
        %3341 = vmatpush1.msra.mxu0 %v2850
        %3342 = vmatprep.subr.mxu0 %v2855
        %3343 = vmatpush1.msra.mxu0 %v2854
        %3344 = vmatprep.subr.mxu0 %v2859
        %3345 = vmatpush1.msra.mxu0 %v2858
        %3346 = vmatprep.subr.mxu0 %v2863
        %3347 = vmatpush1.msra.mxu0 %v2862
        %3348 = vmatprep.subr.mxu0 %v2867
        %3349 = vmatpush1.msra.mxu0 %v2866
        %3350 = vmatprep.subr.mxu0 %v2871
        %3351 = vmatpush1.msra.mxu0 %v2870
        %3352 = vmatprep.subr.mxu0 %v2875
        %3353 = vmatpush1.msra.mxu0 %v2874
        %3354 = vmatprep.subr.mxu0 %v2879
        %3355 = vmatpush1.msra.mxu0 %v2878
        %3356 = vmatprep.subr.mxu0 %v2883
        %3357 = vmatpush1.msra.mxu0 %v2882
        %3358 = vmatprep.subr.mxu0 %v2887
        %3359 = vmatpush1.msra.mxu0 %v2886
        %3360 = vmatprep.subr.mxu0 %v2891
        %3361 = vmatpush1.msra.mxu0 %v2890
        %3362 = vmatprep.subr.mxu0 %v2895
        %3363 = vmatpush1.msra.mxu0 %v2894
        %3364 = vmatprep.subr.mxu0 %v2899
        %3365 = vmatpush1.msra.mxu0 %v2898
        %3366 = vmatprep.subr.mxu0 %v2903
        %3367 = vmatpush1.msra.mxu0 %v2902
        %3368 = vmatprep.subr.mxu0 %v2907
        %3369 = vmatpush1.msra.mxu0 %v2906
        %3370 = vmatprep.subr.mxu0 %v2911
        %3371 = vmatpush1.msra.mxu0 %v2910
        %3372 = vmatprep.subr.mxu0 %v2915
        %3373 = vmatpush1.msra.mxu0 %v2914
        %3374 = vmatprep.subr.mxu0 %v2919
        %3375 = vmatpush1.msra.mxu0 %v2918
        %3376 = vmatprep.subr.mxu0 %v2923
        %3377 = vmatpush1.msra.mxu0 %v2922
        %3378 = vmatprep.subr.mxu0 %v2927
        %3379 = vmatpush1.msra.mxu0 %v2926
        %3380 = vmatprep.subr.mxu0 %v2931
        %3381 = vmatpush1.msra.mxu0 %v2930
        %3382 = vmatprep.subr.mxu0 %v2935
        %3383 = vmatpush1.msra.mxu0 %v2934
        %3384 = vmatprep.mubr.f32.mxu0 %v3173
        %3385 = vmatmul.mubr.f32.gmra.mrb[0].mxu0 %v3171
        %v3386 = vpop.f32.mrb[0].mxu0
        %v3387 = vadd.f32 0.0, %v3386
        %v3388 = vpop.f32.mrb[0].mxu0
        %v3389 = vadd.f32 0.0, %v3388
        %3390 = vdwg.mxu0
        %3391 = vmatprep.subr.mxu0 %v2939
        %3392 = vmatpush1.msra.mxu0 %v2938
        %3393 = vmatprep.subr.mxu0 %v2943
        %3394 = vmatpush1.msra.mxu0 %v2942
        %3395 = vmatprep.subr.mxu0 %v2947
        %3396 = vmatpush1.msra.mxu0 %v2946
        %3397 = vmatprep.subr.mxu0 %v2951
        %3398 = vmatpush1.msra.mxu0 %v2950
        %3399 = vmatprep.subr.mxu0 %v2955
        %3400 = vmatpush1.msra.mxu0 %v2954
        %3401 = vmatprep.subr.mxu0 %v2959
        %3402 = vmatpush1.msra.mxu0 %v2958
        %3403 = vmatprep.subr.mxu0 %v2963
        %3404 = vmatpush1.msra.mxu0 %v2962
        %3405 = vmatprep.subr.mxu0 %v2967
        %3406 = vmatpush1.msra.mxu0 %v2966
        %3407 = vmatprep.subr.mxu0 %v2971
        %3408 = vmatpush1.msra.mxu0 %v2970
        %3409 = vmatprep.subr.mxu0 %v2975
        %3410 = vmatpush1.msra.mxu0 %v2974
        %3411 = vmatprep.subr.mxu0 %v2979
        %3412 = vmatpush1.msra.mxu0 %v2978
        %3413 = vmatprep.subr.mxu0 %v2983
        %3414 = vmatpush1.msra.mxu0 %v2982
        %3415 = vmatprep.subr.mxu0 %v2987
        %3416 = vmatpush1.msra.mxu0 %v2986
        %3417 = vmatprep.subr.mxu0 %v2991
        %3418 = vmatpush1.msra.mxu0 %v2990
        %3419 = vmatprep.subr.mxu0 %v2995
        %3420 = vmatpush1.msra.mxu0 %v2994
        %3421 = vmatprep.subr.mxu0 %v2999
        %3422 = vmatpush1.msra.mxu0 %v2998
        %3423 = vmatprep.subr.mxu0 %v3003
        %3424 = vmatpush1.msra.mxu0 %v3002
        %3425 = vmatprep.subr.mxu0 %v3007
        %3426 = vmatpush1.msra.mxu0 %v3006
        %3427 = vmatprep.subr.mxu0 0.0
        %3428 = vmatpush1.msra.mxu0 0.0
        %3429 = vmatprep.subr.mxu0 0.0
        %3430 = vmatpush1.msra.mxu0 0.0
        %3431 = vmatprep.subr.mxu0 0.0
        %3432 = vmatpush1.msra.mxu0 0.0
        %3433 = vmatprep.subr.mxu0 0.0
        %3434 = vmatpush1.msra.mxu0 0.0
        %3435 = vmatprep.subr.mxu0 0.0
        %3436 = vmatpush1.msra.mxu0 0.0
        %3437 = vmatprep.subr.mxu0 0.0
        %3438 = vmatpush1.msra.mxu0 0.0
        %3439 = vmatprep.subr.mxu0 0.0
        %3440 = vmatpush1.msra.mxu0 0.0
        %3441 = vmatprep.subr.mxu0 0.0
        %3442 = vmatpush1.msra.mxu0 0.0
        %3443 = vmatprep.subr.mxu0 0.0
        %3444 = vmatpush1.msra.mxu0 0.0
        %3445 = vmatprep.subr.mxu0 0.0
        %3446 = vmatpush1.msra.mxu0 0.0
        %3447 = vmatprep.subr.mxu0 0.0
        %3448 = vmatpush1.msra.mxu0 0.0
        %3449 = vmatprep.subr.mxu0 0.0
        %3450 = vmatpush1.msra.mxu0 0.0
        %3451 = vmatprep.subr.mxu0 0.0
        %3452 = vmatpush1.msra.mxu0 0.0
        %3453 = vmatprep.subr.mxu0 0.0
        %3454 = vmatpush1.msra.mxu0 0.0
        %3455 = vmatprep.mubr.f32.mxu0 %v3318
        %3456 = vmatmul.mubr.f32.gmra.mrb[0].mxu0 %v3313
        %v3457 = vpop.f32.mrb[0].mxu0
        %v3458 = vadd.f32 %v3387, %v3457
        %v3459 = vpop.f32.mrb[0].mxu0
        %v3460 = vadd.f32 %v3389, %v3459
        %3461 = vdwg.mxu0
        %3462 = vmatprep.subr.mxu0 %v2813
        %3463 = vmatpush1.msra.mxu0 %v2812
        %3464 = vmatprep.subr.mxu0 %v2817
        %3465 = vmatpush1.msra.mxu0 %v2816
        %3466 = vmatprep.subr.mxu0 %v2821
        %3467 = vmatpush1.msra.mxu0 %v2820
        %3468 = vmatprep.subr.mxu0 %v2825
        %3469 = vmatpush1.msra.mxu0 %v2824
        %3470 = vmatprep.subr.mxu0 %v2829
        %3471 = vmatpush1.msra.mxu0 %v2828
        %3472 = vmatprep.subr.mxu0 %v2833
        %3473 = vmatpush1.msra.mxu0 %v2832
        %3474 = vmatprep.subr.mxu0 %v2837
        %3475 = vmatpush1.msra.mxu0 %v2836
        %3476 = vmatprep.subr.mxu0 %v2841
        %3477 = vmatpush1.msra.mxu0 %v2840
        %3478 = vmatprep.subr.mxu0 %v2845
        %3479 = vmatpush1.msra.mxu0 %v2844
        %3480 = vmatprep.subr.mxu0 %v2849
        %3481 = vmatpush1.msra.mxu0 %v2848
        %3482 = vmatprep.subr.mxu0 %v2853
        %3483 = vmatpush1.msra.mxu0 %v2852
        %3484 = vmatprep.subr.mxu0 %v2857
        %3485 = vmatpush1.msra.mxu0 %v2856
        %3486 = vmatprep.subr.mxu0 %v2861
        %3487 = vmatpush1.msra.mxu0 %v2860
        %3488 = vmatprep.subr.mxu0 %v2865
        %3489 = vmatpush1.msra.mxu0 %v2864
        %3490 = vmatprep.subr.mxu0 %v2869
        %3491 = vmatpush1.msra.mxu0 %v2868
        %3492 = vmatprep.subr.mxu0 %v2873
        %3493 = vmatpush1.msra.mxu0 %v2872
        %3494 = vmatprep.subr.mxu0 %v2877
        %3495 = vmatpush1.msra.mxu0 %v2876
        %3496 = vmatprep.subr.mxu0 %v2881
        %3497 = vmatpush1.msra.mxu0 %v2880
        %3498 = vmatprep.subr.mxu0 %v2885
        %3499 = vmatpush1.msra.mxu0 %v2884
        %3500 = vmatprep.subr.mxu0 %v2889
        %3501 = vmatpush1.msra.mxu0 %v2888
        %3502 = vmatprep.subr.mxu0 %v2893
        %3503 = vmatpush1.msra.mxu0 %v2892
        %3504 = vmatprep.subr.mxu0 %v2897
        %3505 = vmatpush1.msra.mxu0 %v2896
        %3506 = vmatprep.subr.mxu0 %v2901
        %3507 = vmatpush1.msra.mxu0 %v2900
        %3508 = vmatprep.subr.mxu0 %v2905
        %3509 = vmatpush1.msra.mxu0 %v2904
        %3510 = vmatprep.subr.mxu0 %v2909
        %3511 = vmatpush1.msra.mxu0 %v2908
        %3512 = vmatprep.subr.mxu0 %v2913
        %3513 = vmatpush1.msra.mxu0 %v2912
        %3514 = vmatprep.subr.mxu0 %v2917
        %3515 = vmatpush1.msra.mxu0 %v2916
        %3516 = vmatprep.subr.mxu0 %v2921
        %3517 = vmatpush1.msra.mxu0 %v2920
        %3518 = vmatprep.subr.mxu0 %v2925
        %3519 = vmatpush1.msra.mxu0 %v2924
        %3520 = vmatprep.subr.mxu0 %v2929
        %3521 = vmatpush1.msra.mxu0 %v2928
        %3522 = vmatprep.subr.mxu0 %v2933
        %3523 = vmatpush1.msra.mxu0 %v2932
        %3524 = vmatprep.subr.mxu0 %v2937
        %3525 = vmatpush1.msra.mxu0 %v2936
        %3526 = vmatprep.mubr.f32.mxu0 %v3173
        %3527 = vmatmul.mubr.f32.gmra.mrb[0].mxu0 %v3171
        %v3528 = vpop.f32.mrb[0].mxu0
        %v3529 = vadd.f32 0.0, %v3528
        %v3530 = vpop.f32.mrb[0].mxu0
        %v3531 = vadd.f32 0.0, %v3530
        %3532 = vdwg.mxu0
        %3533 = vmatprep.subr.mxu0 %v2941
        %3534 = vmatpush1.msra.mxu0 %v2940
        %3535 = vmatprep.subr.mxu0 %v2945
        %3536 = vmatpush1.msra.mxu0 %v2944
        %3537 = vmatprep.subr.mxu0 %v2949
        %3538 = vmatpush1.msra.mxu0 %v2948
        %3539 = vmatprep.subr.mxu0 %v2953
        %3540 = vmatpush1.msra.mxu0 %v2952
        %3541 = vmatprep.subr.mxu0 %v2957
        %3542 = vmatpush1.msra.mxu0 %v2956
        %3543 = vmatprep.subr.mxu0 %v2961
        %3544 = vmatpush1.msra.mxu0 %v2960
        %3545 = vmatprep.subr.mxu0 %v2965
        %3546 = vmatpush1.msra.mxu0 %v2964
        %3547 = vmatprep.subr.mxu0 %v2969
        %3548 = vmatpush1.msra.mxu0 %v2968
        %3549 = vmatprep.subr.mxu0 %v2973
        %3550 = vmatpush1.msra.mxu0 %v2972
        %3551 = vmatprep.subr.mxu0 %v2977
        %3552 = vmatpush1.msra.mxu0 %v2976
        %3553 = vmatprep.subr.mxu0 %v2981
        %3554 = vmatpush1.msra.mxu0 %v2980
        %3555 = vmatprep.subr.mxu0 %v2985
        %3556 = vmatpush1.msra.mxu0 %v2984
        %3557 = vmatprep.subr.mxu0 %v2989
        %3558 = vmatpush1.msra.mxu0 %v2988
        %3559 = vmatprep.subr.mxu0 %v2993
        %3560 = vmatpush1.msra.mxu0 %v2992
        %3561 = vmatprep.subr.mxu0 %v2997
        %3562 = vmatpush1.msra.mxu0 %v2996
        %3563 = vmatprep.subr.mxu0 %v3001
        %3564 = vmatpush1.msra.mxu0 %v3000
        %3565 = vmatprep.subr.mxu0 %v3005
        %3566 = vmatpush1.msra.mxu0 %v3004
        %3567 = vmatprep.subr.mxu0 %v3009
        %3568 = vmatpush1.msra.mxu0 %v3008
        %3569 = vmatprep.subr.mxu0 0.0
        %3570 = vmatpush1.msra.mxu0 0.0
        %3571 = vmatprep.subr.mxu0 0.0
        %3572 = vmatpush1.msra.mxu0 0.0
        %3573 = vmatprep.subr.mxu0 0.0
        %3574 = vmatpush1.msra.mxu0 0.0
        %3575 = vmatprep.subr.mxu0 0.0
        %3576 = vmatpush1.msra.mxu0 0.0
        %3577 = vmatprep.subr.mxu0 0.0
        %3578 = vmatpush1.msra.mxu0 0.0
        %3579 = vmatprep.subr.mxu0 0.0
        %3580 = vmatpush1.msra.mxu0 0.0
        %3581 = vmatprep.subr.mxu0 0.0
        %3582 = vmatpush1.msra.mxu0 0.0
        %3583 = vmatprep.subr.mxu0 0.0
        %3584 = vmatpush1.msra.mxu0 0.0
        %3585 = vmatprep.subr.mxu0 0.0
        %3586 = vmatpush1.msra.mxu0 0.0
        %3587 = vmatprep.subr.mxu0 0.0
        %3588 = vmatpush1.msra.mxu0 0.0
        %3589 = vmatprep.subr.mxu0 0.0
        %3590 = vmatpush1.msra.mxu0 0.0
        %3591 = vmatprep.subr.mxu0 0.0
        %3592 = vmatpush1.msra.mxu0 0.0
        %3593 = vmatprep.subr.mxu0 0.0
        %3594 = vmatpush1.msra.mxu0 0.0
        %3595 = vmatprep.subr.mxu0 0.0
        %3596 = vmatpush1.msra.mxu0 0.0
        %3597 = vmatprep.mubr.f32.mxu0 %v3318
        %3598 = vmatmul.mubr.f32.gmra.mrb[0].mxu0 %v3313
        %v3599 = vpop.f32.mrb[0].mxu0
        %v3600 = vadd.f32 %v3529, %v3599
        %v3601 = vpop.f32.mrb[0].mxu0
        %v3602 = vadd.f32 %v3531, %v3601
        %3603 = vdwg.mxu0
        %v3604 = vld [vmem:[#allocation10] sm:$0xff]
        %v3605 = vld [vmem:[#allocation10 + $0x8] sm:$0xff]
        %v3606 = vld [vmem:[#allocation10 + $0x10] sm:$0xff]
        %v3607 = vld [vmem:[#allocation10 + $0x18] sm:$0xff]
        %v3608 = vld [vmem:[#allocation10 + $0x20] sm:$0xff]
        %v3609 = vld [vmem:[#allocation10 + $0x28] sm:$0xff]
        %v3610 = vld [vmem:[#allocation10 + $0x30] sm:$0xff]
        %v3611 = vld [vmem:[#allocation10 + $0x38] sm:$0xff]
        %v3612 = vld [vmem:[#allocation10 + $0x40] sm:$0xff]
        %v3613 = vld [vmem:[#allocation10 + $0x48] sm:$0xff]
        %v3614 = vld [vmem:[#allocation10 + $0x50] sm:$0xff]
        %v3615 = vld [vmem:[#allocation10 + $0x58] sm:$0xff]
        %v3616 = vld [vmem:[#allocation10 + $0x60] sm:$0xff]
        %v3617 = vld [vmem:[#allocation10 + $0x68] sm:$0xff]
        %v3618 = vld [vmem:[#allocation10 + $0x70] sm:$0xff]
        %v3619 = vld [vmem:[#allocation10 + $0x78] sm:$0xff]
        %v3620 = vld [vmem:[#allocation10 + $0x80] sm:$0xff]
        %v3621 = vld [vmem:[#allocation10 + $0x88] sm:$0xff]
        %v3622 = vld [vmem:[#allocation10 + $0x90] sm:$0xff]
        %v3623 = vld [vmem:[#allocation10 + $0x98] sm:$0xff]
        %v3624 = vld [vmem:[#allocation10 + $0xa0] sm:$0xff]
        %v3625 = vld [vmem:[#allocation10 + $0xa8] sm:$0xff]
        %v3626 = vld [vmem:[#allocation10 + $0xb0] sm:$0xff]
        %v3627 = vld [vmem:[#allocation10 + $0xb8] sm:$0xff]
        %v3628 = vld [vmem:[#allocation10 + $0xc0] sm:$0xff]
        %v3629 = vld [vmem:[#allocation10 + $0xc8] sm:$0xff]
        %v3630 = vld [vmem:[#allocation10 + $0xd0] sm:$0xff]
        %v3631 = vld [vmem:[#allocation10 + $0xd8] sm:$0xff]
        %v3632 = vld [vmem:[#allocation10 + $0xe0] sm:$0xff]
        %v3633 = vld [vmem:[#allocation10 + $0xe8] sm:$0xff]
        %v3634 = vld [vmem:[#allocation10 + $0xf0] sm:$0xff]
        %v3635 = vld [vmem:[#allocation10 + $0xf8] sm:$0xff]
        %v3636 = vld [vmem:[#allocation10 + $0x100] sm:$0xff]
        %v3637 = vld [vmem:[#allocation10 + $0x108] sm:$0xff]
        %v3638 = vld [vmem:[#allocation10 + $0x110] sm:$0xff]
        %v3639 = vld [vmem:[#allocation10 + $0x118] sm:$0xff]
        %v3640 = vld [vmem:[#allocation10 + $0x120] sm:$0xff]
        %v3641 = vld [vmem:[#allocation10 + $0x128] sm:$0xff]
        %v3642 = vld [vmem:[#allocation10 + $0x130] sm:$0xff]
        %v3643 = vld [vmem:[#allocation10 + $0x138] sm:$0xff]
        %v3644 = vld [vmem:[#allocation10 + $0x140] sm:$0xff]
        %v3645 = vld [vmem:[#allocation10 + $0x148] sm:$0xff]
        %v3646 = vld [vmem:[#allocation10 + $0x150] sm:$0xff]
        %v3647 = vld [vmem:[#allocation10 + $0x158] sm:$0xff]
        %v3648 = vld [vmem:[#allocation10 + $0x160] sm:$0xff]
        %v3649 = vld [vmem:[#allocation10 + $0x168] sm:$0xff]
        %v3650 = vld [vmem:[#allocation10 + $0x170] sm:$0xff]
        %v3651 = vld [vmem:[#allocation10 + $0x178] sm:$0xff]
        %v3652 = vld [vmem:[#allocation10 + $0x180] sm:$0xff]
        %v3653 = vld [vmem:[#allocation10 + $0x188] sm:$0xff]
        %v3654 = vld [vmem:[#allocation10 + $0x190] sm:$0xff]
        %v3655 = vld [vmem:[#allocation10 + $0x198] sm:$0xff]
        %v3656 = vld [vmem:[#allocation10 + $0x1a0] sm:$0xff]
        %v3657 = vld [vmem:[#allocation10 + $0x1a8] sm:$0xff]
        %v3658 = vld [vmem:[#allocation10 + $0x1b0] sm:$0xff]
        %v3659 = vld [vmem:[#allocation10 + $0x1b8] sm:$0xff]
        %v3660 = vld [vmem:[#allocation10 + $0x1c0] sm:$0xff]
        %v3661 = vld [vmem:[#allocation10 + $0x1c8] sm:$0xff]
        %v3662 = vld [vmem:[#allocation10 + $0x1d0] sm:$0xff]
        %v3663 = vld [vmem:[#allocation10 + $0x1d8] sm:$0xff]
        %v3664 = vld [vmem:[#allocation10 + $0x1e0] sm:$0xff]
        %v3665 = vld [vmem:[#allocation10 + $0x1e8] sm:$0xff]
        %v3666 = vld [vmem:[#allocation10 + $0x1f0] sm:$0xff]
        %v3667 = vld [vmem:[#allocation10 + $0x1f8] sm:$0xff]
        %v3668 = vld [vmem:[#allocation10 + $0x200] sm:$0xff]
        %v3669 = vld [vmem:[#allocation10 + $0x208] sm:$0xff]
        %v3670 = vld [vmem:[#allocation10 + $0x210] sm:$0xff]
        %v3671 = vld [vmem:[#allocation10 + $0x218] sm:$0xff]
        %v3672 = vld [vmem:[#allocation10 + $0x220] sm:$0xff]
        %v3673 = vld [vmem:[#allocation10 + $0x228] sm:$0xff]
        %v3674 = vld [vmem:[#allocation10 + $0x230] sm:$0xff]
        %v3675 = vld [vmem:[#allocation10 + $0x238] sm:$0xff]
        %v3676 = vld [vmem:[#allocation10 + $0x240] sm:$0xff]
        %v3677 = vld [vmem:[#allocation10 + $0x248] sm:$0xff]
        %v3678 = vld [vmem:[#allocation10 + $0x250] sm:$0xff]
        %v3679 = vld [vmem:[#allocation10 + $0x258] sm:$0xff]
        %v3680 = vld [vmem:[#allocation10 + $0x260] sm:$0xff]
        %v3681 = vld [vmem:[#allocation10 + $0x268] sm:$0xff]
        %v3682 = vld [vmem:[#allocation10 + $0x270] sm:$0xff]
        %v3683 = vld [vmem:[#allocation10 + $0x278] sm:$0xff]
        %v3684 = vld [vmem:[#allocation10 + $0x280] sm:$0xff]
        %v3685 = vld [vmem:[#allocation10 + $0x288] sm:$0xff]
        %v3686 = vld [vmem:[#allocation10 + $0x290] sm:$0xff]
        %v3687 = vld [vmem:[#allocation10 + $0x298] sm:$0xff]
        %v3688 = vld [vmem:[#allocation10 + $0x2a0] sm:$0xff]
        %v3689 = vld [vmem:[#allocation10 + $0x2a8] sm:$0xff]
        %v3690 = vld [vmem:[#allocation10 + $0x2b0] sm:$0xff]
        %v3691 = vld [vmem:[#allocation10 + $0x2b8] sm:$0xff]
        %v3692 = vld [vmem:[#allocation10 + $0x2c0] sm:$0xff]
        %v3693 = vld [vmem:[#allocation10 + $0x2c8] sm:$0xff]
        %v3694 = vld [vmem:[#allocation10 + $0x2d0] sm:$0xff]
        %v3695 = vld [vmem:[#allocation10 + $0x2d8] sm:$0xff]
        %v3696 = vld [vmem:[#allocation10 + $0x2e0] sm:$0xff]
        %v3697 = vld [vmem:[#allocation10 + $0x2e8] sm:$0xff]
        %v3698 = vld [vmem:[#allocation10 + $0x2f0] sm:$0xff]
        %v3699 = vld [vmem:[#allocation10 + $0x2f8] sm:$0xff]
        %v3700 = vld [vmem:[#allocation10 + $0x300] sm:$0xff]
        %v3701 = vld [vmem:[#allocation10 + $0x308] sm:$0xff]
        %v3702 = vld [vmem:[#allocation10 + $0x310] sm:$0xff]
        %v3703 = vld [vmem:[#allocation10 + $0x318] sm:$0xff]
        %v3704 = vld [vmem:[#allocation10 + $0x320] sm:$0xff]
        %v3705 = vld [vmem:[#allocation10 + $0x328] sm:$0xff]
        %v3706 = vld [vmem:[#allocation10 + $0x330] sm:$0xff]
        %v3707 = vld [vmem:[#allocation10 + $0x338] sm:$0xff]
        %v3708 = vld [vmem:[#allocation10 + $0x340] sm:$0xff]
        %v3709 = vld [vmem:[#allocation10 + $0x348] sm:$0xff]
        %v3710 = vld [vmem:[#allocation10 + $0x350] sm:$0xff]
        %v3711 = vld [vmem:[#allocation10 + $0x358] sm:$0xff]
        %v3712 = vld [vmem:[#allocation10 + $0x360] sm:$0xff]
        %v3713 = vld [vmem:[#allocation10 + $0x368] sm:$0xff]
        %v3714 = vld [vmem:[#allocation10 + $0x370] sm:$0xff]
        %v3715 = vld [vmem:[#allocation10 + $0x378] sm:$0xff]
        %v3716 = vld [vmem:[#allocation10 + $0x380] sm:$0xff]
        %v3717 = vld [vmem:[#allocation10 + $0x388] sm:$0xff]
        %v3718 = vld [vmem:[#allocation10 + $0x390] sm:$0xff]
        %v3719 = vld [vmem:[#allocation10 + $0x398] sm:$0xff]
        %v3720 = vld [vmem:[#allocation10 + $0x3a0] sm:$0xff]
        %v3721 = vld [vmem:[#allocation10 + $0x3a8] sm:$0xff]
        %v3722 = vld [vmem:[#allocation10 + $0x3b0] sm:$0xff]
        %v3723 = vld [vmem:[#allocation10 + $0x3b8] sm:$0xff]
        %v3724 = vld [vmem:[#allocation10 + $0x3c0] sm:$0xff]
        %v3725 = vld [vmem:[#allocation10 + $0x3c8] sm:$0xff]
        %v3726 = vld [vmem:[#allocation10 + $0x3d0] sm:$0xff]
        %v3727 = vld [vmem:[#allocation10 + $0x3d8] sm:$0xff]
        %v3728 = vld [vmem:[#allocation10 + $0x3e0] sm:$0xff]
        %v3729 = vld [vmem:[#allocation10 + $0x3e8] sm:$0xff]
        %v3730 = vld [vmem:[#allocation10 + $0x3f0] sm:$0xff]
        %v3731 = vld [vmem:[#allocation10 + $0x3f8] sm:$0xff]
        %v3732 = vld [vmem:[#allocation10 + $0x400] sm:$0xff]
        %v3733 = vld [vmem:[#allocation10 + $0x408] sm:$0xff]
        %v3734 = vld [vmem:[#allocation10 + $0x410] sm:$0xff]
        %v3735 = vld [vmem:[#allocation10 + $0x418] sm:$0xff]
        %v3736 = vld [vmem:[#allocation10 + $0x420] sm:$0xff]
        %v3737 = vld [vmem:[#allocation10 + $0x428] sm:$0xff]
        %v3738 = vld [vmem:[#allocation10 + $0x430] sm:$0xff]
        %v3739 = vld [vmem:[#allocation10 + $0x438] sm:$0xff]
        %v3740 = vld [vmem:[#allocation10 + $0x440] sm:$0xff]
        %v3741 = vld [vmem:[#allocation10 + $0x448] sm:$0xff]
        %v3742 = vld [vmem:[#allocation10 + $0x450] sm:$0xff]
        %v3743 = vld [vmem:[#allocation10 + $0x458] sm:$0xff]
        %v3744 = vld [vmem:[#allocation10 + $0x460] sm:$0xff]
        %v3745 = vld [vmem:[#allocation10 + $0x468] sm:$0xff]
        %v3746 = vld [vmem:[#allocation10 + $0x470] sm:$0xff]
        %v3747 = vld [vmem:[#allocation10 + $0x478] sm:$0xff]
        %v3748 = vld [vmem:[#allocation10 + $0x480] sm:$0xff]
        %v3749 = vld [vmem:[#allocation10 + $0x488] sm:$0xff]
        %v3750 = vld [vmem:[#allocation10 + $0x490] sm:$0xff]
        %v3751 = vld [vmem:[#allocation10 + $0x498] sm:$0xff]
        %v3752 = vld [vmem:[#allocation10 + $0x4a0] sm:$0xff]
        %v3753 = vld [vmem:[#allocation10 + $0x4a8] sm:$0xff]
        %v3754 = vld [vmem:[#allocation10 + $0x4b0] sm:$0xff]
        %v3755 = vld [vmem:[#allocation10 + $0x4b8] sm:$0xff]
        %v3756 = vld [vmem:[#allocation10 + $0x4c0] sm:$0xff]
        %v3757 = vld [vmem:[#allocation10 + $0x4c8] sm:$0xff]
        %v3758 = vld [vmem:[#allocation10 + $0x4d0] sm:$0xff]
        %v3759 = vld [vmem:[#allocation10 + $0x4d8] sm:$0xff]
        %v3760 = vld [vmem:[#allocation10 + $0x4e0] sm:$0xff]
        %v3761 = vld [vmem:[#allocation10 + $0x4e8] sm:$0xff]
        %v3762 = vld [vmem:[#allocation10 + $0x4f0] sm:$0xff]
        %v3763 = vld [vmem:[#allocation10 + $0x4f8] sm:$0xff]
        %v3764 = vld [vmem:[#allocation10 + $0x500] sm:$0xff]
        %v3765 = vld [vmem:[#allocation10 + $0x508] sm:$0xff]
        %v3766 = vld [vmem:[#allocation10 + $0x510] sm:$0xff]
        %v3767 = vld [vmem:[#allocation10 + $0x518] sm:$0xff]
        %v3768 = vld [vmem:[#allocation10 + $0x520] sm:$0xff]
        %v3769 = vld [vmem:[#allocation10 + $0x528] sm:$0xff]
        %v3770 = vld [vmem:[#allocation10 + $0x530] sm:$0xff]
        %v3771 = vld [vmem:[#allocation10 + $0x538] sm:$0xff]
        %v3772 = vld [vmem:[#allocation10 + $0x540] sm:$0xff]
        %v3773 = vld [vmem:[#allocation10 + $0x548] sm:$0xff]
        %v3774 = vld [vmem:[#allocation10 + $0x550] sm:$0xff]
        %v3775 = vld [vmem:[#allocation10 + $0x558] sm:$0xff]
        %v3776 = vld [vmem:[#allocation10 + $0x560] sm:$0xff]
        %v3777 = vld [vmem:[#allocation10 + $0x568] sm:$0xff]
        %v3778 = vld [vmem:[#allocation10 + $0x570] sm:$0xff]
        %v3779 = vld [vmem:[#allocation10 + $0x578] sm:$0xff]
        %v3780 = vld [vmem:[#allocation10 + $0x580] sm:$0xff]
        %v3781 = vld [vmem:[#allocation10 + $0x588] sm:$0xff]
        %v3782 = vld [vmem:[#allocation10 + $0x590] sm:$0xff]
        %v3783 = vld [vmem:[#allocation10 + $0x598] sm:$0xff]
        %v3784 = vld [vmem:[#allocation10 + $0x5a0] sm:$0xff]
        %v3785 = vld [vmem:[#allocation10 + $0x5a8] sm:$0xff]
        %v3786 = vld [vmem:[#allocation10 + $0x5b0] sm:$0xff]
        %v3787 = vld [vmem:[#allocation10 + $0x5b8] sm:$0xff]
        %v3788 = vld [vmem:[#allocation10 + $0x5c0] sm:$0xff]
        %v3789 = vld [vmem:[#allocation10 + $0x5c8] sm:$0xff]
        %v3790 = vld [vmem:[#allocation10 + $0x5d0] sm:$0xff]
        %v3791 = vld [vmem:[#allocation10 + $0x5d8] sm:$0xff]
        %v3792 = vld [vmem:[#allocation10 + $0x5e0] sm:$0xff]
        %v3793 = vld [vmem:[#allocation10 + $0x5e8] sm:$0xff]
        %v3794 = vld [vmem:[#allocation10 + $0x5f0] sm:$0xff]
        %v3795 = vld [vmem:[#allocation10 + $0x5f8] sm:$0xff]
        %v3796 = vld [vmem:[#allocation10 + $0x600] sm:$0xff]
        %v3797 = vld [vmem:[#allocation10 + $0x608] sm:$0xff]
        %v3798 = vld [vmem:[#allocation10 + $0x610] sm:$0xff]
        %v3799 = vld [vmem:[#allocation10 + $0x618] sm:$0xff]
        %v3800 = vld [vmem:[#allocation10 + $0x620] sm:$0xff]
        %v3801 = vld [vmem:[#allocation10 + $0x628] sm:$0xff]
        %v3802 = vld [vmem:[#allocation10 + $0x630] sm:$0xff]
        %v3803 = vld [vmem:[#allocation10 + $0x638] sm:$0xff]
        %v3804 = vld [vmem:[#allocation11] sm:$0xf]
        %v3806 = vlaneseq
        %v3807 = vshrl.u32 %v3806, 7
        %v3808 = vsub.s32 0, %v3807
        %v3809 = vrot.slane %v3804, %v3808
        %v3810 = vlaneseq
        %v3811 = vshrl.u32 %v3810, 7
        %v3812 = vsub.s32 1, %v3811
        %v3813 = vrot.slane %v3804, %v3812
        %v3814 = vlaneseq
        %v3815 = vshrl.u32 %v3814, 7
        %v3816 = vsub.s32 2, %v3815
        %v3817 = vrot.slane %v3804, %v3816
        %v3818 = vlaneseq
        %v3819 = vshrl.u32 %v3818, 7
        %v3820 = vsub.s32 3, %v3819
        %v3821 = vrot.slane %v3804, %v3820
        %v3827 = vsel %vm537, %v3602, 0
        %3829 = vmatprep.subr.mxu0 %v3605
        %3830 = vmatpush1.msra.mxu0 %v3604
        %3831 = vmatprep.subr.mxu0 %v3609
        %3832 = vmatpush1.msra.mxu0 %v3608
        %3833 = vmatprep.subr.mxu0 %v3613
        %3834 = vmatpush1.msra.mxu0 %v3612
        %3835 = vmatprep.subr.mxu0 %v3617
        %3836 = vmatpush1.msra.mxu0 %v3616
        %3837 = vmatprep.subr.mxu0 %v3621
        %3838 = vmatpush1.msra.mxu0 %v3620
        %3839 = vmatprep.subr.mxu0 %v3625
        %3840 = vmatpush1.msra.mxu0 %v3624
        %3841 = vmatprep.subr.mxu0 %v3629
        %3842 = vmatpush1.msra.mxu0 %v3628
        %3843 = vmatprep.subr.mxu0 %v3633
        %3844 = vmatpush1.msra.mxu0 %v3632
        %3845 = vmatprep.subr.mxu0 %v3637
        %3846 = vmatpush1.msra.mxu0 %v3636
        %3847 = vmatprep.subr.mxu0 %v3641
        %3848 = vmatpush1.msra.mxu0 %v3640
        %3849 = vmatprep.subr.mxu0 %v3645
        %3850 = vmatpush1.msra.mxu0 %v3644
        %3851 = vmatprep.subr.mxu0 %v3649
        %3852 = vmatpush1.msra.mxu0 %v3648
        %3853 = vmatprep.subr.mxu0 %v3653
        %3854 = vmatpush1.msra.mxu0 %v3652
        %3855 = vmatprep.subr.mxu0 %v3657
        %3856 = vmatpush1.msra.mxu0 %v3656
        %3857 = vmatprep.subr.mxu0 %v3661
        %3858 = vmatpush1.msra.mxu0 %v3660
        %3859 = vmatprep.subr.mxu0 %v3665
        %3860 = vmatpush1.msra.mxu0 %v3664
        %3861 = vmatprep.subr.mxu0 %v3669
        %3862 = vmatpush1.msra.mxu0 %v3668
        %3863 = vmatprep.subr.mxu0 %v3673
        %3864 = vmatpush1.msra.mxu0 %v3672
        %3865 = vmatprep.subr.mxu0 %v3677
        %3866 = vmatpush1.msra.mxu0 %v3676
        %3867 = vmatprep.subr.mxu0 %v3681
        %3868 = vmatpush1.msra.mxu0 %v3680
        %3869 = vmatprep.subr.mxu0 %v3685
        %3870 = vmatpush1.msra.mxu0 %v3684
        %3871 = vmatprep.subr.mxu0 %v3689
        %3872 = vmatpush1.msra.mxu0 %v3688
        %3873 = vmatprep.subr.mxu0 %v3693
        %3874 = vmatpush1.msra.mxu0 %v3692
        %3875 = vmatprep.subr.mxu0 %v3697
        %3876 = vmatpush1.msra.mxu0 %v3696
        %3877 = vmatprep.subr.mxu0 %v3701
        %3878 = vmatpush1.msra.mxu0 %v3700
        %3879 = vmatprep.subr.mxu0 %v3705
        %3880 = vmatpush1.msra.mxu0 %v3704
        %3881 = vmatprep.subr.mxu0 %v3709
        %3882 = vmatpush1.msra.mxu0 %v3708
        %3883 = vmatprep.subr.mxu0 %v3713
        %3884 = vmatpush1.msra.mxu0 %v3712
        %3885 = vmatprep.subr.mxu0 %v3717
        %3886 = vmatpush1.msra.mxu0 %v3716
        %3887 = vmatprep.subr.mxu0 %v3721
        %3888 = vmatpush1.msra.mxu0 %v3720
        %3889 = vmatprep.subr.mxu0 %v3725
        %3890 = vmatpush1.msra.mxu0 %v3724
        %3891 = vmatprep.subr.mxu0 %v3729
        %3892 = vmatpush1.msra.mxu0 %v3728
        %3893 = vmatprep.mubr.f32.mxu0 %v3460
        %3894 = vmatmul.mubr.f32.gmra.mrb[0].mxu0 %v3458
        %v3895 = vpop.f32.mrb[0].mxu0
        %v3896 = vadd.f32 %v3809, %v3895
        %v3897 = vpop.f32.mrb[0].mxu0
        %v3898 = vadd.f32 %v3813, %v3897
        %3899 = vdwg.mxu0
        %3900 = vmatprep.subr.mxu0 %v3733
        %3901 = vmatpush1.msra.mxu0 %v3732
        %3902 = vmatprep.subr.mxu0 %v3737
        %3903 = vmatpush1.msra.mxu0 %v3736
        %3904 = vmatprep.subr.mxu0 %v3741
        %3905 = vmatpush1.msra.mxu0 %v3740
        %3906 = vmatprep.subr.mxu0 %v3745
        %3907 = vmatpush1.msra.mxu0 %v3744
        %3908 = vmatprep.subr.mxu0 %v3749
        %3909 = vmatpush1.msra.mxu0 %v3748
        %3910 = vmatprep.subr.mxu0 %v3753
        %3911 = vmatpush1.msra.mxu0 %v3752
        %3912 = vmatprep.subr.mxu0 %v3757
        %3913 = vmatpush1.msra.mxu0 %v3756
        %3914 = vmatprep.subr.mxu0 %v3761
        %3915 = vmatpush1.msra.mxu0 %v3760
        %3916 = vmatprep.subr.mxu0 %v3765
        %3917 = vmatpush1.msra.mxu0 %v3764
        %3918 = vmatprep.subr.mxu0 %v3769
        %3919 = vmatpush1.msra.mxu0 %v3768
        %3920 = vmatprep.subr.mxu0 %v3773
        %3921 = vmatpush1.msra.mxu0 %v3772
        %3922 = vmatprep.subr.mxu0 %v3777
        %3923 = vmatpush1.msra.mxu0 %v3776
        %3924 = vmatprep.subr.mxu0 %v3781
        %3925 = vmatpush1.msra.mxu0 %v3780
        %3926 = vmatprep.subr.mxu0 %v3785
        %3927 = vmatpush1.msra.mxu0 %v3784
        %3928 = vmatprep.subr.mxu0 %v3789
        %3929 = vmatpush1.msra.mxu0 %v3788
        %3930 = vmatprep.subr.mxu0 %v3793
        %3931 = vmatpush1.msra.mxu0 %v3792
        %3932 = vmatprep.subr.mxu0 %v3797
        %3933 = vmatpush1.msra.mxu0 %v3796
        %3934 = vmatprep.subr.mxu0 %v3801
        %3935 = vmatpush1.msra.mxu0 %v3800
        %3936 = vmatprep.subr.mxu0 0.0
        %3937 = vmatpush1.msra.mxu0 0.0
        %3938 = vmatprep.subr.mxu0 0.0
        %3939 = vmatpush1.msra.mxu0 0.0
        %3940 = vmatprep.subr.mxu0 0.0
        %3941 = vmatpush1.msra.mxu0 0.0
        %3942 = vmatprep.subr.mxu0 0.0
        %3943 = vmatpush1.msra.mxu0 0.0
        %3944 = vmatprep.subr.mxu0 0.0
        %3945 = vmatpush1.msra.mxu0 0.0
        %3946 = vmatprep.subr.mxu0 0.0
        %3947 = vmatpush1.msra.mxu0 0.0
        %3948 = vmatprep.subr.mxu0 0.0
        %3949 = vmatpush1.msra.mxu0 0.0
        %3950 = vmatprep.subr.mxu0 0.0
        %3951 = vmatpush1.msra.mxu0 0.0
        %3952 = vmatprep.subr.mxu0 0.0
        %3953 = vmatpush1.msra.mxu0 0.0
        %3954 = vmatprep.subr.mxu0 0.0
        %3955 = vmatpush1.msra.mxu0 0.0
        %3956 = vmatprep.subr.mxu0 0.0
        %3957 = vmatpush1.msra.mxu0 0.0
        %3958 = vmatprep.subr.mxu0 0.0
        %3959 = vmatpush1.msra.mxu0 0.0
        %3960 = vmatprep.subr.mxu0 0.0
        %3961 = vmatpush1.msra.mxu0 0.0
        %3962 = vmatprep.subr.mxu0 0.0
        %3963 = vmatpush1.msra.mxu0 0.0
        %3964 = vmatprep.mubr.f32.mxu0 %v3827
        %3965 = vmatmul.mubr.f32.gmra.mrb[0].mxu0 %v3600
        %v3966 = vpop.f32.mrb[0].mxu0
        %v3967 = vadd.f32 %v3896, %v3966
        %v3968 = vpop.f32.mrb[0].mxu0
        %v3969 = vadd.f32 %v3898, %v3968
        %3970 = vdwg.mxu0
        %3971 = vmatprep.subr.mxu0 %v3607
        %3972 = vmatpush1.msra.mxu0 %v3606
        %3973 = vmatprep.subr.mxu0 %v3611
        %3974 = vmatpush1.msra.mxu0 %v3610
        %3975 = vmatprep.subr.mxu0 %v3615
        %3976 = vmatpush1.msra.mxu0 %v3614
        %3977 = vmatprep.subr.mxu0 %v3619
        %3978 = vmatpush1.msra.mxu0 %v3618
        %3979 = vmatprep.subr.mxu0 %v3623
        %3980 = vmatpush1.msra.mxu0 %v3622
        %3981 = vmatprep.subr.mxu0 %v3627
        %3982 = vmatpush1.msra.mxu0 %v3626
        %3983 = vmatprep.subr.mxu0 %v3631
        %3984 = vmatpush1.msra.mxu0 %v3630
        %3985 = vmatprep.subr.mxu0 %v3635
        %3986 = vmatpush1.msra.mxu0 %v3634
        %3987 = vmatprep.subr.mxu0 %v3639
        %3988 = vmatpush1.msra.mxu0 %v3638
        %3989 = vmatprep.subr.mxu0 %v3643
        %3990 = vmatpush1.msra.mxu0 %v3642
        %3991 = vmatprep.subr.mxu0 %v3647
        %3992 = vmatpush1.msra.mxu0 %v3646
        %3993 = vmatprep.subr.mxu0 %v3651
        %3994 = vmatpush1.msra.mxu0 %v3650
        %3995 = vmatprep.subr.mxu0 %v3655
        %3996 = vmatpush1.msra.mxu0 %v3654
        %3997 = vmatprep.subr.mxu0 %v3659
        %3998 = vmatpush1.msra.mxu0 %v3658
        %3999 = vmatprep.subr.mxu0 %v3663
        %4000 = vmatpush1.msra.mxu0 %v3662
        %4001 = vmatprep.subr.mxu0 %v3667
        %4002 = vmatpush1.msra.mxu0 %v3666
        %4003 = vmatprep.subr.mxu0 %v3671
        %4004 = vmatpush1.msra.mxu0 %v3670
        %4005 = vmatprep.subr.mxu0 %v3675
        %4006 = vmatpush1.msra.mxu0 %v3674
        %4007 = vmatprep.subr.mxu0 %v3679
        %4008 = vmatpush1.msra.mxu0 %v3678
        %4009 = vmatprep.subr.mxu0 %v3683
        %4010 = vmatpush1.msra.mxu0 %v3682
        %4011 = vmatprep.subr.mxu0 %v3687
        %4012 = vmatpush1.msra.mxu0 %v3686
        %4013 = vmatprep.subr.mxu0 %v3691
        %4014 = vmatpush1.msra.mxu0 %v3690
        %4015 = vmatprep.subr.mxu0 %v3695
        %4016 = vmatpush1.msra.mxu0 %v3694
        %4017 = vmatprep.subr.mxu0 %v3699
        %4018 = vmatpush1.msra.mxu0 %v3698
        %4019 = vmatprep.subr.mxu0 %v3703
        %4020 = vmatpush1.msra.mxu0 %v3702
        %4021 = vmatprep.subr.mxu0 %v3707
        %4022 = vmatpush1.msra.mxu0 %v3706
        %4023 = vmatprep.subr.mxu0 %v3711
        %4024 = vmatpush1.msra.mxu0 %v3710
        %4025 = vmatprep.subr.mxu0 %v3715
        %4026 = vmatpush1.msra.mxu0 %v3714
        %4027 = vmatprep.subr.mxu0 %v3719
        %4028 = vmatpush1.msra.mxu0 %v3718
        %4029 = vmatprep.subr.mxu0 %v3723
        %4030 = vmatpush1.msra.mxu0 %v3722
        %4031 = vmatprep.subr.mxu0 %v3727
        %4032 = vmatpush1.msra.mxu0 %v3726
        %4033 = vmatprep.subr.mxu0 %v3731
        %4034 = vmatpush1.msra.mxu0 %v3730
        %4035 = vmatprep.mubr.f32.mxu0 %v3460
        %4036 = vmatmul.mubr.f32.gmra.mrb[0].mxu0 %v3458
        %v4037 = vpop.f32.mrb[0].mxu0
        %v4038 = vadd.f32 %v3817, %v4037
        %v4039 = vpop.f32.mrb[0].mxu0
        %v4040 = vadd.f32 %v3821, %v4039
        %4041 = vdwg.mxu0
        %4042 = vmatprep.subr.mxu0 %v3735
        %4043 = vmatpush1.msra.mxu0 %v3734
        %4044 = vmatprep.subr.mxu0 %v3739
        %4045 = vmatpush1.msra.mxu0 %v3738
        %4046 = vmatprep.subr.mxu0 %v3743
        %4047 = vmatpush1.msra.mxu0 %v3742
        %4048 = vmatprep.subr.mxu0 %v3747
        %4049 = vmatpush1.msra.mxu0 %v3746
        %4050 = vmatprep.subr.mxu0 %v3751
        %4051 = vmatpush1.msra.mxu0 %v3750
        %4052 = vmatprep.subr.mxu0 %v3755
        %4053 = vmatpush1.msra.mxu0 %v3754
        %4054 = vmatprep.subr.mxu0 %v3759
        %4055 = vmatpush1.msra.mxu0 %v3758
        %4056 = vmatprep.subr.mxu0 %v3763
        %4057 = vmatpush1.msra.mxu0 %v3762
        %4058 = vmatprep.subr.mxu0 %v3767
        %4059 = vmatpush1.msra.mxu0 %v3766
        %4060 = vmatprep.subr.mxu0 %v3771
        %4061 = vmatpush1.msra.mxu0 %v3770
        %4062 = vmatprep.subr.mxu0 %v3775
        %4063 = vmatpush1.msra.mxu0 %v3774
        %4064 = vmatprep.subr.mxu0 %v3779
        %4065 = vmatpush1.msra.mxu0 %v3778
        %4066 = vmatprep.subr.mxu0 %v3783
        %4067 = vmatpush1.msra.mxu0 %v3782
        %4068 = vmatprep.subr.mxu0 %v3787
        %4069 = vmatpush1.msra.mxu0 %v3786
        %4070 = vmatprep.subr.mxu0 %v3791
        %4071 = vmatpush1.msra.mxu0 %v3790
        %4072 = vmatprep.subr.mxu0 %v3795
        %4073 = vmatpush1.msra.mxu0 %v3794
        %4074 = vmatprep.subr.mxu0 %v3799
        %4075 = vmatpush1.msra.mxu0 %v3798
        %4076 = vmatprep.subr.mxu0 %v3803
        %4077 = vmatpush1.msra.mxu0 %v3802
        %4078 = vmatprep.subr.mxu0 0.0
        %4079 = vmatpush1.msra.mxu0 0.0
        %4080 = vmatprep.subr.mxu0 0.0
        %4081 = vmatpush1.msra.mxu0 0.0
        %4082 = vmatprep.subr.mxu0 0.0
        %4083 = vmatpush1.msra.mxu0 0.0
        %4084 = vmatprep.subr.mxu0 0.0
        %4085 = vmatpush1.msra.mxu0 0.0
        %4086 = vmatprep.subr.mxu0 0.0
        %4087 = vmatpush1.msra.mxu0 0.0
        %4088 = vmatprep.subr.mxu0 0.0
        %4089 = vmatpush1.msra.mxu0 0.0
        %4090 = vmatprep.subr.mxu0 0.0
        %4091 = vmatpush1.msra.mxu0 0.0
        %4092 = vmatprep.subr.mxu0 0.0
        %4093 = vmatpush1.msra.mxu0 0.0
        %4094 = vmatprep.subr.mxu0 0.0
        %4095 = vmatpush1.msra.mxu0 0.0
        %4096 = vmatprep.subr.mxu0 0.0
        %4097 = vmatpush1.msra.mxu0 0.0
        %4098 = vmatprep.subr.mxu0 0.0
        %4099 = vmatpush1.msra.mxu0 0.0
        %4100 = vmatprep.subr.mxu0 0.0
        %4101 = vmatpush1.msra.mxu0 0.0
        %4102 = vmatprep.subr.mxu0 0.0
        %4103 = vmatpush1.msra.mxu0 0.0
        %4104 = vmatprep.subr.mxu0 0.0
        %4105 = vmatpush1.msra.mxu0 0.0
        %4106 = vmatprep.mubr.f32.mxu0 %v3827
        %4107 = vmatmul.mubr.f32.gmra.mrb[0].mxu0 %v3600
        %v4108 = vpop.f32.mrb[0].mxu0
        %v4109 = vadd.f32 %v4038, %v4108
        %v4110 = vpop.f32.mrb[0].mxu0
        %v4111 = vadd.f32 %v4040, %v4110
        %4112 = vdwg.mxu0
        %v4117 = vcombine.low %v3967, %v3969
        %v4118 = vcombine.low %v4109, %v4111
        %v4120 = vunpack.c.l.s4 1966171168
        %v4121 = vunpack.c.0.s8 %v4120
        %v4122 = vlaneseq
        %v4123 = vshrl.u32 %v4122, 7
        %v4124 = vsub.s32 %v4121, %v4123
        %v4125 = vrot.slane %v4117, %v4124
        %v4127 = vunpack.c.l.s4 1966171168
        %v4128 = vunpack.c.0.s8 %v4127
        %v4129 = vlaneseq
        %v4130 = vshrl.u32 %v4129, 7
        %v4131 = vsub.s32 %v4128, %v4130
        %v4132 = vrot.slane %v4118, %v4131
        %v4133 = vcombine.low %v4125, %v4132
        %v4135 = vunpack.c.l.s4 1966171168
        %v4136 = vunpack.c.0.s8 %v4135
        %v4137 = vlaneseq
        %v4138 = vshrl.u32 %v4137, 7
        %v4139 = vsub.s32 %v4136, %v4138
        %v4140 = vrot.slane %v4133, %v4139
        %v4142 = vlaneseq
        %vm4143 = vcmp.ge.s32.totalorder %v4142, 0
        %vm4144 = vcmp.lt.s32.totalorder %v4142, 512
        %vm4145 = vmand %vm4143, %vm4144
        %4146 = vst.msk [vmem:[%s334] sm:$0xf] %vm4145, %v4140
        %s4147 = sand.u32 %s165, 1
        %s4148 = scalar_lea.sflag [#allocation4], %s4147
        %s4149 = sand.u32 %s165, 1
        %s4150 = smul.addr %s4149, 4
        %s4151 = scalar_lea.vmem [#allocation13], %s4150
        // Predicated region
        $region69: #{tpu_custom_call.1} parent=43 // pred_check
          %p4152 = pneg %p175
        $region70: #{tpu_custom_call.1} parent=43 // pred_check_branch
          %4154 = sbr.rel (%p4152) target = $region72
        $region71: #{tpu_custom_call.1} parent=43 // pred_region
          %s4156 = ssub.s32 64, 64
          %4157 = vsyncadd %s4148, %s4156
          %s4158 = smul.addr %s26, 4
          %s4159 = smul.addr %s4158, 16
          %s4160 = scalar_lea.hbm %s6, %s4159
          %s4162 = sshll.u32 %s4151, 4
          %s4163 = int_to_ptr.vmem [resolvable:$true] %s4162
          %4165 = dma.vmem_to_hbm [thread:$0]  %s4163, 64, %s4160, %s4148
        $region72: #{tpu_custom_call.1} parent=43 // pred_fallthru
          _
      $region44: #{tpu_custom_call.1} parent=5 // pred_fallthru
        _
      %p4166 = scmp.le.s32.totalorder 2, %s21
      // Predicated region
      $region73: #{tpu_custom_call.1} parent=5 // pred_check
        %p4167 = pneg %p4166
      $region74: #{tpu_custom_call.1} parent=5 // pred_check_branch
        %4169 = sbr.rel (%p4167) target = $region76
      $region75: #{tpu_custom_call.1} parent=5 // pred_region
        %s4170 = ssub.s32 %s21, 2
        // Predicated region
        $region77: #{tpu_custom_call.1} parent=75 // pred_check
          %p4171 = pneg %p181
        $region78: #{tpu_custom_call.1} parent=75 // pred_check_branch
          %4173 = sbr.rel (%p4171) target = $region80
        $region79: #{tpu_custom_call.1} parent=75 // pred_region
          %s4174 = sand.u32 %s166, 1
          %s4175 = scalar_lea.sflag [#allocation4], %s4174
          %s4176 = sand.u32 %s166, 1
          %s4177 = smul.addr %s4176, 4
          %s4178 = scalar_lea.vmem [#allocation13], %s4177
          %4179 = dma.done %s4175, 64
        $region80: #{tpu_custom_call.1} parent=75 // pred_fallthru
          _
      $region76: #{tpu_custom_call.1} parent=5 // pred_fallthru
        _
    $region6: #{tpu_custom_call.1} parent=1 // loop_footer
      %s25 = sadd.s32 1, %s21
    $region7: #{tpu_custom_call.1} parent=1 // loop_footer_branch
      %20 = sbr.rel target = $region3
    $region8: #{tpu_custom_call.1} parent=1 // loop_exit
      _
    %4180 = vsyncpa [#allocation3], 1
    %s4181 = scalar_lea.sflag [#allocation3], 1
    %4182 = vsyncpa %s4181, 1
    %4183 = vsyncpa [#allocation6], 1
    %4184 = vsyncpa [#allocation9], 1
    %4185 = vsyncpa [#allocation12], 1
    %4186 = vsyncpa [#allocation4], 1
    %s4187 = scalar_lea.sflag [#allocation4], 1
    %4188 = vsyncpa %s4187, 1

</llo_original>
